<compile_context>
chip_gen: v7x
topology: tpu7x:2x2x1
jax: 0.10.0
libtpu: 0.0.40
codegen_flags: <defaults>
</compile_context>

<pallas_src>
import functools

import numpy as np
import jax
import jax.numpy as jnp
from jax import lax
from jax.experimental import pallas as pl
from jax.experimental.pallas import tpu as pltpu

VMEM = pltpu.MemorySpace.VMEM
_EPS = 1e-5

# Matmul operand dtype.  jnp.bfloat16 halves VMEM/vreg bytes and is native on
# v6e/v7x MXUs; kept at f32 here so the kernel stays within the 5e-3
# validation tolerance of the f32 reference.  Accumulation is f32 either way.
_MATMUL_DTYPE = jnp.float32


def _mm(a, b):
    return jnp.dot(a.astype(_MATMUL_DTYPE), b.astype(_MATMUL_DTYPE),
                   preferred_element_type=jnp.float32)


# ------------------------------- kernel -------------------------------------

def decoder_kernel(x1_ref, x2_ref, up_ref, pool_ref, xmask_ref,
                   w11_ref, watt_ref, wcc_ref, w12_ref, wres_ref,
                   g1_ref, b1_ref, g2_ref, b2_ref, g3_ref, b3_ref,
                   g4_ref, b4_ref,
                   o_ref,
                   x_scr, y2_scr, pad_scr,
                   *, batch, height, width, pad):
    """Fully fused decoder on a (C, B*H*W) lane-dense internal layout."""
    hw = height * width
    cm = w11_ref.shape[0]
    n_experts = wcc_ref.shape[0]

    def bn(y, g_ref, b_ref, relu):
        # training-mode BatchNorm (biased variance over the full M axis) with
        # the affine folded into a single scale/shift: 2 full-(C, M) VALU
        # passes instead of 4 (no f32 FMA on these VPUs).
        mean = jnp.mean(y, axis=1, keepdims=True)
        var = jnp.mean(jnp.square(y - mean), axis=1, keepdims=True)
        s = lax.rsqrt(var + _EPS) * g_ref[...]
        c = b_ref[...] - mean * s
        out = y * s + c
        return jnp.maximum(out, 0.0) if relu else out

    # ---- bilinear upsample (one lane-dense matmul per sample) + skip add ----
    up = up_ref[...]                                        # (h*w, H*W)
    for b in range(batch):
        x_scr[:, b * hw:(b + 1) * hw] = _mm(x1_ref[b], up) + x2_ref[b]
    x = x_scr[...]                                          # (Cin, M)

    # ---- conv1_1 (1x1) + BN + ReLU ------------------------------------------
    y1 = bn(_mm(w11_ref[...], x), g1_ref, b1_ref, relu=True)    # (Cm, M)

    # ---- CondConv attention, batched over all samples ------------------------
    pooled = _mm(y1, pool_ref[...])                         # (Cm, B) global avg pool
    att = 1.0 / (1.0 + jnp.exp(-_mm(watt_ref[...], pooled)))    # (K, B) sigmoid

    # ---- per-sample 3x3 CondConv --------------------------------------------
    # zero only the two borders of the flat padded buffer; the interior is
    # fully overwritten every sample.
    pad_scr[:, :pad] = jnp.zeros((cm, pad), pad_scr.dtype)
    pad_scr[:, pad + hw:hw + 2 * pad] = jnp.zeros((cm, pad), pad_scr.dtype)
    xmask = xmask_ref[...]                                  # (2, HW): dx=0 / dx=2

    for b in range(batch):
        # expert mixture: K broadcasted FMAs over a tiny (Cm, 9*Cm) tile
        agg = att[0:1, b:b + 1] * wcc_ref[0]
        for k in range(1, n_experts):
            agg = agg + att[k:k + 1, b:b + 1] * wcc_ref[k]  # (Cm, 9*Cm)

        # write the sample once, read nine shifted windows; vertical
        # out-of-range taps hit the zero border, horizontal wrap is removed by
        # the column masks (only needed for dx in {0, 2}).
        pad_scr[:, pad:pad + hw] = y1[:, b * hw:(b + 1) * hw]

        acc = None
        for dx in range(3):                                 # dx-outer: mask reuse
            m = xmask[0:1, :] if dx == 0 else (xmask[1:2, :] if dx == 2 else None)
            for dy in range(3):
                idx = dy * 3 + dx
                s = (dy - 1) * width + (dx - 1)
                tap = pad_scr[:, pad + s:pad + s + hw]      # (Cm, HW)
                if m is not None:
                    tap = tap * m
                contrib = _mm(agg[:, idx * cm:(idx + 1) * cm], tap)
                acc = contrib if acc is None else acc + contrib
        # lane-aligned (hw % 128 == 0 at these sizes) unmasked scratch store
        y2_scr[:, b * hw:(b + 1) * hw] = acc

    y2 = bn(y2_scr[...], g2_ref, b2_ref, relu=True)         # (Cm, M)

    # ---- conv1_2 + BN, conv_res + BN, residual add, final ReLU --------------
    main = bn(_mm(w12_ref[...], y2), g3_ref, b3_ref, relu=False)   # (Cout, M)
    res = bn(_mm(wres_ref[...], x), g4_ref, b4_ref, relu=False)    # (Cout, M)
    out = jnp.maximum(main + res, 0.0)

    # ---- store output directly in its final (B, Cout, HW) layout ------------
    for b in range(batch):
        o_ref[b] = out[:, b * hw:(b + 1) * hw]


# ------------------------------- wrappers ------------------------------------

def _bilinear_matrix(n_in, scale=2):
    """Row operator R (n_out, n_in) of F.interpolate(bilinear, align_corners=True)."""
    n_out = n_in * scale
    r = np.zeros((n_out, n_in), np.float32)
    if n_in == 1:
        r[:, 0] = 1.0
        return r
    for i in range(n_out):
        pos = i * (n_in - 1) / (n_out - 1)
        i0 = int(np.floor(pos))
        i1 = min(i0 + 1, n_in - 1)
        f = pos - i0
        r[i, i0] += 1.0 - f
        r[i, i1] += f
    return r


def init_params(in_ch, out_ch, key, n_experts=4):
    """Parameters in the layouts the kernel expects (1x1 weights as (Cout, Cin))."""
    cm = out_ch // 4
    ks = jax.random.split(key, 5)

    def kaiming(k, shape, fan_in):
        return jax.random.normal(k, shape, jnp.float32) * np.sqrt(2.0 / fan_in)

    return dict(
        w11_t=kaiming(ks[0], (cm, in_ch), in_ch),            # conv1_1
        w12_t=kaiming(ks[1], (out_ch, cm), cm),               # conv1_2
        w_res_t=kaiming(ks[2], (out_ch, in_ch), in_ch),       # conv_res
        w_att_t=kaiming(ks[3], (n_experts, cm), cm),           # attention 1x1 conv
        # CondConv experts: (K, Cout, 9*Cin); last axis ordered (kh, kw, cin)
        w_cc=(jax.random.uniform(ks[4], (n_experts, cm, 9 * cm), jnp.float32,
                                 minval=-1.0, maxval=1.0) * np.sqrt(6.0 / (9 * cm))),
        g1=jnp.ones((cm, 1), jnp.float32), b1=jnp.zeros((cm, 1), jnp.float32),
        g2=jnp.ones((cm, 1), jnp.float32), b2=jnp.zeros((cm, 1), jnp.float32),
        g3=jnp.ones((out_ch, 1), jnp.float32), b3=jnp.zeros((out_ch, 1), jnp.float32),
        g4=jnp.ones((out_ch, 1), jnp.float32), b4=jnp.zeros((out_ch, 1), jnp.float32),
    )


def decoder_forward(x1_nchw, x2_nchw, params):
    B, c_in, h, w = x1_nchw.shape
    _, _, H, W = x2_nchw.shape
    cm = params['w11_t'].shape[0]
    c_out = params['w12_t'].shape[0]
    hw = H * W
    m_total = B * hw
    pad_cols = ((W + 1 + 127) // 128) * 128        # lane-aligned zero border

    # kron'd bilinear operator: (h*w, H*W); one lane-dense matmul per sample
    rh = _bilinear_matrix(h)                        # (H, h)
    rw = _bilinear_matrix(w)                        # (W, w)
    up = jnp.asarray(np.kron(rh, rw).T)             # (h*w, H*W)

    # block-averaging matrix for the batched global average pool: (M, B)
    pool_np = np.zeros((m_total, B), np.float32)
    for b in range(B):
        pool_np[b * hw:(b + 1) * hw, b] = 1.0 / hw
    pool = jnp.asarray(pool_np)

    # horizontal validity masks for the dx=0 / dx=2 taps (dx=1 is all-ones)
    xcol = np.arange(hw, dtype=np.int64) % W
    xmask = jnp.asarray(np.stack([(xcol >= 1).astype(np.float32),
                                  (xcol <= W - 2).astype(np.float32)], axis=0))

    # free reshapes (collapse of trailing dims)
    x1_flat = x1_nchw.reshape(B, c_in, h * w)
    x2_flat = x2_nchw.reshape(B, c_in, hw)

    out = pl.pallas_call(
        functools.partial(decoder_kernel, batch=B, height=H, width=W,
                          pad=pad_cols),
        in_specs=[pl.BlockSpec(memory_space=VMEM) for _ in range(18)],
        out_specs=pl.BlockSpec(memory_space=VMEM),
        out_shape=jax.ShapeDtypeStruct((B, c_out, hw), jnp.float32),
        scratch_shapes=[
            pltpu.VMEM((c_in, m_total), jnp.float32),           # upsampled+skip x
            pltpu.VMEM((cm, m_total), jnp.float32),              # CondConv output
            pltpu.VMEM((cm, hw + 2 * pad_cols), jnp.float32),    # padded image buf
        ],
        # Explicit VMEM budget: above v5e's 16 MiB scoped default, below v7x's
        # 64 MiB physical.  Actual footprint at test sizes is << 1 MiB.
        compiler_params=pltpu.CompilerParams(vmem_limit_bytes=48 * 1024 * 1024),
    )(x1_flat, x2_flat, up, pool, xmask,
      params['w11_t'], params['w_att_t'], params['w_cc'],
      params['w12_t'], params['w_res_t'],
      params['g1'], params['b1'], params['g2'], params['b2'],
      params['g3'], params['b3'], params['g4'], params['b4'])

    return out.reshape(B, c_out, H, W)              # free reshape, no transpose


# ----------------------------- pure-JAX reference ----------------------------

def decoder_reference(x1, x2, params):
    """Plain-JAX reference with identical semantics (for validation)."""
    B, c_in, h, w = x1.shape
    _, _, H, W = x2.shape
    cm = params['w11_t'].shape[0]
    n_experts = params['w_cc'].shape[0]
    hp = lax.Precision.HIGHEST

    rh = jnp.asarray(_bilinear_matrix(h))
    rw = jnp.asarray(_bilinear_matrix(w))
    x = jnp.einsum('Hh,Ww,bchw->bcHW', rh, rw, x1, precision=hp) + x2

    def bn(y, g, b, relu):
        mean = jnp.mean(y, axis=(0, 2, 3), keepdims=True)
        var = jnp.mean(jnp.square(y - mean), axis=(0, 2, 3), keepdims=True)
        out = (y - mean) * lax.rsqrt(var + _EPS)
        out = out * g.reshape(1, -1, 1, 1) + b.reshape(1, -1, 1, 1)
        return jnp.maximum(out, 0.0) if relu else out

    y1 = bn(jnp.einsum('oc,bchw->bohw', params['w11_t'], x, precision=hp),
            params['g1'], params['b1'], True)

    pooled = jnp.mean(y1, axis=(2, 3))                                   # (B, Cm)
    att = 1.0 / (1.0 + jnp.exp(-jnp.einsum('kc,bc->bk', params['w_att_t'],
                                           pooled, precision=hp)))       # (B, K)
    wexp = params['w_cc'].reshape(n_experts, cm, 3, 3, cm)
    aggw = jnp.einsum('bk,kouvc->bouvc', att, wexp, precision=hp)
    y1p = jnp.pad(y1, ((0, 0), (0, 0), (1, 1), (1, 1)))
    conv = jnp.zeros_like(y1)
    for dy in range(3):
        for dx in range(3):
            patch = y1p[:, :, dy:dy + H, dx:dx + W]
            conv = conv + jnp.einsum('boc,bchw->bohw', aggw[:, :, dy, dx, :],
                                     patch, precision=hp)
    y2 = bn(conv, params['g2'], params['b2'], True)
    main = bn(jnp.einsum('oc,bchw->bohw', params['w12_t'], y2, precision=hp),
              params['g3'], params['b3'], False)
    res = bn(jnp.einsum('oc,bchw->bohw', params['w_res_t'], x, precision=hp),
             params['g4'], params['b4'], False)
    return jnp.maximum(main + res, 0.0)


if __name__ == "__main__":
    B, in_ch, out_ch = 2, 16, 32
    H = W = 16  # x2 spatial size; x1 is half of that

    key = jax.random.PRNGKey(0)
    k1, k2, kp = jax.random.split(key, 3)
    x1 = jax.random.normal(k1, (B, in_ch, H // 2, W // 2), jnp.float32)
    x2 = jax.random.normal(k2, (B, in_ch, H, W), jnp.float32)
    params = init_params(in_ch, out_ch, kp)

    out = jax.jit(decoder_forward)(x1, x2, params)
    out = jax.block_until_ready(out)

    assert out.shape == (B, out_ch, H, W), out.shape
    assert bool(jnp.all(jnp.isfinite(out)))
    assert bool(jnp.all(out >= 0.0))  # final ReLU

    ref = decoder_reference(x1, x2, params)
    np.testing.assert_allclose(np.asarray(out), np.asarray(ref),
                               rtol=5e-3, atol=5e-3)
    print("KERNEL_OK")
</pallas_src>

<mosaic_0001>
module attributes {stable_mosaic.version = 11 : i64} {
  func.func @decoder_kernel(%arg0: memref<2x16x64xf32, #tpu.memory_space<vmem>>, %arg1: memref<2x16x256xf32, #tpu.memory_space<vmem>>, %arg2: memref<64x256xf32, #tpu.memory_space<vmem>>, %arg3: memref<512x2xf32, #tpu.memory_space<vmem>>, %arg4: memref<2x256xf32, #tpu.memory_space<vmem>>, %arg5: memref<8x16xf32, #tpu.memory_space<vmem>>, %arg6: memref<4x8xf32, #tpu.memory_space<vmem>>, %arg7: memref<4x8x72xf32, #tpu.memory_space<vmem>>, %arg8: memref<32x8xf32, #tpu.memory_space<vmem>>, %arg9: memref<32x16xf32, #tpu.memory_space<vmem>>, %arg10: memref<8x1xf32, #tpu.memory_space<vmem>>, %arg11: memref<8x1xf32, #tpu.memory_space<vmem>>, %arg12: memref<8x1xf32, #tpu.memory_space<vmem>>, %arg13: memref<8x1xf32, #tpu.memory_space<vmem>>, %arg14: memref<32x1xf32, #tpu.memory_space<vmem>>, %arg15: memref<32x1xf32, #tpu.memory_space<vmem>>, %arg16: memref<32x1xf32, #tpu.memory_space<vmem>>, %arg17: memref<32x1xf32, #tpu.memory_space<vmem>>, %arg18: memref<2x32x256xf32, #tpu.memory_space<vmem>>, %arg19: memref<16x512xf32, #tpu.memory_space<vmem>>, %arg20: memref<8x512xf32, #tpu.memory_space<vmem>>, %arg21: memref<8x512xf32, #tpu.memory_space<vmem>>) attributes {dimension_semantics = [], scalar_prefetch = 0 : i64, scratch_operands = 3 : i64, tpu.core_type = #tpu.core_type<tc>} {
    %c0 = arith.constant 0 : index
    %c0_0 = arith.constant 0 : index
    %0 = vector.load %arg2[%c0, %c0_0] : memref<64x256xf32, #tpu.memory_space<vmem>>, vector<64x256xf32>
    %c0_1 = arith.constant 0 : index
    %c0_2 = arith.constant 0 : index
    %c0_3 = arith.constant 0 : index
    %1 = vector.load %arg0[%c0_1, %c0_2, %c0_3] : memref<2x16x64xf32, #tpu.memory_space<vmem>>, vector<1x16x64xf32>
    %2 = vector.shape_cast %1 : vector<1x16x64xf32> to vector<16x64xf32>
    %cst = arith.constant dense<0.000000e+00> : vector<16x256xf32>
    %3 = tpu.matmul %2, %0, %cst {dimension_numbers = #tpu.dot_dimension_numbers<[1], [0], [0], [1], [0, 0, 1, 1], [], []>} : vector<16x64xf32>, vector<64x256xf32>, vector<16x256xf32> -> vector<16x256xf32>
    %c0_4 = arith.constant 0 : index
    %c0_5 = arith.constant 0 : index
    %c0_6 = arith.constant 0 : index
    %4 = vector.load %arg1[%c0_4, %c0_5, %c0_6] : memref<2x16x256xf32, #tpu.memory_space<vmem>>, vector<1x16x256xf32>
    %5 = vector.shape_cast %4 : vector<1x16x256xf32> to vector<16x256xf32>
    %6 = arith.addf %3, %5 : vector<16x256xf32>
    %c0_7 = arith.constant 0 : index
    %c0_8 = arith.constant 0 : index
    %7 = vector.load %arg19[%c0_7, %c0_8] : memref<16x512xf32, #tpu.memory_space<vmem>>, vector<16x256xf32>
    tpu.vector_store %arg19[%c0_7, %c0_8], %6 {strides = array<i32>} : memref<16x512xf32, #tpu.memory_space<vmem>>, vector<16x256xf32>,
    %c1 = arith.constant 1 : index
    %c0_9 = arith.constant 0 : index
    %c0_10 = arith.constant 0 : index
    %8 = vector.load %arg0[%c1, %c0_9, %c0_10] : memref<2x16x64xf32, #tpu.memory_space<vmem>>, vector<1x16x64xf32>
    %9 = vector.shape_cast %8 : vector<1x16x64xf32> to vector<16x64xf32>
    %cst_11 = arith.constant dense<0.000000e+00> : vector<16x256xf32>
    %10 = tpu.matmul %9, %0, %cst_11 {dimension_numbers = #tpu.dot_dimension_numbers<[1], [0], [0], [1], [0, 0, 1, 1], [], []>} : vector<16x64xf32>, vector<64x256xf32>, vector<16x256xf32> -> vector<16x256xf32>
    %c1_12 = arith.constant 1 : index
    %c0_13 = arith.constant 0 : index
    %c0_14 = arith.constant 0 : index
    %11 = vector.load %arg1[%c1_12, %c0_13, %c0_14] : memref<2x16x256xf32, #tpu.memory_space<vmem>>, vector<1x16x256xf32>
    %12 = vector.shape_cast %11 : vector<1x16x256xf32> to vector<16x256xf32>
    %13 = arith.addf %10, %12 : vector<16x256xf32>
    %c0_15 = arith.constant 0 : index
    %c256 = arith.constant 256 : index
    %14 = vector.load %arg19[%c0_15, %c256] : memref<16x512xf32, #tpu.memory_space<vmem>>, vector<16x256xf32>
    tpu.vector_store %arg19[%c0_15, %c256], %13 {strides = array<i32>} : memref<16x512xf32, #tpu.memory_space<vmem>>, vector<16x256xf32>,
    %c0_16 = arith.constant 0 : index
    %c0_17 = arith.constant 0 : index
    %15 = vector.load %arg19[%c0_16, %c0_17] : memref<16x512xf32, #tpu.memory_space<vmem>>, vector<16x512xf32>
    %c0_18 = arith.constant 0 : index
    %c0_19 = arith.constant 0 : index
    %16 = vector.load %arg5[%c0_18, %c0_19] : memref<8x16xf32, #tpu.memory_space<vmem>>, vector<8x16xf32>
    %cst_20 = arith.constant dense<0.000000e+00> : vector<8x512xf32>
    %17 = tpu.matmul %16, %15, %cst_20 {dimension_numbers = #tpu.dot_dimension_numbers<[1], [0], [0], [1], [0, 0, 1, 1], [], []>} : vector<8x16xf32>, vector<16x512xf32>, vector<8x512xf32> -> vector<8x512xf32>
    %cst_21 = arith.constant dense<0.000000e+00> : vector<8xf32>
    %18 = vector.multi_reduction <add>, %17, %cst_21 [1] : vector<8x512xf32> to vector<8xf32>
    %19 = vector.shape_cast %18 : vector<8xf32> to vector<8x1xf32>
    %cst_22 = arith.constant 5.120000e+02 : f32
    %20 = vector.broadcast %cst_22 : f32 to vector<8x1xf32>
    %21 = arith.divf %19, %20 : vector<8x1xf32>
    %22 = vector.broadcast %21 : vector<8x1xf32> to vector<8x512xf32>
    %23 = arith.subf %17, %22 : vector<8x512xf32>
    %24 = arith.mulf %23, %23 : vector<8x512xf32>
    %cst_23 = arith.constant dense<0.000000e+00> : vector<8xf32>
    %25 = vector.multi_reduction <add>, %24, %cst_23 [1] : vector<8x512xf32> to vector<8xf32>
    %26 = vector.shape_cast %25 : vector<8xf32> to vector<8x1xf32>
    %cst_24 = arith.constant 5.120000e+02 : f32
    %27 = vector.broadcast %cst_24 : f32 to vector<8x1xf32>
    %28 = arith.divf %26, %27 : vector<8x1xf32>
    %cst_25 = arith.constant 9.99999974E-6 : f32
    %29 = vector.broadcast %cst_25 : f32 to vector<8x1xf32>
    %30 = arith.addf %28, %29 : vector<8x1xf32>
    %31 = math.rsqrt %30 : vector<8x1xf32>
    %c0_26 = arith.constant 0 : index
    %c0_27 = arith.constant 0 : index
    %32 = vector.load %arg10[%c0_26, %c0_27] : memref<8x1xf32, #tpu.memory_space<vmem>>, vector<8x1xf32>
    %33 = arith.mulf %31, %32 : vector<8x1xf32>
    %c0_28 = arith.constant 0 : index
    %c0_29 = arith.constant 0 : index
    %34 = vector.load %arg11[%c0_28, %c0_29] : memref<8x1xf32, #tpu.memory_space<vmem>>, vector<8x1xf32>
    %35 = arith.mulf %21, %33 : vector<8x1xf32>
    %36 = arith.subf %34, %35 : vector<8x1xf32>
    %37 = vector.broadcast %33 : vector<8x1xf32> to vector<8x512xf32>
    %38 = arith.mulf %17, %37 : vector<8x512xf32>
    %39 = vector.broadcast %36 : vector<8x1xf32> to vector<8x512xf32>
    %40 = arith.addf %38, %39 : vector<8x512xf32>
    %cst_30 = arith.constant 0.000000e+00 : f32
    %41 = vector.broadcast %cst_30 : f32 to vector<8x512xf32>
    %42 = arith.maximumf %40, %41 : vector<8x512xf32>
    %c0_31 = arith.constant 0 : index
    %c0_32 = arith.constant 0 : index
    %43 = vector.load %arg3[%c0_31, %c0_32] : memref<512x2xf32, #tpu.memory_space<vmem>>, vector<512x2xf32>
    %cst_33 = arith.constant dense<0.000000e+00> : vector<8x2xf32>
    %44 = tpu.matmul %42, %43, %cst_33 {dimension_numbers = #tpu.dot_dimension_numbers<[1], [0], [0], [1], [0, 0, 1, 1], [], []>} : vector<8x512xf32>, vector<512x2xf32>, vector<8x2xf32> -> vector<8x2xf32>
    %c0_34 = arith.constant 0 : index
    %c0_35 = arith.constant 0 : index
    %45 = vector.load %arg6[%c0_34, %c0_35] : memref<4x8xf32, #tpu.memory_space<vmem>>, vector<4x8xf32>
    %cst_36 = arith.constant dense<0.000000e+00> : vector<4x2xf32>
    %46 = tpu.matmul %45, %44, %cst_36 {dimension_numbers = #tpu.dot_dimension_numbers<[1], [0], [0], [1], [0, 0, 1, 1], [], []>} : vector<4x8xf32>, vector<8x2xf32>, vector<4x2xf32> -> vector<4x2xf32>
    %cst_37 = arith.constant 0.000000e+00 : f32
    %47 = vector.broadcast %cst_37 : f32 to vector<4x2xf32>
    %48 = arith.subf %47, %46 : vector<4x2xf32>
    %49 = math.exp %48 : vector<4x2xf32>
    %cst_38 = arith.constant 1.000000e+00 : f32
    %50 = vector.broadcast %cst_38 : f32 to vector<4x2xf32>
    %51 = arith.addf %50, %49 : vector<4x2xf32>
    %cst_39 = arith.constant 1.000000e+00 : f32
    %52 = vector.broadcast %cst_39 : f32 to vector<4x2xf32>
    %53 = arith.divf %52, %51 : vector<4x2xf32>
    %cst_40 = arith.constant 0.000000e+00 : f32
    %54 = vector.broadcast %cst_40 : f32 to vector<8x128xf32>
    %c0_41 = arith.constant 0 : index
    %c0_42 = arith.constant 0 : index
    %55 = vector.load %arg21[%c0_41, %c0_42] : memref<8x512xf32, #tpu.memory_space<vmem>>, vector<8x128xf32>
    tpu.vector_store %arg21[%c0_41, %c0_42], %54 {strides = array<i32>} : memref<8x512xf32, #tpu.memory_space<vmem>>, vector<8x128xf32>,
    %cst_43 = arith.constant 0.000000e+00 : f32
    %56 = vector.broadcast %cst_43 : f32 to vector<8x128xf32>
    %c0_44 = arith.constant 0 : index
    %c384 = arith.constant 384 : index
    %57 = vector.load %arg21[%c0_44, %c384] : memref<8x512xf32, #tpu.memory_space<vmem>>, vector<8x128xf32>
    tpu.vector_store %arg21[%c0_44, %c384], %56 {strides = array<i32>} : memref<8x512xf32, #tpu.memory_space<vmem>>, vector<8x128xf32>,
    %c0_45 = arith.constant 0 : index
    %c0_46 = arith.constant 0 : index
    %58 = vector.load %arg4[%c0_45, %c0_46] : memref<2x256xf32, #tpu.memory_space<vmem>>, vector<2x256xf32>
    %59 = vector.extract_strided_slice %53 {offsets = [0, 0], sizes = [1, 1], strides = [1, 1]} : vector<4x2xf32> to vector<1x1xf32>
    %c0_47 = arith.constant 0 : index
    %c0_48 = arith.constant 0 : index
    %c0_49 = arith.constant 0 : index
    %60 = vector.load %arg7[%c0_47, %c0_48, %c0_49] : memref<4x8x72xf32, #tpu.memory_space<vmem>>, vector<1x8x72xf32>
    %61 = vector.shape_cast %60 : vector<1x8x72xf32> to vector<8x72xf32>
    %62 = vector.broadcast %59 : vector<1x1xf32> to vector<8x72xf32>
    %63 = arith.mulf %62, %61 : vector<8x72xf32>
    %64 = vector.extract_strided_slice %53 {offsets = [1, 0], sizes = [1, 1], strides = [1, 1]} : vector<4x2xf32> to vector<1x1xf32>
    %c1_50 = arith.constant 1 : index
    %c0_51 = arith.constant 0 : index
    %c0_52 = arith.constant 0 : index
    %65 = vector.load %arg7[%c1_50, %c0_51, %c0_52] : memref<4x8x72xf32, #tpu.memory_space<vmem>>, vector<1x8x72xf32>
    %66 = vector.shape_cast %65 : vector<1x8x72xf32> to vector<8x72xf32>
    %67 = vector.broadcast %64 : vector<1x1xf32> to vector<8x72xf32>
    %68 = arith.mulf %67, %66 : vector<8x72xf32>
    %69 = arith.addf %63, %68 : vector<8x72xf32>
    %70 = vector.extract_strided_slice %53 {offsets = [2, 0], sizes = [1, 1], strides = [1, 1]} : vector<4x2xf32> to vector<1x1xf32>
    %c2 = arith.constant 2 : index
    %c0_53 = arith.constant 0 : index
    %c0_54 = arith.constant 0 : index
    %71 = vector.load %arg7[%c2, %c0_53, %c0_54] : memref<4x8x72xf32, #tpu.memory_space<vmem>>, vector<1x8x72xf32>
    %72 = vector.shape_cast %71 : vector<1x8x72xf32> to vector<8x72xf32>
    %73 = vector.broadcast %70 : vector<1x1xf32> to vector<8x72xf32>
    %74 = arith.mulf %73, %72 : vector<8x72xf32>
    %75 = arith.addf %69, %74 : vector<8x72xf32>
    %76 = vector.extract_strided_slice %53 {offsets = [3, 0], sizes = [1, 1], strides = [1, 1]} : vector<4x2xf32> to vector<1x1xf32>
    %c3 = arith.constant 3 : index
    %c0_55 = arith.constant 0 : index
    %c0_56 = arith.constant 0 : index
    %77 = vector.load %arg7[%c3, %c0_55, %c0_56] : memref<4x8x72xf32, #tpu.memory_space<vmem>>, vector<1x8x72xf32>
    %78 = vector.shape_cast %77 : vector<1x8x72xf32> to vector<8x72xf32>
    %79 = vector.broadcast %76 : vector<1x1xf32> to vector<8x72xf32>
    %80 = arith.mulf %79, %78 : vector<8x72xf32>
    %81 = arith.addf %75, %80 : vector<8x72xf32>
    %82 = vector.extract_strided_slice %42 {offsets = [0, 0], sizes = [8, 256], strides = [1, 1]} : vector<8x512xf32> to vector<8x256xf32>
    %c0_57 = arith.constant 0 : index
    %c128 = arith.constant 128 : index
    %83 = vector.load %arg21[%c0_57, %c128] : memref<8x512xf32, #tpu.memory_space<vmem>>, vector<8x256xf32>
    tpu.vector_store %arg21[%c0_57, %c128], %82 {strides = array<i32>} : memref<8x512xf32, #tpu.memory_space<vmem>>, vector<8x256xf32>,
    %84 = vector.extract_strided_slice %58 {offsets = [0, 0], sizes = [1, 256], strides = [1, 1]} : vector<2x256xf32> to vector<1x256xf32>
    %c0_58 = arith.constant 0 : index
    %c111 = arith.constant 111 : index
    %85 = vector.load %arg21[%c0_58, %c111] : memref<8x512xf32, #tpu.memory_space<vmem>>, vector<8x256xf32>
    %86 = vector.broadcast %84 : vector<1x256xf32> to vector<8x256xf32>
    %87 = arith.mulf %85, %86 : vector<8x256xf32>
    %88 = vector.extract_strided_slice %81 {offsets = [0, 0], sizes = [8, 8], strides = [1, 1]} : vector<8x72xf32> to vector<8x8xf32>
    %cst_59 = arith.constant dense<0.000000e+00> : vector<8x256xf32>
    %89 = tpu.matmul %88, %87, %cst_59 {dimension_numbers = #tpu.dot_dimension_numbers<[1], [0], [0], [1], [0, 0, 1, 1], [], []>} : vector<8x8xf32>, vector<8x256xf32>, vector<8x256xf32> -> vector<8x256xf32>
    %c0_60 = arith.constant 0 : index
    %c127 = arith.constant 127 : index
    %90 = vector.load %arg21[%c0_60, %c127] : memref<8x512xf32, #tpu.memory_space<vmem>>, vector<8x256xf32>
    %91 = vector.broadcast %84 : vector<1x256xf32> to vector<8x256xf32>
    %92 = arith.mulf %90, %91 : vector<8x256xf32>
    %93 = vector.extract_strided_slice %81 {offsets = [0, 24], sizes = [8, 8], strides = [1, 1]} : vector<8x72xf32> to vector<8x8xf32>
    %cst_61 = arith.constant dense<0.000000e+00> : vector<8x256xf32>
    %94 = tpu.matmul %93, %92, %cst_61 {dimension_numbers = #tpu.dot_dimension_numbers<[1], [0], [0], [1], [0, 0, 1, 1], [], []>} : vector<8x8xf32>, vector<8x256xf32>, vector<8x256xf32> -> vector<8x256xf32>
    %95 = arith.addf %89, %94 : vector<8x256xf32>
    %c0_62 = arith.constant 0 : index
    %c143 = arith.constant 143 : index
    %96 = vector.load %arg21[%c0_62, %c143] : memref<8x512xf32, #tpu.memory_space<vmem>>, vector<8x256xf32>
    %97 = vector.broadcast %84 : vector<1x256xf32> to vector<8x256xf32>
    %98 = arith.mulf %96, %97 : vector<8x256xf32>
    %99 = vector.extract_strided_slice %81 {offsets = [0, 48], sizes = [8, 8], strides = [1, 1]} : vector<8x72xf32> to vector<8x8xf32>
    %cst_63 = arith.constant dense<0.000000e+00> : vector<8x256xf32>
    %100 = tpu.matmul %99, %98, %cst_63 {dimension_numbers = #tpu.dot_dimension_numbers<[1], [0], [0], [1], [0, 0, 1, 1], [], []>} : vector<8x8xf32>, vector<8x256xf32>, vector<8x256xf32> -> vector<8x256xf32>
    %101 = arith.addf %95, %100 : vector<8x256xf32>
    %c0_64 = arith.constant 0 : index
    %c112 = arith.constant 112 : index
    %102 = vector.load %arg21[%c0_64, %c112] : memref<8x512xf32, #tpu.memory_space<vmem>>, vector<8x256xf32>
    %103 = vector.extract_strided_slice %81 {offsets = [0, 8], sizes = [8, 8], strides = [1, 1]} : vector<8x72xf32> to vector<8x8xf32>
    %cst_65 = arith.constant dense<0.000000e+00> : vector<8x256xf32>
    %104 = tpu.matmul %103, %102, %cst_65 {dimension_numbers = #tpu.dot_dimension_numbers<[1], [0], [0], [1], [0, 0, 1, 1], [], []>} : vector<8x8xf32>, vector<8x256xf32>, vector<8x256xf32> -> vector<8x256xf32>
    %105 = arith.addf %101, %104 : vector<8x256xf32>
    %c0_66 = arith.constant 0 : index
    %c128_67 = arith.constant 128 : index
    %106 = vector.load %arg21[%c0_66, %c128_67] : memref<8x512xf32, #tpu.memory_space<vmem>>, vector<8x256xf32>
    %107 = vector.extract_strided_slice %81 {offsets = [0, 32], sizes = [8, 8], strides = [1, 1]} : vector<8x72xf32> to vector<8x8xf32>
    %cst_68 = arith.constant dense<0.000000e+00> : vector<8x256xf32>
    %108 = tpu.matmul %107, %106, %cst_68 {dimension_numbers = #tpu.dot_dimension_numbers<[1], [0], [0], [1], [0, 0, 1, 1], [], []>} : vector<8x8xf32>, vector<8x256xf32>, vector<8x256xf32> -> vector<8x256xf32>
    %109 = arith.addf %105, %108 : vector<8x256xf32>
    %c0_69 = arith.constant 0 : index
    %c144 = arith.constant 144 : index
    %110 = vector.load %arg21[%c0_69, %c144] : memref<8x512xf32, #tpu.memory_space<vmem>>, vector<8x256xf32>
    %111 = vector.extract_strided_slice %81 {offsets = [0, 56], sizes = [8, 8], strides = [1, 1]} : vector<8x72xf32> to vector<8x8xf32>
    %cst_70 = arith.constant dense<0.000000e+00> : vector<8x256xf32>
    %112 = tpu.matmul %111, %110, %cst_70 {dimension_numbers = #tpu.dot_dimension_numbers<[1], [0], [0], [1], [0, 0, 1, 1], [], []>} : vector<8x8xf32>, vector<8x256xf32>, vector<8x256xf32> -> vector<8x256xf32>
    %113 = arith.addf %109, %112 : vector<8x256xf32>
    %114 = vector.extract_strided_slice %58 {offsets = [1, 0], sizes = [1, 256], strides = [1, 1]} : vector<2x256xf32> to vector<1x256xf32>
    %c0_71 = arith.constant 0 : index
    %c113 = arith.constant 113 : index
    %115 = vector.load %arg21[%c0_71, %c113] : memref<8x512xf32, #tpu.memory_space<vmem>>, vector<8x256xf32>
    %116 = vector.broadcast %114 : vector<1x256xf32> to vector<8x256xf32>
    %117 = arith.mulf %115, %116 : vector<8x256xf32>
    %118 = vector.extract_strided_slice %81 {offsets = [0, 16], sizes = [8, 8], strides = [1, 1]} : vector<8x72xf32> to vector<8x8xf32>
    %cst_72 = arith.constant dense<0.000000e+00> : vector<8x256xf32>
    %119 = tpu.matmul %118, %117, %cst_72 {dimension_numbers = #tpu.dot_dimension_numbers<[1], [0], [0], [1], [0, 0, 1, 1], [], []>} : vector<8x8xf32>, vector<8x256xf32>, vector<8x256xf32> -> vector<8x256xf32>
    %120 = arith.addf %113, %119 : vector<8x256xf32>
    %c0_73 = arith.constant 0 : index
    %c129 = arith.constant 129 : index
    %121 = vector.load %arg21[%c0_73, %c129] : memref<8x512xf32, #tpu.memory_space<vmem>>, vector<8x256xf32>
    %122 = vector.broadcast %114 : vector<1x256xf32> to vector<8x256xf32>
    %123 = arith.mulf %121, %122 : vector<8x256xf32>
    %124 = vector.extract_strided_slice %81 {offsets = [0, 40], sizes = [8, 8], strides = [1, 1]} : vector<8x72xf32> to vector<8x8xf32>
    %cst_74 = arith.constant dense<0.000000e+00> : vector<8x256xf32>
    %125 = tpu.matmul %124, %123, %cst_74 {dimension_numbers = #tpu.dot_dimension_numbers<[1], [0], [0], [1], [0, 0, 1, 1], [], []>} : vector<8x8xf32>, vector<8x256xf32>, vector<8x256xf32> -> vector<8x256xf32>
    %126 = arith.addf %120, %125 : vector<8x256xf32>
    %c0_75 = arith.constant 0 : index
    %c145 = arith.constant 145 : index
    %127 = vector.load %arg21[%c0_75, %c145] : memref<8x512xf32, #tpu.memory_space<vmem>>, vector<8x256xf32>
    %128 = vector.broadcast %114 : vector<1x256xf32> to vector<8x256xf32>
    %129 = arith.mulf %127, %128 : vector<8x256xf32>
    %130 = vector.extract_strided_slice %81 {offsets = [0, 64], sizes = [8, 8], strides = [1, 1]} : vector<8x72xf32> to vector<8x8xf32>
    %cst_76 = arith.constant dense<0.000000e+00> : vector<8x256xf32>
    %131 = tpu.matmul %130, %129, %cst_76 {dimension_numbers = #tpu.dot_dimension_numbers<[1], [0], [0], [1], [0, 0, 1, 1], [], []>} : vector<8x8xf32>, vector<8x256xf32>, vector<8x256xf32> -> vector<8x256xf32>
    %132 = arith.addf %126, %131 : vector<8x256xf32>
    %c0_77 = arith.constant 0 : index
    %c0_78 = arith.constant 0 : index
    %133 = vector.load %arg20[%c0_77, %c0_78] : memref<8x512xf32, #tpu.memory_space<vmem>>, vector<8x256xf32>
    tpu.vector_store %arg20[%c0_77, %c0_78], %132 {strides = array<i32>} : memref<8x512xf32, #tpu.memory_space<vmem>>, vector<8x256xf32>,
    %134 = vector.extract_strided_slice %53 {offsets = [0, 1], sizes = [1, 1], strides = [1, 1]} : vector<4x2xf32> to vector<1x1xf32>
    %c0_79 = arith.constant 0 : index
    %c0_80 = arith.constant 0 : index
    %c0_81 = arith.constant 0 : index
    %135 = vector.load %arg7[%c0_79, %c0_80, %c0_81] : memref<4x8x72xf32, #tpu.memory_space<vmem>>, vector<1x8x72xf32>
    %136 = vector.shape_cast %135 : vector<1x8x72xf32> to vector<8x72xf32>
    %137 = vector.broadcast %134 : vector<1x1xf32> to vector<8x72xf32>
    %138 = arith.mulf %137, %136 : vector<8x72xf32>
    %139 = vector.extract_strided_slice %53 {offsets = [1, 1], sizes = [1, 1], strides = [1, 1]} : vector<4x2xf32> to vector<1x1xf32>
    %c1_82 = arith.constant 1 : index
    %c0_83 = arith.constant 0 : index
    %c0_84 = arith.constant 0 : index
    %140 = vector.load %arg7[%c1_82, %c0_83, %c0_84] : memref<4x8x72xf32, #tpu.memory_space<vmem>>, vector<1x8x72xf32>
    %141 = vector.shape_cast %140 : vector<1x8x72xf32> to vector<8x72xf32>
    %142 = vector.broadcast %139 : vector<1x1xf32> to vector<8x72xf32>
    %143 = arith.mulf %142, %141 : vector<8x72xf32>
    %144 = arith.addf %138, %143 : vector<8x72xf32>
    %145 = vector.extract_strided_slice %53 {offsets = [2, 1], sizes = [1, 1], strides = [1, 1]} : vector<4x2xf32> to vector<1x1xf32>
    %c2_85 = arith.constant 2 : index
    %c0_86 = arith.constant 0 : index
    %c0_87 = arith.constant 0 : index
    %146 = vector.load %arg7[%c2_85, %c0_86, %c0_87] : memref<4x8x72xf32, #tpu.memory_space<vmem>>, vector<1x8x72xf32>
    %147 = vector.shape_cast %146 : vector<1x8x72xf32> to vector<8x72xf32>
    %148 = vector.broadcast %145 : vector<1x1xf32> to vector<8x72xf32>
    %149 = arith.mulf %148, %147 : vector<8x72xf32>
    %150 = arith.addf %144, %149 : vector<8x72xf32>
    %151 = vector.extract_strided_slice %53 {offsets = [3, 1], sizes = [1, 1], strides = [1, 1]} : vector<4x2xf32> to vector<1x1xf32>
    %c3_88 = arith.constant 3 : index
    %c0_89 = arith.constant 0 : index
    %c0_90 = arith.constant 0 : index
    %152 = vector.load %arg7[%c3_88, %c0_89, %c0_90] : memref<4x8x72xf32, #tpu.memory_space<vmem>>, vector<1x8x72xf32>
    %153 = vector.shape_cast %152 : vector<1x8x72xf32> to vector<8x72xf32>
    %154 = vector.broadcast %151 : vector<1x1xf32> to vector<8x72xf32>
    %155 = arith.mulf %154, %153 : vector<8x72xf32>
    %156 = arith.addf %150, %155 : vector<8x72xf32>
    %157 = vector.extract_strided_slice %42 {offsets = [0, 256], sizes = [8, 256], strides = [1, 1]} : vector<8x512xf32> to vector<8x256xf32>
    %c0_91 = arith.constant 0 : index
    %c128_92 = arith.constant 128 : index
    %158 = vector.load %arg21[%c0_91, %c128_92] : memref<8x512xf32, #tpu.memory_space<vmem>>, vector<8x256xf32>
    tpu.vector_store %arg21[%c0_91, %c128_92], %157 {strides = array<i32>} : memref<8x512xf32, #tpu.memory_space<vmem>>, vector<8x256xf32>,
    %159 = vector.extract_strided_slice %58 {offsets = [0, 0], sizes = [1, 256], strides = [1, 1]} : vector<2x256xf32> to vector<1x256xf32>
    %c0_93 = arith.constant 0 : index
    %c111_94 = arith.constant 111 : index
    %160 = vector.load %arg21[%c0_93, %c111_94] : memref<8x512xf32, #tpu.memory_space<vmem>>, vector<8x256xf32>
    %161 = vector.broadcast %159 : vector<1x256xf32> to vector<8x256xf32>
    %162 = arith.mulf %160, %161 : vector<8x256xf32>
    %163 = vector.extract_strided_slice %156 {offsets = [0, 0], sizes = [8, 8], strides = [1, 1]} : vector<8x72xf32> to vector<8x8xf32>
    %cst_95 = arith.constant dense<0.000000e+00> : vector<8x256xf32>
    %164 = tpu.matmul %163, %162, %cst_95 {dimension_numbers = #tpu.dot_dimension_numbers<[1], [0], [0], [1], [0, 0, 1, 1], [], []>} : vector<8x8xf32>, vector<8x256xf32>, vector<8x256xf32> -> vector<8x256xf32>
    %c0_96 = arith.constant 0 : index
    %c127_97 = arith.constant 127 : index
    %165 = vector.load %arg21[%c0_96, %c127_97] : memref<8x512xf32, #tpu.memory_space<vmem>>, vector<8x256xf32>
    %166 = vector.broadcast %159 : vector<1x256xf32> to vector<8x256xf32>
    %167 = arith.mulf %165, %166 : vector<8x256xf32>
    %168 = vector.extract_strided_slice %156 {offsets = [0, 24], sizes = [8, 8], strides = [1, 1]} : vector<8x72xf32> to vector<8x8xf32>
    %cst_98 = arith.constant dense<0.000000e+00> : vector<8x256xf32>
    %169 = tpu.matmul %168, %167, %cst_98 {dimension_numbers = #tpu.dot_dimension_numbers<[1], [0], [0], [1], [0, 0, 1, 1], [], []>} : vector<8x8xf32>, vector<8x256xf32>, vector<8x256xf32> -> vector<8x256xf32>
    %170 = arith.addf %164, %169 : vector<8x256xf32>
    %c0_99 = arith.constant 0 : index
    %c143_100 = arith.constant 143 : index
    %171 = vector.load %arg21[%c0_99, %c143_100] : memref<8x512xf32, #tpu.memory_space<vmem>>, vector<8x256xf32>
    %172 = vector.broadcast %159 : vector<1x256xf32> to vector<8x256xf32>
    %173 = arith.mulf %171, %172 : vector<8x256xf32>
    %174 = vector.extract_strided_slice %156 {offsets = [0, 48], sizes = [8, 8], strides = [1, 1]} : vector<8x72xf32> to vector<8x8xf32>
    %cst_101 = arith.constant dense<0.000000e+00> : vector<8x256xf32>
    %175 = tpu.matmul %174, %173, %cst_101 {dimension_numbers = #tpu.dot_dimension_numbers<[1], [0], [0], [1], [0, 0, 1, 1], [], []>} : vector<8x8xf32>, vector<8x256xf32>, vector<8x256xf32> -> vector<8x256xf32>
    %176 = arith.addf %170, %175 : vector<8x256xf32>
    %c0_102 = arith.constant 0 : index
    %c112_103 = arith.constant 112 : index
    %177 = vector.load %arg21[%c0_102, %c112_103] : memref<8x512xf32, #tpu.memory_space<vmem>>, vector<8x256xf32>
    %178 = vector.extract_strided_slice %156 {offsets = [0, 8], sizes = [8, 8], strides = [1, 1]} : vector<8x72xf32> to vector<8x8xf32>
    %cst_104 = arith.constant dense<0.000000e+00> : vector<8x256xf32>
    %179 = tpu.matmul %178, %177, %cst_104 {dimension_numbers = #tpu.dot_dimension_numbers<[1], [0], [0], [1], [0, 0, 1, 1], [], []>} : vector<8x8xf32>, vector<8x256xf32>, vector<8x256xf32> -> vector<8x256xf32>
    %180 = arith.addf %176, %179 : vector<8x256xf32>
    %c0_105 = arith.constant 0 : index
    %c128_106 = arith.constant 128 : index
    %181 = vector.load %arg21[%c0_105, %c128_106] : memref<8x512xf32, #tpu.memory_space<vmem>>, vector<8x256xf32>
    %182 = vector.extract_strided_slice %156 {offsets = [0, 32], sizes = [8, 8], strides = [1, 1]} : vector<8x72xf32> to vector<8x8xf32>
    %cst_107 = arith.constant dense<0.000000e+00> : vector<8x256xf32>
    %183 = tpu.matmul %182, %181, %cst_107 {dimension_numbers = #tpu.dot_dimension_numbers<[1], [0], [0], [1], [0, 0, 1, 1], [], []>} : vector<8x8xf32>, vector<8x256xf32>, vector<8x256xf32> -> vector<8x256xf32>
    %184 = arith.addf %180, %183 : vector<8x256xf32>
    %c0_108 = arith.constant 0 : index
    %c144_109 = arith.constant 144 : index
    %185 = vector.load %arg21[%c0_108, %c144_109] : memref<8x512xf32, #tpu.memory_space<vmem>>, vector<8x256xf32>
    %186 = vector.extract_strided_slice %156 {offsets = [0, 56], sizes = [8, 8], strides = [1, 1]} : vector<8x72xf32> to vector<8x8xf32>
    %cst_110 = arith.constant dense<0.000000e+00> : vector<8x256xf32>
    %187 = tpu.matmul %186, %185, %cst_110 {dimension_numbers = #tpu.dot_dimension_numbers<[1], [0], [0], [1], [0, 0, 1, 1], [], []>} : vector<8x8xf32>, vector<8x256xf32>, vector<8x256xf32> -> vector<8x256xf32>
    %188 = arith.addf %184, %187 : vector<8x256xf32>
    %189 = vector.extract_strided_slice %58 {offsets = [1, 0], sizes = [1, 256], strides = [1, 1]} : vector<2x256xf32> to vector<1x256xf32>
    %c0_111 = arith.constant 0 : index
    %c113_112 = arith.constant 113 : index
    %190 = vector.load %arg21[%c0_111, %c113_112] : memref<8x512xf32, #tpu.memory_space<vmem>>, vector<8x256xf32>
    %191 = vector.broadcast %189 : vector<1x256xf32> to vector<8x256xf32>
    %192 = arith.mulf %190, %191 : vector<8x256xf32>
    %193 = vector.extract_strided_slice %156 {offsets = [0, 16], sizes = [8, 8], strides = [1, 1]} : vector<8x72xf32> to vector<8x8xf32>
    %cst_113 = arith.constant dense<0.000000e+00> : vector<8x256xf32>
    %194 = tpu.matmul %193, %192, %cst_113 {dimension_numbers = #tpu.dot_dimension_numbers<[1], [0], [0], [1], [0, 0, 1, 1], [], []>} : vector<8x8xf32>, vector<8x256xf32>, vector<8x256xf32> -> vector<8x256xf32>
    %195 = arith.addf %188, %194 : vector<8x256xf32>
    %c0_114 = arith.constant 0 : index
    %c129_115 = arith.constant 129 : index
    %196 = vector.load %arg21[%c0_114, %c129_115] : memref<8x512xf32, #tpu.memory_space<vmem>>, vector<8x256xf32>
    %197 = vector.broadcast %189 : vector<1x256xf32> to vector<8x256xf32>
    %198 = arith.mulf %196, %197 : vector<8x256xf32>
    %199 = vector.extract_strided_slice %156 {offsets = [0, 40], sizes = [8, 8], strides = [1, 1]} : vector<8x72xf32> to vector<8x8xf32>
    %cst_116 = arith.constant dense<0.000000e+00> : vector<8x256xf32>
    %200 = tpu.matmul %199, %198, %cst_116 {dimension_numbers = #tpu.dot_dimension_numbers<[1], [0], [0], [1], [0, 0, 1, 1], [], []>} : vector<8x8xf32>, vector<8x256xf32>, vector<8x256xf32> -> vector<8x256xf32>
    %201 = arith.addf %195, %200 : vector<8x256xf32>
    %c0_117 = arith.constant 0 : index
    %c145_118 = arith.constant 145 : index
    %202 = vector.load %arg21[%c0_117, %c145_118] : memref<8x512xf32, #tpu.memory_space<vmem>>, vector<8x256xf32>
    %203 = vector.broadcast %189 : vector<1x256xf32> to vector<8x256xf32>
    %204 = arith.mulf %202, %203 : vector<8x256xf32>
    %205 = vector.extract_strided_slice %156 {offsets = [0, 64], sizes = [8, 8], strides = [1, 1]} : vector<8x72xf32> to vector<8x8xf32>
    %cst_119 = arith.constant dense<0.000000e+00> : vector<8x256xf32>
    %206 = tpu.matmul %205, %204, %cst_119 {dimension_numbers = #tpu.dot_dimension_numbers<[1], [0], [0], [1], [0, 0, 1, 1], [], []>} : vector<8x8xf32>, vector<8x256xf32>, vector<8x256xf32> -> vector<8x256xf32>
    %207 = arith.addf %201, %206 : vector<8x256xf32>
    %c0_120 = arith.constant 0 : index
    %c256_121 = arith.constant 256 : index
    %208 = vector.load %arg20[%c0_120, %c256_121] : memref<8x512xf32, #tpu.memory_space<vmem>>, vector<8x256xf32>
    tpu.vector_store %arg20[%c0_120, %c256_121], %207 {strides = array<i32>} : memref<8x512xf32, #tpu.memory_space<vmem>>, vector<8x256xf32>,
    %c0_122 = arith.constant 0 : index
    %c0_123 = arith.constant 0 : index
    %209 = vector.load %arg20[%c0_122, %c0_123] : memref<8x512xf32, #tpu.memory_space<vmem>>, vector<8x512xf32>
    %cst_124 = arith.constant dense<0.000000e+00> : vector<8xf32>
    %210 = vector.multi_reduction <add>, %209, %cst_124 [1] : vector<8x512xf32> to vector<8xf32>
    %211 = vector.shape_cast %210 : vector<8xf32> to vector<8x1xf32>
    %cst_125 = arith.constant 5.120000e+02 : f32
    %212 = vector.broadcast %cst_125 : f32 to vector<8x1xf32>
    %213 = arith.divf %211, %212 : vector<8x1xf32>
    %214 = vector.broadcast %213 : vector<8x1xf32> to vector<8x512xf32>
    %215 = arith.subf %209, %214 : vector<8x512xf32>
    %216 = arith.mulf %215, %215 : vector<8x512xf32>
    %cst_126 = arith.constant dense<0.000000e+00> : vector<8xf32>
    %217 = vector.multi_reduction <add>, %216, %cst_126 [1] : vector<8x512xf32> to vector<8xf32>
    %218 = vector.shape_cast %217 : vector<8xf32> to vector<8x1xf32>
    %cst_127 = arith.constant 5.120000e+02 : f32
    %219 = vector.broadcast %cst_127 : f32 to vector<8x1xf32>
    %220 = arith.divf %218, %219 : vector<8x1xf32>
    %cst_128 = arith.constant 9.99999974E-6 : f32
    %221 = vector.broadcast %cst_128 : f32 to vector<8x1xf32>
    %222 = arith.addf %220, %221 : vector<8x1xf32>
    %223 = math.rsqrt %222 : vector<8x1xf32>
    %c0_129 = arith.constant 0 : index
    %c0_130 = arith.constant 0 : index
    %224 = vector.load %arg12[%c0_129, %c0_130] : memref<8x1xf32, #tpu.memory_space<vmem>>, vector<8x1xf32>
    %225 = arith.mulf %223, %224 : vector<8x1xf32>
    %c0_131 = arith.constant 0 : index
    %c0_132 = arith.constant 0 : index
    %226 = vector.load %arg13[%c0_131, %c0_132] : memref<8x1xf32, #tpu.memory_space<vmem>>, vector<8x1xf32>
    %227 = arith.mulf %213, %225 : vector<8x1xf32>
    %228 = arith.subf %226, %227 : vector<8x1xf32>
    %229 = vector.broadcast %225 : vector<8x1xf32> to vector<8x512xf32>
    %230 = arith.mulf %209, %229 : vector<8x512xf32>
    %231 = vector.broadcast %228 : vector<8x1xf32> to vector<8x512xf32>
    %232 = arith.addf %230, %231 : vector<8x512xf32>
    %cst_133 = arith.constant 0.000000e+00 : f32
    %233 = vector.broadcast %cst_133 : f32 to vector<8x512xf32>
    %234 = arith.maximumf %232, %233 : vector<8x512xf32>
    %c0_134 = arith.constant 0 : index
    %c0_135 = arith.constant 0 : index
    %235 = vector.load %arg8[%c0_134, %c0_135] : memref<32x8xf32, #tpu.memory_space<vmem>>, vector<32x8xf32>
    %cst_136 = arith.constant dense<0.000000e+00> : vector<32x512xf32>
    %236 = tpu.matmul %235, %234, %cst_136 {dimension_numbers = #tpu.dot_dimension_numbers<[1], [0], [0], [1], [0, 0, 1, 1], [], []>} : vector<32x8xf32>, vector<8x512xf32>, vector<32x512xf32> -> vector<32x512xf32>
    %cst_137 = arith.constant dense<0.000000e+00> : vector<32xf32>
    %237 = vector.multi_reduction <add>, %236, %cst_137 [1] : vector<32x512xf32> to vector<32xf32>
    %238 = vector.shape_cast %237 : vector<32xf32> to vector<32x1xf32>
    %cst_138 = arith.constant 5.120000e+02 : f32
    %239 = vector.broadcast %cst_138 : f32 to vector<32x1xf32>
    %240 = arith.divf %238, %239 : vector<32x1xf32>
    %241 = vector.broadcast %240 : vector<32x1xf32> to vector<32x512xf32>
    %242 = arith.subf %236, %241 : vector<32x512xf32>
    %243 = arith.mulf %242, %242 : vector<32x512xf32>
    %cst_139 = arith.constant dense<0.000000e+00> : vector<32xf32>
    %244 = vector.multi_reduction <add>, %243, %cst_139 [1] : vector<32x512xf32> to vector<32xf32>
    %245 = vector.shape_cast %244 : vector<32xf32> to vector<32x1xf32>
    %cst_140 = arith.constant 5.120000e+02 : f32
    %246 = vector.broadcast %cst_140 : f32 to vector<32x1xf32>
    %247 = arith.divf %245, %246 : vector<32x1xf32>
    %cst_141 = arith.constant 9.99999974E-6 : f32
    %248 = vector.broadcast %cst_141 : f32 to vector<32x1xf32>
    %249 = arith.addf %247, %248 : vector<32x1xf32>
    %250 = math.rsqrt %249 : vector<32x1xf32>
    %c0_142 = arith.constant 0 : index
    %c0_143 = arith.constant 0 : index
    %251 = vector.load %arg14[%c0_142, %c0_143] : memref<32x1xf32, #tpu.memory_space<vmem>>, vector<32x1xf32>
    %252 = arith.mulf %250, %251 : vector<32x1xf32>
    %c0_144 = arith.constant 0 : index
    %c0_145 = arith.constant 0 : index
    %253 = vector.load %arg15[%c0_144, %c0_145] : memref<32x1xf32, #tpu.memory_space<vmem>>, vector<32x1xf32>
    %254 = arith.mulf %240, %252 : vector<32x1xf32>
    %255 = arith.subf %253, %254 : vector<32x1xf32>
    %256 = vector.broadcast %252 : vector<32x1xf32> to vector<32x512xf32>
    %257 = arith.mulf %236, %256 : vector<32x512xf32>
    %258 = vector.broadcast %255 : vector<32x1xf32> to vector<32x512xf32>
    %259 = arith.addf %257, %258 : vector<32x512xf32>
    %c0_146 = arith.constant 0 : index
    %c0_147 = arith.constant 0 : index
    %260 = vector.load %arg9[%c0_146, %c0_147] : memref<32x16xf32, #tpu.memory_space<vmem>>, vector<32x16xf32>
    %cst_148 = arith.constant dense<0.000000e+00> : vector<32x512xf32>
    %261 = tpu.matmul %260, %15, %cst_148 {dimension_numbers = #tpu.dot_dimension_numbers<[1], [0], [0], [1], [0, 0, 1, 1], [], []>} : vector<32x16xf32>, vector<16x512xf32>, vector<32x512xf32> -> vector<32x512xf32>
    %cst_149 = arith.constant dense<0.000000e+00> : vector<32xf32>
    %262 = vector.multi_reduction <add>, %261, %cst_149 [1] : vector<32x512xf32> to vector<32xf32>
    %263 = vector.shape_cast %262 : vector<32xf32> to vector<32x1xf32>
    %cst_150 = arith.constant 5.120000e+02 : f32
    %264 = vector.broadcast %cst_150 : f32 to vector<32x1xf32>
    %265 = arith.divf %263, %264 : vector<32x1xf32>
    %266 = vector.broadcast %265 : vector<32x1xf32> to vector<32x512xf32>
    %267 = arith.subf %261, %266 : vector<32x512xf32>
    %268 = arith.mulf %267, %267 : vector<32x512xf32>
    %cst_151 = arith.constant dense<0.000000e+00> : vector<32xf32>
    %269 = vector.multi_reduction <add>, %268, %cst_151 [1] : vector<32x512xf32> to vector<32xf32>
    %270 = vector.shape_cast %269 : vector<32xf32> to vector<32x1xf32>
    %cst_152 = arith.constant 5.120000e+02 : f32
    %271 = vector.broadcast %cst_152 : f32 to vector<32x1xf32>
    %272 = arith.divf %270, %271 : vector<32x1xf32>
    %cst_153 = arith.constant 9.99999974E-6 : f32
    %273 = vector.broadcast %cst_153 : f32 to vector<32x1xf32>
    %274 = arith.addf %272, %273 : vector<32x1xf32>
    %275 = math.rsqrt %274 : vector<32x1xf32>
    %c0_154 = arith.constant 0 : index
    %c0_155 = arith.constant 0 : index
    %276 = vector.load %arg16[%c0_154, %c0_155] : memref<32x1xf32, #tpu.memory_space<vmem>>, vector<32x1xf32>
    %277 = arith.mulf %275, %276 : vector<32x1xf32>
    %c0_156 = arith.constant 0 : index
    %c0_157 = arith.constant 0 : index
    %278 = vector.load %arg17[%c0_156, %c0_157] : memref<32x1xf32, #tpu.memory_space<vmem>>, vector<32x1xf32>
    %279 = arith.mulf %265, %277 : vector<32x1xf32>
    %280 = arith.subf %278, %279 : vector<32x1xf32>
    %281 = vector.broadcast %277 : vector<32x1xf32> to vector<32x512xf32>
    %282 = arith.mulf %261, %281 : vector<32x512xf32>
    %283 = vector.broadcast %280 : vector<32x1xf32> to vector<32x512xf32>
    %284 = arith.addf %282, %283 : vector<32x512xf32>
    %285 = arith.addf %259, %284 : vector<32x512xf32>
    %cst_158 = arith.constant 0.000000e+00 : f32
    %286 = vector.broadcast %cst_158 : f32 to vector<32x512xf32>
    %287 = arith.maximumf %285, %286 : vector<32x512xf32>
    %288 = vector.extract_strided_slice %287 {offsets = [0, 0], sizes = [32, 256], strides = [1, 1]} : vector<32x512xf32> to vector<32x256xf32>
    %c0_159 = arith.constant 0 : index
    %c0_160 = arith.constant 0 : index
    %c0_161 = arith.constant 0 : index
    %289 = vector.load %arg18[%c0_159, %c0_160, %c0_161] : memref<2x32x256xf32, #tpu.memory_space<vmem>>, vector<1x32x256xf32>
    %290 = vector.shape_cast %289 : vector<1x32x256xf32> to vector<32x256xf32>
    %291 = vector.shape_cast %288 : vector<32x256xf32> to vector<1x32x256xf32>
    tpu.vector_store %arg18[%c0_159, %c0_160, %c0_161], %291 {strides = array<i32>} : memref<2x32x256xf32, #tpu.memory_space<vmem>>, vector<1x32x256xf32>,
    %292 = vector.extract_strided_slice %287 {offsets = [0, 256], sizes = [32, 256], strides = [1, 1]} : vector<32x512xf32> to vector<32x256xf32>
    %c1_162 = arith.constant 1 : index
    %c0_163 = arith.constant 0 : index
    %c0_164 = arith.constant 0 : index
    %293 = vector.load %arg18[%c1_162, %c0_163, %c0_164] : memref<2x32x256xf32, #tpu.memory_space<vmem>>, vector<1x32x256xf32>
    %294 = vector.shape_cast %293 : vector<1x32x256xf32> to vector<32x256xf32>
    %295 = vector.shape_cast %292 : vector<32x256xf32> to vector<1x32x256xf32>
    tpu.vector_store %arg18[%c1_162, %c0_163, %c0_164], %295 {strides = array<i32>} : memref<2x32x256xf32, #tpu.memory_space<vmem>>, vector<1x32x256xf32>,
    return
  }
}

</mosaic_0001>

<llo_original>
// kernel: decoder_forward.1
$region0: #{decoder_forward.1}
  #allocation0 [shape = 'u32[]', space=smem, size = 0x4, offset = 0x4, fixed_abs, tag = 'smem constant byte address 0x4 - core index']
  #allocation1 [shape = 'u32[144,128]{1,0:T(1,128)}', space=vmem, size = 0x12000, scoped, tag = 'internal scratch']
  #allocation2 [shape = 'f32[16,512]{1,0:T(8,128)}', space=vmem, size = 0x8000, scoped, tag = 'scratch operand']
  #allocation3 [shape = 'f32[8,512]{1,0:T(8,128)}', space=vmem, size = 0x4000, scoped, tag = 'scratch operand']
  #allocation4 [shape = 'f32[8,512]{1,0:T(8,128)}', space=vmem, size = 0x4000, scoped, tag = 'scratch operand']
  %s0 = inlined_call_operand.vmem [shape: f32[2,16,64], index: 0, kind: input, shape index: {}]
  %s1 = inlined_call_operand.vmem [shape: f32[2,16,256], index: 1, kind: input, shape index: {}]
  %s2 = inlined_call_operand.vmem [shape: f32[64,256], index: 2, kind: input, shape index: {}]
  %s3 = inlined_call_operand.vmem [shape: f32[512,2], index: 3, kind: input, shape index: {}]
  %s4 = inlined_call_operand.vmem [shape: f32[2,256], index: 4, kind: input, shape index: {}]
  %s5 = inlined_call_operand.vmem [shape: f32[8,16], index: 5, kind: input, shape index: {}]
  %s6 = inlined_call_operand.vmem [shape: f32[4,8], index: 6, kind: input, shape index: {}]
  %s7 = inlined_call_operand.vmem [shape: f32[4,8,72], index: 7, kind: input, shape index: {}]
  %s8 = inlined_call_operand.vmem [shape: f32[32,8], index: 8, kind: input, shape index: {}]
  %s9 = inlined_call_operand.vmem [shape: f32[32,16], index: 9, kind: input, shape index: {}]
  %s10 = inlined_call_operand.vmem [shape: f32[8,1], index: 10, kind: input, shape index: {}]
  %s11 = inlined_call_operand.vmem [shape: f32[8,1], index: 11, kind: input, shape index: {}]
  %s12 = inlined_call_operand.vmem [shape: f32[8,1], index: 12, kind: input, shape index: {}]
  %s13 = inlined_call_operand.vmem [shape: f32[8,1], index: 13, kind: input, shape index: {}]
  %s14 = inlined_call_operand.vmem [shape: f32[32,1], index: 14, kind: input, shape index: {}]
  %s15 = inlined_call_operand.vmem [shape: f32[32,1], index: 15, kind: input, shape index: {}]
  %s16 = inlined_call_operand.vmem [shape: f32[32,1], index: 16, kind: input, shape index: {}]
  %s17 = inlined_call_operand.vmem [shape: f32[32,1], index: 17, kind: input, shape index: {}]
  %s18 = inlined_call_operand.vmem [shape: f32[2,32,256], index: 18, kind: output, shape index: {}]
  %s19 = sld [smem:[#allocation0]]
  $region82: #{decoder_forward.1} parent=0
    _
  %s21 = ssub.s32 1, %s19
  %s22 = scalar_select 0, %s21, %s19
  // Predicated region
  $region2: #{decoder_forward.1} parent=0 // pred_check
    _
  $region3: #{decoder_forward.1} parent=0 // pred_check_branch
    %24 = sbr.rel (0) target = $region5
  $region4: #{decoder_forward.1} parent=0 // pred_region
    _
  $region5: #{decoder_forward.1} parent=0 // pred_fallthru
    _
  // Predicated region
  $region6: #{decoder_forward.1} parent=0 // pred_check
    _
  $region7: #{decoder_forward.1} parent=0 // pred_check_branch
    %26 = sbr.rel (0) target = $region9
  $region8: #{decoder_forward.1} parent=0 // pred_region
    _
  $region9: #{decoder_forward.1} parent=0 // pred_fallthru
    _
  // Predicated region
  $region10: #{decoder_forward.1} parent=0 // pred_check
    _
  $region11: #{decoder_forward.1} parent=0 // pred_check_branch
    %28 = sbr.rel (0) target = $region13
  $region12: #{decoder_forward.1} parent=0 // pred_region
    _
  $region13: #{decoder_forward.1} parent=0 // pred_fallthru
    _
  // Predicated region
  $region14: #{decoder_forward.1} parent=0 // pred_check
    _
  $region15: #{decoder_forward.1} parent=0 // pred_check_branch
    %30 = sbr.rel (0) target = $region17
  $region16: #{decoder_forward.1} parent=0 // pred_region
    _
  $region17: #{decoder_forward.1} parent=0 // pred_fallthru
    _
  // Predicated region
  $region18: #{decoder_forward.1} parent=0 // pred_check
    _
  $region19: #{decoder_forward.1} parent=0 // pred_check_branch
    %32 = sbr.rel (0) target = $region21
  $region20: #{decoder_forward.1} parent=0 // pred_region
    _
  $region21: #{decoder_forward.1} parent=0 // pred_fallthru
    _
  // Predicated region
  $region22: #{decoder_forward.1} parent=0 // pred_check
    _
  $region23: #{decoder_forward.1} parent=0 // pred_check_branch
    %34 = sbr.rel (0) target = $region25
  $region24: #{decoder_forward.1} parent=0 // pred_region
    _
  $region25: #{decoder_forward.1} parent=0 // pred_fallthru
    _
  // Predicated region
  $region26: #{decoder_forward.1} parent=0 // pred_check
    _
  $region27: #{decoder_forward.1} parent=0 // pred_check_branch
    %36 = sbr.rel (0) target = $region29
  $region28: #{decoder_forward.1} parent=0 // pred_region
    _
  $region29: #{decoder_forward.1} parent=0 // pred_fallthru
    _
  // Predicated region
  $region30: #{decoder_forward.1} parent=0 // pred_check
    _
  $region31: #{decoder_forward.1} parent=0 // pred_check_branch
    %38 = sbr.rel (0) target = $region33
  $region32: #{decoder_forward.1} parent=0 // pred_region
    _
  $region33: #{decoder_forward.1} parent=0 // pred_fallthru
    _
  // Predicated region
  $region34: #{decoder_forward.1} parent=0 // pred_check
    _
  $region35: #{decoder_forward.1} parent=0 // pred_check_branch
    %40 = sbr.rel (0) target = $region37
  $region36: #{decoder_forward.1} parent=0 // pred_region
    _
  $region37: #{decoder_forward.1} parent=0 // pred_fallthru
    _
  // Predicated region
  $region38: #{decoder_forward.1} parent=0 // pred_check
    _
  $region39: #{decoder_forward.1} parent=0 // pred_check_branch
    %42 = sbr.rel (0) target = $region41
  $region40: #{decoder_forward.1} parent=0 // pred_region
    _
  $region41: #{decoder_forward.1} parent=0 // pred_fallthru
    _
  // Predicated region
  $region42: #{decoder_forward.1} parent=0 // pred_check
    _
  $region43: #{decoder_forward.1} parent=0 // pred_check_branch
    %44 = sbr.rel (0) target = $region45
  $region44: #{decoder_forward.1} parent=0 // pred_region
    _
  $region45: #{decoder_forward.1} parent=0 // pred_fallthru
    _
  // Predicated region
  $region46: #{decoder_forward.1} parent=0 // pred_check
    _
  $region47: #{decoder_forward.1} parent=0 // pred_check_branch
    %46 = sbr.rel (0) target = $region49
  $region48: #{decoder_forward.1} parent=0 // pred_region
    _
  $region49: #{decoder_forward.1} parent=0 // pred_fallthru
    _
  // Predicated region
  $region50: #{decoder_forward.1} parent=0 // pred_check
    _
  $region51: #{decoder_forward.1} parent=0 // pred_check_branch
    %48 = sbr.rel (0) target = $region53
  $region52: #{decoder_forward.1} parent=0 // pred_region
    _
  $region53: #{decoder_forward.1} parent=0 // pred_fallthru
    _
  // Predicated region
  $region54: #{decoder_forward.1} parent=0 // pred_check
    _
  $region55: #{decoder_forward.1} parent=0 // pred_check_branch
    %50 = sbr.rel (0) target = $region57
  $region56: #{decoder_forward.1} parent=0 // pred_region
    _
  $region57: #{decoder_forward.1} parent=0 // pred_fallthru
    _
  // Predicated region
  $region58: #{decoder_forward.1} parent=0 // pred_check
    _
  $region59: #{decoder_forward.1} parent=0 // pred_check_branch
    %52 = sbr.rel (0) target = $region61
  $region60: #{decoder_forward.1} parent=0 // pred_region
    _
  $region61: #{decoder_forward.1} parent=0 // pred_fallthru
    _
  // Predicated region
  $region62: #{decoder_forward.1} parent=0 // pred_check
    _
  $region63: #{decoder_forward.1} parent=0 // pred_check_branch
    %54 = sbr.rel (0) target = $region65
  $region64: #{decoder_forward.1} parent=0 // pred_region
    _
  $region65: #{decoder_forward.1} parent=0 // pred_fallthru
    _
  // Predicated region
  $region66: #{decoder_forward.1} parent=0 // pred_check
    _
  $region67: #{decoder_forward.1} parent=0 // pred_check_branch
    %56 = sbr.rel (0) target = $region69
  $region68: #{decoder_forward.1} parent=0 // pred_region
    _
  $region69: #{decoder_forward.1} parent=0 // pred_fallthru
    _
  // Predicated region
  $region70: #{decoder_forward.1} parent=0 // pred_check
    _
  $region71: #{decoder_forward.1} parent=0 // pred_check_branch
    %58 = sbr.rel (0) target = $region73
  $region72: #{decoder_forward.1} parent=0 // pred_region
    _
  $region73: #{decoder_forward.1} parent=0 // pred_fallthru
    _
  %v59 = vld [vmem:[%s2] sm:$0xff]
  %v60 = vld [vmem:[%s2 + $0x8] sm:$0xff]
  %v61 = vld [vmem:[%s2 + $0x10] sm:$0xff]
  %v62 = vld [vmem:[%s2 + $0x18] sm:$0xff]
  %v63 = vld [vmem:[%s2 + $0x20] sm:$0xff]
  %v64 = vld [vmem:[%s2 + $0x28] sm:$0xff]
  %v65 = vld [vmem:[%s2 + $0x30] sm:$0xff]
  %v66 = vld [vmem:[%s2 + $0x38] sm:$0xff]
  %v67 = vld [vmem:[%s2 + $0x40] sm:$0xff]
  %v68 = vld [vmem:[%s2 + $0x48] sm:$0xff]
  %v69 = vld [vmem:[%s2 + $0x50] sm:$0xff]
  %v70 = vld [vmem:[%s2 + $0x58] sm:$0xff]
  %v71 = vld [vmem:[%s2 + $0x60] sm:$0xff]
  %v72 = vld [vmem:[%s2 + $0x68] sm:$0xff]
  %v73 = vld [vmem:[%s2 + $0x70] sm:$0xff]
  %v74 = vld [vmem:[%s2 + $0x78] sm:$0xff]
  %v75 = vld [vmem:[%s0] sm:$0xff]
  %v76 = vld [vmem:[%s0 + $0x8] sm:$0xff]
  %v77 = vld [vmem:[%s1] sm:$0xff]
  %v78 = vld [vmem:[%s1 + $0x8] sm:$0xff]
  %v79 = vld [vmem:[%s1 + $0x10] sm:$0xff]
  %v80 = vld [vmem:[%s1 + $0x18] sm:$0xff]
  %vm81 = vcmask 523264
  %v83 = vsel %vm81, %v75, 0
  %v86 = vsel %vm81, %v76, 0
  %88 = vmatprep.subr.mxu0 %v60
  %89 = vmatpush1.msra.mxu0 %v59
  %90 = vmatprep.subr.mxu0 %v62
  %91 = vmatpush1.msra.mxu0 %v61
  %92 = vmatprep.subr.mxu0 %v64
  %93 = vmatpush1.msra.mxu0 %v63
  %94 = vmatprep.subr.mxu0 %v66
  %95 = vmatpush1.msra.mxu0 %v65
  %96 = vmatprep.subr.mxu0 %v68
  %97 = vmatpush1.msra.mxu0 %v67
  %98 = vmatprep.subr.mxu0 %v70
  %99 = vmatpush1.msra.mxu0 %v69
  %100 = vmatprep.subr.mxu0 %v72
  %101 = vmatpush1.msra.mxu0 %v71
  %102 = vmatprep.subr.mxu0 %v74
  %103 = vmatpush1.msra.mxu0 %v73
  %104 = vmatprep.subr.mxu0 0.0
  %105 = vmatpush1.msra.mxu0 0.0
  %106 = vmatprep.subr.mxu0 0.0
  %107 = vmatpush1.msra.mxu0 0.0
  %108 = vmatprep.subr.mxu0 0.0
  %109 = vmatpush1.msra.mxu0 0.0
  %110 = vmatprep.subr.mxu0 0.0
  %111 = vmatpush1.msra.mxu0 0.0
  %112 = vmatprep.subr.mxu0 0.0
  %113 = vmatpush1.msra.mxu0 0.0
  %114 = vmatprep.subr.mxu0 0.0
  %115 = vmatpush1.msra.mxu0 0.0
  %116 = vmatprep.subr.mxu0 0.0
  %117 = vmatpush1.msra.mxu0 0.0
  %118 = vmatprep.subr.mxu0 0.0
  %119 = vmatpush1.msra.mxu0 0.0
  %120 = vmatprep.subr.mxu0 0.0
  %121 = vmatpush1.msra.mxu0 0.0
  %122 = vmatprep.subr.mxu0 0.0
  %123 = vmatpush1.msra.mxu0 0.0
  %124 = vmatprep.subr.mxu0 0.0
  %125 = vmatpush1.msra.mxu0 0.0
  %126 = vmatprep.subr.mxu0 0.0
  %127 = vmatpush1.msra.mxu0 0.0
  %128 = vmatprep.subr.mxu0 0.0
  %129 = vmatpush1.msra.mxu0 0.0
  %130 = vmatprep.subr.mxu0 0.0
  %131 = vmatpush1.msra.mxu0 0.0
  %132 = vmatprep.subr.mxu0 0.0
  %133 = vmatpush1.msra.mxu0 0.0
  %134 = vmatprep.subr.mxu0 0.0
  %135 = vmatpush1.msra.mxu0 0.0
  %136 = vmatprep.subr.mxu0 0.0
  %137 = vmatpush1.msra.mxu0 0.0
  %138 = vmatprep.subr.mxu0 0.0
  %139 = vmatpush1.msra.mxu0 0.0
  %140 = vmatprep.subr.mxu0 0.0
  %141 = vmatpush1.msra.mxu0 0.0
  %142 = vmatprep.subr.mxu0 0.0
  %143 = vmatpush1.msra.mxu0 0.0
  %144 = vmatprep.subr.mxu0 0.0
  %145 = vmatpush1.msra.mxu0 0.0
  %146 = vmatprep.subr.mxu0 0.0
  %147 = vmatpush1.msra.mxu0 0.0
  %148 = vmatprep.subr.mxu0 0.0
  %149 = vmatpush1.msra.mxu0 0.0
  %150 = vmatprep.subr.mxu0 0.0
  %151 = vmatpush1.msra.mxu0 0.0
  %152 = vmatprep.mubr.f32.mxu0 0.0
  %153 = vmatmul.mubr.f32.gmra.mrb[0].mxu0 %v83
  %v154 = vpop.f32.mrb[0].mxu0
  %v155 = vadd.f32 %v77, %v154
  %v156 = vpop.f32.mrb[0].mxu0
  %v157 = vadd.f32 %v78, %v156
  %158 = vmatprep.mubr.f32.mxu0 0.0
  %159 = vmatmul.mubr.f32.gmra.mrb[0].mxu0 %v86
  %v160 = vpop.f32.mrb[0].mxu0
  %v161 = vadd.f32 %v79, %v160
  %v162 = vpop.f32.mrb[0].mxu0
  %v163 = vadd.f32 %v80, %v162
  %164 = vdwg.mxu0
  %165 = vst [vmem:[#allocation2] sm:$0xff] %v155
  %166 = vst [vmem:[#allocation2 + $0x8] sm:$0xff] %v157
  %167 = vst [vmem:[#allocation2 + $0x20] sm:$0xff] %v161
  %168 = vst [vmem:[#allocation2 + $0x28] sm:$0xff] %v163
  %s169 = scalar_lea.vmem %s0, 16
  %v170 = vld [vmem:[%s169] sm:$0xff]
  %v171 = vld [vmem:[%s169 + $0x8] sm:$0xff]
  %s172 = scalar_lea.vmem %s1, 32
  %v173 = vld [vmem:[%s172] sm:$0xff]
  %v174 = vld [vmem:[%s172 + $0x8] sm:$0xff]
  %v175 = vld [vmem:[%s172 + $0x10] sm:$0xff]
  %v176 = vld [vmem:[%s172 + $0x18] sm:$0xff]
  %v178 = vsel %vm81, %v170, 0
  %v181 = vsel %vm81, %v171, 0
  %183 = vmatprep.subr.mxu0 %v60
  %184 = vmatpush1.msra.mxu0 %v59
  %185 = vmatprep.subr.mxu0 %v62
  %186 = vmatpush1.msra.mxu0 %v61
  %187 = vmatprep.subr.mxu0 %v64
  %188 = vmatpush1.msra.mxu0 %v63
  %189 = vmatprep.subr.mxu0 %v66
  %190 = vmatpush1.msra.mxu0 %v65
  %191 = vmatprep.subr.mxu0 %v68
  %192 = vmatpush1.msra.mxu0 %v67
  %193 = vmatprep.subr.mxu0 %v70
  %194 = vmatpush1.msra.mxu0 %v69
  %195 = vmatprep.subr.mxu0 %v72
  %196 = vmatpush1.msra.mxu0 %v71
  %197 = vmatprep.subr.mxu0 %v74
  %198 = vmatpush1.msra.mxu0 %v73
  %199 = vmatprep.subr.mxu0 0.0
  %200 = vmatpush1.msra.mxu0 0.0
  %201 = vmatprep.subr.mxu0 0.0
  %202 = vmatpush1.msra.mxu0 0.0
  %203 = vmatprep.subr.mxu0 0.0
  %204 = vmatpush1.msra.mxu0 0.0
  %205 = vmatprep.subr.mxu0 0.0
  %206 = vmatpush1.msra.mxu0 0.0
  %207 = vmatprep.subr.mxu0 0.0
  %208 = vmatpush1.msra.mxu0 0.0
  %209 = vmatprep.subr.mxu0 0.0
  %210 = vmatpush1.msra.mxu0 0.0
  %211 = vmatprep.subr.mxu0 0.0
  %212 = vmatpush1.msra.mxu0 0.0
  %213 = vmatprep.subr.mxu0 0.0
  %214 = vmatpush1.msra.mxu0 0.0
  %215 = vmatprep.subr.mxu0 0.0
  %216 = vmatpush1.msra.mxu0 0.0
  %217 = vmatprep.subr.mxu0 0.0
  %218 = vmatpush1.msra.mxu0 0.0
  %219 = vmatprep.subr.mxu0 0.0
  %220 = vmatpush1.msra.mxu0 0.0
  %221 = vmatprep.subr.mxu0 0.0
  %222 = vmatpush1.msra.mxu0 0.0
  %223 = vmatprep.subr.mxu0 0.0
  %224 = vmatpush1.msra.mxu0 0.0
  %225 = vmatprep.subr.mxu0 0.0
  %226 = vmatpush1.msra.mxu0 0.0
  %227 = vmatprep.subr.mxu0 0.0
  %228 = vmatpush1.msra.mxu0 0.0
  %229 = vmatprep.subr.mxu0 0.0
  %230 = vmatpush1.msra.mxu0 0.0
  %231 = vmatprep.subr.mxu0 0.0
  %232 = vmatpush1.msra.mxu0 0.0
  %233 = vmatprep.subr.mxu0 0.0
  %234 = vmatpush1.msra.mxu0 0.0
  %235 = vmatprep.subr.mxu0 0.0
  %236 = vmatpush1.msra.mxu0 0.0
  %237 = vmatprep.subr.mxu0 0.0
  %238 = vmatpush1.msra.mxu0 0.0
  %239 = vmatprep.subr.mxu0 0.0
  %240 = vmatpush1.msra.mxu0 0.0
  %241 = vmatprep.subr.mxu0 0.0
  %242 = vmatpush1.msra.mxu0 0.0
  %243 = vmatprep.subr.mxu0 0.0
  %244 = vmatpush1.msra.mxu0 0.0
  %245 = vmatprep.subr.mxu0 0.0
  %246 = vmatpush1.msra.mxu0 0.0
  %247 = vmatprep.mubr.f32.mxu0 0.0
  %248 = vmatmul.mubr.f32.gmra.mrb[0].mxu0 %v178
  %v249 = vpop.f32.mrb[0].mxu0
  %v250 = vadd.f32 %v173, %v249
  %v251 = vpop.f32.mrb[0].mxu0
  %v252 = vadd.f32 %v174, %v251
  %253 = vmatprep.mubr.f32.mxu0 0.0
  %254 = vmatmul.mubr.f32.gmra.mrb[0].mxu0 %v181
  %v255 = vpop.f32.mrb[0].mxu0
  %v256 = vadd.f32 %v175, %v255
  %v257 = vpop.f32.mrb[0].mxu0
  %v258 = vadd.f32 %v176, %v257
  %259 = vdwg.mxu0
  %260 = vst [vmem:[#allocation2 + $0x10] sm:$0xff] %v250
  %261 = vst [vmem:[#allocation2 + $0x18] sm:$0xff] %v252
  %262 = vst [vmem:[#allocation2 + $0x30] sm:$0xff] %v256
  %263 = vst [vmem:[#allocation2 + $0x38] sm:$0xff] %v258
  %v264 = vld [vmem:[#allocation2] sm:$0xff]
  %v265 = vld [vmem:[#allocation2 + $0x8] sm:$0xff]
  %v266 = vld [vmem:[#allocation2 + $0x10] sm:$0xff]
  %v267 = vld [vmem:[#allocation2 + $0x18] sm:$0xff]
  %v268 = vld [vmem:[#allocation2 + $0x20] sm:$0xff]
  %v269 = vld [vmem:[#allocation2 + $0x28] sm:$0xff]
  %v270 = vld [vmem:[#allocation2 + $0x30] sm:$0xff]
  %v271 = vld [vmem:[#allocation2 + $0x38] sm:$0xff]
  %v272 = vld [vmem:[%s5] sm:$0xff]
  %vm273 = vcmask 130048
  %v275 = vsel %vm273, %v272, 0
  %277 = vmatprep.subr.mxu0 %v265
  %278 = vmatpush1.msra.mxu0 %v264
  %279 = vmatprep.subr.mxu0 %v269
  %280 = vmatpush1.msra.mxu0 %v268
  %281 = vmatprep.subr.mxu0 0.0
  %282 = vmatpush1.msra.mxu0 0.0
  %283 = vmatprep.subr.mxu0 0.0
  %284 = vmatpush1.msra.mxu0 0.0
  %285 = vmatprep.subr.mxu0 0.0
  %286 = vmatpush1.msra.mxu0 0.0
  %287 = vmatprep.subr.mxu0 0.0
  %288 = vmatpush1.msra.mxu0 0.0
  %289 = vmatprep.subr.mxu0 0.0
  %290 = vmatpush1.msra.mxu0 0.0
  %291 = vmatprep.subr.mxu0 0.0
  %292 = vmatpush1.msra.mxu0 0.0
  %293 = vmatprep.subr.mxu0 0.0
  %294 = vmatpush1.msra.mxu0 0.0
  %295 = vmatprep.subr.mxu0 0.0
  %296 = vmatpush1.msra.mxu0 0.0
  %297 = vmatprep.subr.mxu0 0.0
  %298 = vmatpush1.msra.mxu0 0.0
  %299 = vmatprep.subr.mxu0 0.0
  %300 = vmatpush1.msra.mxu0 0.0
  %301 = vmatprep.subr.mxu0 0.0
  %302 = vmatpush1.msra.mxu0 0.0
  %303 = vmatprep.subr.mxu0 0.0
  %304 = vmatpush1.msra.mxu0 0.0
  %305 = vmatprep.subr.mxu0 0.0
  %306 = vmatpush1.msra.mxu0 0.0
  %307 = vmatprep.subr.mxu0 0.0
  %308 = vmatpush1.msra.mxu0 0.0
  %309 = vmatprep.subr.mxu0 0.0
  %310 = vmatpush1.msra.mxu0 0.0
  %311 = vmatprep.subr.mxu0 0.0
  %312 = vmatpush1.msra.mxu0 0.0
  %313 = vmatprep.subr.mxu0 0.0
  %314 = vmatpush1.msra.mxu0 0.0
  %315 = vmatprep.subr.mxu0 0.0
  %316 = vmatpush1.msra.mxu0 0.0
  %317 = vmatprep.subr.mxu0 0.0
  %318 = vmatpush1.msra.mxu0 0.0
  %319 = vmatprep.subr.mxu0 0.0
  %320 = vmatpush1.msra.mxu0 0.0
  %321 = vmatprep.subr.mxu0 0.0
  %322 = vmatpush1.msra.mxu0 0.0
  %323 = vmatprep.subr.mxu0 0.0
  %324 = vmatpush1.msra.mxu0 0.0
  %325 = vmatprep.subr.mxu0 0.0
  %326 = vmatpush1.msra.mxu0 0.0
  %327 = vmatprep.subr.mxu0 0.0
  %328 = vmatpush1.msra.mxu0 0.0
  %329 = vmatprep.subr.mxu0 0.0
  %330 = vmatpush1.msra.mxu0 0.0
  %331 = vmatprep.subr.mxu0 0.0
  %332 = vmatpush1.msra.mxu0 0.0
  %333 = vmatprep.subr.mxu0 0.0
  %334 = vmatpush1.msra.mxu0 0.0
  %335 = vmatprep.subr.mxu0 0.0
  %336 = vmatpush1.msra.mxu0 0.0
  %337 = vmatprep.subr.mxu0 0.0
  %338 = vmatpush1.msra.mxu0 0.0
  %339 = vmatprep.subr.mxu0 0.0
  %340 = vmatpush1.msra.mxu0 0.0
  %341 = vmatprep.mubr.f32.mxu0 0.0
  %342 = vmatmul.mubr.f32.gmra.mrb[0].mxu0 %v275
  %v343 = vpop.f32.mrb[0].mxu0
  %v344 = vadd.f32 0.0, %v343
  %v345 = vpop.f32.mrb[0].mxu0
  %v346 = vadd.f32 0.0, %v345
  %347 = vdwg.mxu0
  %348 = vmatprep.subr.mxu0 %v267
  %349 = vmatpush1.msra.mxu0 %v266
  %350 = vmatprep.subr.mxu0 %v271
  %351 = vmatpush1.msra.mxu0 %v270
  %352 = vmatprep.subr.mxu0 0.0
  %353 = vmatpush1.msra.mxu0 0.0
  %354 = vmatprep.subr.mxu0 0.0
  %355 = vmatpush1.msra.mxu0 0.0
  %356 = vmatprep.subr.mxu0 0.0
  %357 = vmatpush1.msra.mxu0 0.0
  %358 = vmatprep.subr.mxu0 0.0
  %359 = vmatpush1.msra.mxu0 0.0
  %360 = vmatprep.subr.mxu0 0.0
  %361 = vmatpush1.msra.mxu0 0.0
  %362 = vmatprep.subr.mxu0 0.0
  %363 = vmatpush1.msra.mxu0 0.0
  %364 = vmatprep.subr.mxu0 0.0
  %365 = vmatpush1.msra.mxu0 0.0
  %366 = vmatprep.subr.mxu0 0.0
  %367 = vmatpush1.msra.mxu0 0.0
  %368 = vmatprep.subr.mxu0 0.0
  %369 = vmatpush1.msra.mxu0 0.0
  %370 = vmatprep.subr.mxu0 0.0
  %371 = vmatpush1.msra.mxu0 0.0
  %372 = vmatprep.subr.mxu0 0.0
  %373 = vmatpush1.msra.mxu0 0.0
  %374 = vmatprep.subr.mxu0 0.0
  %375 = vmatpush1.msra.mxu0 0.0
  %376 = vmatprep.subr.mxu0 0.0
  %377 = vmatpush1.msra.mxu0 0.0
  %378 = vmatprep.subr.mxu0 0.0
  %379 = vmatpush1.msra.mxu0 0.0
  %380 = vmatprep.subr.mxu0 0.0
  %381 = vmatpush1.msra.mxu0 0.0
  %382 = vmatprep.subr.mxu0 0.0
  %383 = vmatpush1.msra.mxu0 0.0
  %384 = vmatprep.subr.mxu0 0.0
  %385 = vmatpush1.msra.mxu0 0.0
  %386 = vmatprep.subr.mxu0 0.0
  %387 = vmatpush1.msra.mxu0 0.0
  %388 = vmatprep.subr.mxu0 0.0
  %389 = vmatpush1.msra.mxu0 0.0
  %390 = vmatprep.subr.mxu0 0.0
  %391 = vmatpush1.msra.mxu0 0.0
  %392 = vmatprep.subr.mxu0 0.0
  %393 = vmatpush1.msra.mxu0 0.0
  %394 = vmatprep.subr.mxu0 0.0
  %395 = vmatpush1.msra.mxu0 0.0
  %396 = vmatprep.subr.mxu0 0.0
  %397 = vmatpush1.msra.mxu0 0.0
  %398 = vmatprep.subr.mxu0 0.0
  %399 = vmatpush1.msra.mxu0 0.0
  %400 = vmatprep.subr.mxu0 0.0
  %401 = vmatpush1.msra.mxu0 0.0
  %402 = vmatprep.subr.mxu0 0.0
  %403 = vmatpush1.msra.mxu0 0.0
  %404 = vmatprep.subr.mxu0 0.0
  %405 = vmatpush1.msra.mxu0 0.0
  %406 = vmatprep.subr.mxu0 0.0
  %407 = vmatpush1.msra.mxu0 0.0
  %408 = vmatprep.subr.mxu0 0.0
  %409 = vmatpush1.msra.mxu0 0.0
  %410 = vmatprep.subr.mxu0 0.0
  %411 = vmatpush1.msra.mxu0 0.0
  %412 = vmatprep.mubr.f32.mxu0 0.0
  %413 = vmatmul.mubr.f32.gmra.mrb[0].mxu0 %v275
  %v414 = vpop.f32.mrb[0].mxu0
  %v415 = vadd.f32 0.0, %v414
  %v416 = vpop.f32.mrb[0].mxu0
  %v417 = vadd.f32 0.0, %v416
  %418 = vdwg.mxu0
  %v419 = vadd.f32 %v344, %v346
  %v420 = vadd.f32 %v419, %v415
  %v421 = vadd.f32 %v420, %v417
  %422 = vadd.xlane.f32.xlu0 %v421
  %v423 = vpop.xlane.xlu0 %422
  %v424 = vrcp.pop 512.0
  %v425 = vmul.f32 %v423, %v424
  %v426 = vsub.f32 %v344, %v425
  %v427 = vsub.f32 %v346, %v425
  %v428 = vsub.f32 %v415, %v425
  %v429 = vsub.f32 %v417, %v425
  %v430 = vmul.f32 %v426, %v426
  %v431 = vmul.f32 %v427, %v427
  %v432 = vmul.f32 %v428, %v428
  %v433 = vmul.f32 %v429, %v429
  %v434 = vadd.f32 %v430, %v431
  %v435 = vadd.f32 %v434, %v432
  %v436 = vadd.f32 %v435, %v433
  %437 = vadd.xlane.f32.xlu0 %v436
  %v438 = vpop.xlane.xlu0 %437
  %v439 = vmul.f32 %v438, %v424
  %v440 = vadd.f32 %v439, 1e-05
  %v441 = vrsqrt.pop %v440
  %v442 = vld [vmem:[%s10] sm:$0xff]
  %v443 = vmul.f32 %v441, %v442
  %v444 = vld [vmem:[%s11] sm:$0xff]
  %v445 = vmul.f32 %v425, %v443
  %v446 = vsub.f32 %v444, %v445
  %448 = vset.pattern.permute.xlu0 0
  %449 = vperm.xlu0 %448, %v443
  %v450 = vpop.permute.xlu0 %449
  %v452 = vmul.f32 %v344, %v450
  %v453 = vmul.f32 %v346, %v450
  %v454 = vmul.f32 %v415, %v450
  %v455 = vmul.f32 %v417, %v450
  %457 = vset.pattern.permute.xlu0 0
  %458 = vperm.xlu0 %457, %v446
  %v459 = vpop.permute.xlu0 %458
  %v461 = vadd.f32 %v452, %v459
  %v462 = vadd.f32 %v453, %v459
  %v463 = vadd.f32 %v454, %v459
  %v464 = vadd.f32 %v455, %v459
  %v465 = vmax.f32 %v461, 0.0
  %v466 = vmax.f32 %v462, 0.0
  %v467 = vmax.f32 %v463, 0.0
  %v468 = vmax.f32 %v464, 0.0
  %v469 = vld [vmem:[%s3] sm:$0xff]
  %v470 = vld [vmem:[%s3 + $0x8] sm:$0xff]
  %v471 = vld [vmem:[%s3 + $0x10] sm:$0xff]
  %v472 = vld [vmem:[%s3 + $0x18] sm:$0xff]
  %v473 = vld [vmem:[%s3 + $0x20] sm:$0xff]
  %v474 = vld [vmem:[%s3 + $0x28] sm:$0xff]
  %v475 = vld [vmem:[%s3 + $0x30] sm:$0xff]
  %v476 = vld [vmem:[%s3 + $0x38] sm:$0xff]
  %v477 = vld [vmem:[%s3 + $0x40] sm:$0xff]
  %v478 = vld [vmem:[%s3 + $0x48] sm:$0xff]
  %v479 = vld [vmem:[%s3 + $0x50] sm:$0xff]
  %v480 = vld [vmem:[%s3 + $0x58] sm:$0xff]
  %v481 = vld [vmem:[%s3 + $0x60] sm:$0xff]
  %v482 = vld [vmem:[%s3 + $0x68] sm:$0xff]
  %v483 = vld [vmem:[%s3 + $0x70] sm:$0xff]
  %v484 = vld [vmem:[%s3 + $0x78] sm:$0xff]
  %v485 = vld [vmem:[%s3 + $0x80] sm:$0xff]
  %v486 = vld [vmem:[%s3 + $0x88] sm:$0xff]
  %v487 = vld [vmem:[%s3 + $0x90] sm:$0xff]
  %v488 = vld [vmem:[%s3 + $0x98] sm:$0xff]
  %v489 = vld [vmem:[%s3 + $0xa0] sm:$0xff]
  %v490 = vld [vmem:[%s3 + $0xa8] sm:$0xff]
  %v491 = vld [vmem:[%s3 + $0xb0] sm:$0xff]
  %v492 = vld [vmem:[%s3 + $0xb8] sm:$0xff]
  %v493 = vld [vmem:[%s3 + $0xc0] sm:$0xff]
  %v494 = vld [vmem:[%s3 + $0xc8] sm:$0xff]
  %v495 = vld [vmem:[%s3 + $0xd0] sm:$0xff]
  %v496 = vld [vmem:[%s3 + $0xd8] sm:$0xff]
  %v497 = vld [vmem:[%s3 + $0xe0] sm:$0xff]
  %v498 = vld [vmem:[%s3 + $0xe8] sm:$0xff]
  %v499 = vld [vmem:[%s3 + $0xf0] sm:$0xff]
  %v500 = vld [vmem:[%s3 + $0xf8] sm:$0xff]
  %v501 = vld [vmem:[%s3 + $0x100] sm:$0xff]
  %v502 = vld [vmem:[%s3 + $0x108] sm:$0xff]
  %v503 = vld [vmem:[%s3 + $0x110] sm:$0xff]
  %v504 = vld [vmem:[%s3 + $0x118] sm:$0xff]
  %v505 = vld [vmem:[%s3 + $0x120] sm:$0xff]
  %v506 = vld [vmem:[%s3 + $0x128] sm:$0xff]
  %v507 = vld [vmem:[%s3 + $0x130] sm:$0xff]
  %v508 = vld [vmem:[%s3 + $0x138] sm:$0xff]
  %v509 = vld [vmem:[%s3 + $0x140] sm:$0xff]
  %v510 = vld [vmem:[%s3 + $0x148] sm:$0xff]
  %v511 = vld [vmem:[%s3 + $0x150] sm:$0xff]
  %v512 = vld [vmem:[%s3 + $0x158] sm:$0xff]
  %v513 = vld [vmem:[%s3 + $0x160] sm:$0xff]
  %v514 = vld [vmem:[%s3 + $0x168] sm:$0xff]
  %v515 = vld [vmem:[%s3 + $0x170] sm:$0xff]
  %v516 = vld [vmem:[%s3 + $0x178] sm:$0xff]
  %v517 = vld [vmem:[%s3 + $0x180] sm:$0xff]
  %v518 = vld [vmem:[%s3 + $0x188] sm:$0xff]
  %v519 = vld [vmem:[%s3 + $0x190] sm:$0xff]
  %v520 = vld [vmem:[%s3 + $0x198] sm:$0xff]
  %v521 = vld [vmem:[%s3 + $0x1a0] sm:$0xff]
  %v522 = vld [vmem:[%s3 + $0x1a8] sm:$0xff]
  %v523 = vld [vmem:[%s3 + $0x1b0] sm:$0xff]
  %v524 = vld [vmem:[%s3 + $0x1b8] sm:$0xff]
  %v525 = vld [vmem:[%s3 + $0x1c0] sm:$0xff]
  %v526 = vld [vmem:[%s3 + $0x1c8] sm:$0xff]
  %v527 = vld [vmem:[%s3 + $0x1d0] sm:$0xff]
  %v528 = vld [vmem:[%s3 + $0x1d8] sm:$0xff]
  %v529 = vld [vmem:[%s3 + $0x1e0] sm:$0xff]
  %v530 = vld [vmem:[%s3 + $0x1e8] sm:$0xff]
  %v531 = vld [vmem:[%s3 + $0x1f0] sm:$0xff]
  %v532 = vld [vmem:[%s3 + $0x1f8] sm:$0xff]
  %533 = vmatprep.subr.mxu0 0.0
  %534 = vmatpush1.msra.mxu0 %v469
  %535 = vmatprep.subr.mxu0 0.0
  %536 = vmatpush1.msra.mxu0 %v470
  %537 = vmatprep.subr.mxu0 0.0
  %538 = vmatpush1.msra.mxu0 %v471
  %539 = vmatprep.subr.mxu0 0.0
  %540 = vmatpush1.msra.mxu0 %v472
  %541 = vmatprep.subr.mxu0 0.0
  %542 = vmatpush1.msra.mxu0 %v473
  %543 = vmatprep.subr.mxu0 0.0
  %544 = vmatpush1.msra.mxu0 %v474
  %545 = vmatprep.subr.mxu0 0.0
  %546 = vmatpush1.msra.mxu0 %v475
  %547 = vmatprep.subr.mxu0 0.0
  %548 = vmatpush1.msra.mxu0 %v476
  %549 = vmatprep.subr.mxu0 0.0
  %550 = vmatpush1.msra.mxu0 %v477
  %551 = vmatprep.subr.mxu0 0.0
  %552 = vmatpush1.msra.mxu0 %v478
  %553 = vmatprep.subr.mxu0 0.0
  %554 = vmatpush1.msra.mxu0 %v479
  %555 = vmatprep.subr.mxu0 0.0
  %556 = vmatpush1.msra.mxu0 %v480
  %557 = vmatprep.subr.mxu0 0.0
  %558 = vmatpush1.msra.mxu0 %v481
  %559 = vmatprep.subr.mxu0 0.0
  %560 = vmatpush1.msra.mxu0 %v482
  %561 = vmatprep.subr.mxu0 0.0
  %562 = vmatpush1.msra.mxu0 %v483
  %563 = vmatprep.subr.mxu0 0.0
  %564 = vmatpush1.msra.mxu0 %v484
  %565 = vmatprep.subr.mxu0 0.0
  %566 = vmatpush1.msra.mxu0 %v485
  %567 = vmatprep.subr.mxu0 0.0
  %568 = vmatpush1.msra.mxu0 %v486
  %569 = vmatprep.subr.mxu0 0.0
  %570 = vmatpush1.msra.mxu0 %v487
  %571 = vmatprep.subr.mxu0 0.0
  %572 = vmatpush1.msra.mxu0 %v488
  %573 = vmatprep.subr.mxu0 0.0
  %574 = vmatpush1.msra.mxu0 %v489
  %575 = vmatprep.subr.mxu0 0.0
  %576 = vmatpush1.msra.mxu0 %v490
  %577 = vmatprep.subr.mxu0 0.0
  %578 = vmatpush1.msra.mxu0 %v491
  %579 = vmatprep.subr.mxu0 0.0
  %580 = vmatpush1.msra.mxu0 %v492
  %581 = vmatprep.subr.mxu0 0.0
  %582 = vmatpush1.msra.mxu0 %v493
  %583 = vmatprep.subr.mxu0 0.0
  %584 = vmatpush1.msra.mxu0 %v494
  %585 = vmatprep.subr.mxu0 0.0
  %586 = vmatpush1.msra.mxu0 %v495
  %587 = vmatprep.subr.mxu0 0.0
  %588 = vmatpush1.msra.mxu0 %v496
  %589 = vmatprep.subr.mxu0 0.0
  %590 = vmatpush1.msra.mxu0 %v497
  %591 = vmatprep.subr.mxu0 0.0
  %592 = vmatpush1.msra.mxu0 %v498
  %593 = vmatprep.subr.mxu0 0.0
  %594 = vmatpush1.msra.mxu0 %v499
  %595 = vmatprep.subr.mxu0 0.0
  %596 = vmatpush1.msra.mxu0 %v500
  %597 = vmatprep.mubr.f32.mxu0 %v466
  %598 = vmatmul.mubr.f32.gmra.mrb[0].mxu0 %v465
  %v599 = vpop.f32.mrb[0].mxu0
  %v600 = vadd.f32 0.0, %v599
  %v601 = vpop.f32.mrb[0].mxu0
  %602 = vdwg.mxu0
  %603 = vmatprep.subr.mxu0 0.0
  %604 = vmatpush1.msra.mxu0 %v501
  %605 = vmatprep.subr.mxu0 0.0
  %606 = vmatpush1.msra.mxu0 %v502
  %607 = vmatprep.subr.mxu0 0.0
  %608 = vmatpush1.msra.mxu0 %v503
  %609 = vmatprep.subr.mxu0 0.0
  %610 = vmatpush1.msra.mxu0 %v504
  %611 = vmatprep.subr.mxu0 0.0
  %612 = vmatpush1.msra.mxu0 %v505
  %613 = vmatprep.subr.mxu0 0.0
  %614 = vmatpush1.msra.mxu0 %v506
  %615 = vmatprep.subr.mxu0 0.0
  %616 = vmatpush1.msra.mxu0 %v507
  %617 = vmatprep.subr.mxu0 0.0
  %618 = vmatpush1.msra.mxu0 %v508
  %619 = vmatprep.subr.mxu0 0.0
  %620 = vmatpush1.msra.mxu0 %v509
  %621 = vmatprep.subr.mxu0 0.0
  %622 = vmatpush1.msra.mxu0 %v510
  %623 = vmatprep.subr.mxu0 0.0
  %624 = vmatpush1.msra.mxu0 %v511
  %625 = vmatprep.subr.mxu0 0.0
  %626 = vmatpush1.msra.mxu0 %v512
  %627 = vmatprep.subr.mxu0 0.0
  %628 = vmatpush1.msra.mxu0 %v513
  %629 = vmatprep.subr.mxu0 0.0
  %630 = vmatpush1.msra.mxu0 %v514
  %631 = vmatprep.subr.mxu0 0.0
  %632 = vmatpush1.msra.mxu0 %v515
  %633 = vmatprep.subr.mxu0 0.0
  %634 = vmatpush1.msra.mxu0 %v516
  %635 = vmatprep.subr.mxu0 0.0
  %636 = vmatpush1.msra.mxu0 %v517
  %637 = vmatprep.subr.mxu0 0.0
  %638 = vmatpush1.msra.mxu0 %v518
  %639 = vmatprep.subr.mxu0 0.0
  %640 = vmatpush1.msra.mxu0 %v519
  %641 = vmatprep.subr.mxu0 0.0
  %642 = vmatpush1.msra.mxu0 %v520
  %643 = vmatprep.subr.mxu0 0.0
  %644 = vmatpush1.msra.mxu0 %v521
  %645 = vmatprep.subr.mxu0 0.0
  %646 = vmatpush1.msra.mxu0 %v522
  %647 = vmatprep.subr.mxu0 0.0
  %648 = vmatpush1.msra.mxu0 %v523
  %649 = vmatprep.subr.mxu0 0.0
  %650 = vmatpush1.msra.mxu0 %v524
  %651 = vmatprep.subr.mxu0 0.0
  %652 = vmatpush1.msra.mxu0 %v525
  %653 = vmatprep.subr.mxu0 0.0
  %654 = vmatpush1.msra.mxu0 %v526
  %655 = vmatprep.subr.mxu0 0.0
  %656 = vmatpush1.msra.mxu0 %v527
  %657 = vmatprep.subr.mxu0 0.0
  %658 = vmatpush1.msra.mxu0 %v528
  %659 = vmatprep.subr.mxu0 0.0
  %660 = vmatpush1.msra.mxu0 %v529
  %661 = vmatprep.subr.mxu0 0.0
  %662 = vmatpush1.msra.mxu0 %v530
  %663 = vmatprep.subr.mxu0 0.0
  %664 = vmatpush1.msra.mxu0 %v531
  %665 = vmatprep.subr.mxu0 0.0
  %666 = vmatpush1.msra.mxu0 %v532
  %667 = vmatprep.mubr.f32.mxu0 %v468
  %668 = vmatmul.mubr.f32.gmra.mrb[0].mxu0 %v467
  %v669 = vpop.f32.mrb[0].mxu0
  %v670 = vadd.f32 %v600, %v669
  %v671 = vpop.f32.mrb[0].mxu0
  %672 = vdwg.mxu0
  %v673 = vld [vmem:[%s6] sm:$0xf]
  %vm674 = vcmask 64512
  %v676 = vsel %vm674, %v673, 0
  %678 = vmatprep.subr.mxu0 0.0
  %679 = vmatpush1.msra.mxu0 %v670
  %680 = vmatprep.subr.mxu0 0.0
  %681 = vmatpush1.msra.mxu0 0.0
  %682 = vmatprep.subr.mxu0 0.0
  %683 = vmatpush1.msra.mxu0 0.0
  %684 = vmatprep.subr.mxu0 0.0
  %685 = vmatpush1.msra.mxu0 0.0
  %686 = vmatprep.subr.mxu0 0.0
  %687 = vmatpush1.msra.mxu0 0.0
  %688 = vmatprep.subr.mxu0 0.0
  %689 = vmatpush1.msra.mxu0 0.0
  %690 = vmatprep.subr.mxu0 0.0
  %691 = vmatpush1.msra.mxu0 0.0
  %692 = vmatprep.subr.mxu0 0.0
  %693 = vmatpush1.msra.mxu0 0.0
  %694 = vmatprep.subr.mxu0 0.0
  %695 = vmatpush1.msra.mxu0 0.0
  %696 = vmatprep.subr.mxu0 0.0
  %697 = vmatpush1.msra.mxu0 0.0
  %698 = vmatprep.subr.mxu0 0.0
  %699 = vmatpush1.msra.mxu0 0.0
  %700 = vmatprep.subr.mxu0 0.0
  %701 = vmatpush1.msra.mxu0 0.0
  %702 = vmatprep.subr.mxu0 0.0
  %703 = vmatpush1.msra.mxu0 0.0
  %704 = vmatprep.subr.mxu0 0.0
  %705 = vmatpush1.msra.mxu0 0.0
  %706 = vmatprep.subr.mxu0 0.0
  %707 = vmatpush1.msra.mxu0 0.0
  %708 = vmatprep.subr.mxu0 0.0
  %709 = vmatpush1.msra.mxu0 0.0
  %710 = vmatprep.subr.mxu0 0.0
  %711 = vmatpush1.msra.mxu0 0.0
  %712 = vmatprep.subr.mxu0 0.0
  %713 = vmatpush1.msra.mxu0 0.0
  %714 = vmatprep.subr.mxu0 0.0
  %715 = vmatpush1.msra.mxu0 0.0
  %716 = vmatprep.subr.mxu0 0.0
  %717 = vmatpush1.msra.mxu0 0.0
  %718 = vmatprep.subr.mxu0 0.0
  %719 = vmatpush1.msra.mxu0 0.0
  %720 = vmatprep.subr.mxu0 0.0
  %721 = vmatpush1.msra.mxu0 0.0
  %722 = vmatprep.subr.mxu0 0.0
  %723 = vmatpush1.msra.mxu0 0.0
  %724 = vmatprep.subr.mxu0 0.0
  %725 = vmatpush1.msra.mxu0 0.0
  %726 = vmatprep.subr.mxu0 0.0
  %727 = vmatpush1.msra.mxu0 0.0
  %728 = vmatprep.subr.mxu0 0.0
  %729 = vmatpush1.msra.mxu0 0.0
  %730 = vmatprep.subr.mxu0 0.0
  %731 = vmatpush1.msra.mxu0 0.0
  %732 = vmatprep.subr.mxu0 0.0
  %733 = vmatpush1.msra.mxu0 0.0
  %734 = vmatprep.subr.mxu0 0.0
  %735 = vmatpush1.msra.mxu0 0.0
  %736 = vmatprep.subr.mxu0 0.0
  %737 = vmatpush1.msra.mxu0 0.0
  %738 = vmatprep.subr.mxu0 0.0
  %739 = vmatpush1.msra.mxu0 0.0
  %740 = vmatprep.subr.mxu0 0.0
  %741 = vmatpush1.msra.mxu0 0.0
  %742 = vmatprep.mubr.f32.mxu0 0.0
  %743 = vmatmul.mubr.f32.gmra.mrb[0].mxu0 %v676
  %v744 = vpop.f32.mrb[0].mxu0
  %v745 = vadd.f32 0.0, %v744
  %v746 = vpop.f32.mrb[0].mxu0
  %747 = vdwg.mxu0
  %v748 = vsub.f32 0.0, %v745
  %v749 = vmul.f32 %v748, 1.442695
  %v750 = vpow.pop %v749
  %v751 = vadd.f32 %v750, 1.0
  %v752 = vrcp.pop %v751
  %v753 = vmul.f32 1.0, %v752
  %754 = vst [vmem:[#allocation4] sm:$0xff] 0.0
  %755 = vst [vmem:[#allocation4 + $0x18] sm:$0xff] 0.0
  %v756 = vld [vmem:[%s4] sm:$0xf]
  %v757 = vld [vmem:[%s7] sm:$0xff]
  %s759 = vtos %v753
  %v760 = vstv %s759
  %v762 = vmul.f32 %v760, %v757
  %s763 = scalar_lea.vmem %s7, 8
  %v764 = vld [vmem:[%s763] sm:$0xff]
  %v765 = vrot.slane %v753, 1
  %s766 = vtos %v765
  %v767 = vstv %s766
  %v769 = vmul.f32 %v767, %v764
  %v770 = vadd.f32 %v762, %v769
  %s771 = scalar_lea.vmem %s7, 16
  %v772 = vld [vmem:[%s771] sm:$0xff]
  %v773 = vrot.slane %v753, 2
  %s774 = vtos %v773
  %v775 = vstv %s774
  %v777 = vmul.f32 %v775, %v772
  %v778 = vadd.f32 %v770, %v777
  %s779 = scalar_lea.vmem %s7, 24
  %v780 = vld [vmem:[%s779] sm:$0xff]
  %v781 = vrot.slane %v753, 3
  %s782 = vtos %v781
  %v783 = vstv %s782
  %v785 = vmul.f32 %v783, %v780
  %v786 = vadd.f32 %v778, %v785
  %787 = vst [vmem:[#allocation4 + $0x8] sm:$0xff] %v465
  %788 = vst [vmem:[#allocation4 + $0x10] sm:$0xff] %v466
  %v789 = vld [vmem:[#allocation4] sm:$0xff]
  %v790 = vld [vmem:[#allocation4 + $0x8] sm:$0xff]
  %v791 = vld [vmem:[#allocation4 + $0x10] sm:$0xff]
  %v793 = vlaneseq
  %v794 = vshrl.u32 %v793, 7
  %v795 = vsub.s32 0, %v794
  %v796 = vrot.slane %v756, %v795
  %v797 = vlaneseq
  %v798 = vshrl.u32 %v797, 7
  %v799 = vsub.s32 2, %v798
  %v800 = vrot.slane %v756, %v799
  %v803 = vlaneseq
  %v804 = vshrl.u32 %v803, 7
  %v805 = vsub.s32 0, %v804
  %v806 = vrot.slane %v796, %v805
  %v807 = vlaneseq
  %v808 = vshrl.u32 %v807, 7
  %v809 = vsub.s32 0, %v808
  %v810 = vrot.slane %v800, %v809
  %813 = vrot.lane.b32.xlu0 %v806, 111
  %v814 = vpop.permute.xlu0 %813
  %815 = vrot.lane.b32.xlu0 %v810, 111
  %v816 = vpop.permute.xlu0 %815
  %vm817 = vcmask 908288
  %v818 = vsel %vm817, %v814, %v816
  %v822 = vmul.f32 %v789, %v814
  %v823 = vmul.f32 %v790, %v818
  %v824 = vmul.f32 %v791, %v816
  %825 = vrot.lane.b32.xlu0 %v806, 127
  %v826 = vpop.permute.xlu0 %825
  %827 = vrot.lane.b32.xlu0 %v810, 127
  %v828 = vpop.permute.xlu0 %827
  %vm829 = vcmask 1039360
  %v830 = vsel %vm829, %v826, %v828
  %v834 = vmul.f32 %v789, %v826
  %v835 = vmul.f32 %v790, %v830
  %v836 = vmul.f32 %v791, %v828
  %838 = vrot.lane.b32.xlu0 %v786, 104
  %v839 = vpop.permute.xlu0 %838
  %843 = vrot.lane.b32.xlu0 %v834, 1
  %v844 = vpop.permute.xlu0 %843
  %845 = vrot.lane.b32.xlu0 %v835, 1
  %v846 = vpop.permute.xlu0 %845
  %847 = vrot.lane.b32.xlu0 %v836, 1
  %v848 = vpop.permute.xlu0 %847
  %vm849 = vcmask 7168
  %v850 = vsel %vm849, %v844, %v846
  %v851 = vsel %vm849, %v846, %v848
  %v854 = vsel %vm674, %v839, 0
  %856 = vmatprep.subr.mxu0 %v851
  %857 = vmatpush1.msra.mxu0 %v850
  %858 = vmatprep.subr.mxu0 0.0
  %859 = vmatpush1.msra.mxu0 0.0
  %860 = vmatprep.subr.mxu0 0.0
  %861 = vmatpush1.msra.mxu0 0.0
  %862 = vmatprep.subr.mxu0 0.0
  %863 = vmatpush1.msra.mxu0 0.0
  %864 = vmatprep.subr.mxu0 0.0
  %865 = vmatpush1.msra.mxu0 0.0
  %866 = vmatprep.subr.mxu0 0.0
  %867 = vmatpush1.msra.mxu0 0.0
  %868 = vmatprep.subr.mxu0 0.0
  %869 = vmatpush1.msra.mxu0 0.0
  %870 = vmatprep.subr.mxu0 0.0
  %871 = vmatpush1.msra.mxu0 0.0
  %872 = vmatprep.subr.mxu0 0.0
  %873 = vmatpush1.msra.mxu0 0.0
  %874 = vmatprep.subr.mxu0 0.0
  %875 = vmatpush1.msra.mxu0 0.0
  %876 = vmatprep.subr.mxu0 0.0
  %877 = vmatpush1.msra.mxu0 0.0
  %878 = vmatprep.subr.mxu0 0.0
  %879 = vmatpush1.msra.mxu0 0.0
  %880 = vmatprep.subr.mxu0 0.0
  %881 = vmatpush1.msra.mxu0 0.0
  %882 = vmatprep.subr.mxu0 0.0
  %883 = vmatpush1.msra.mxu0 0.0
  %884 = vmatprep.subr.mxu0 0.0
  %885 = vmatpush1.msra.mxu0 0.0
  %886 = vmatprep.subr.mxu0 0.0
  %887 = vmatpush1.msra.mxu0 0.0
  %888 = vmatprep.subr.mxu0 0.0
  %889 = vmatpush1.msra.mxu0 0.0
  %890 = vmatprep.subr.mxu0 0.0
  %891 = vmatpush1.msra.mxu0 0.0
  %892 = vmatprep.subr.mxu0 0.0
  %893 = vmatpush1.msra.mxu0 0.0
  %894 = vmatprep.subr.mxu0 0.0
  %895 = vmatpush1.msra.mxu0 0.0
  %896 = vmatprep.subr.mxu0 0.0
  %897 = vmatpush1.msra.mxu0 0.0
  %898 = vmatprep.subr.mxu0 0.0
  %899 = vmatpush1.msra.mxu0 0.0
  %900 = vmatprep.subr.mxu0 0.0
  %901 = vmatpush1.msra.mxu0 0.0
  %902 = vmatprep.subr.mxu0 0.0
  %903 = vmatpush1.msra.mxu0 0.0
  %904 = vmatprep.subr.mxu0 0.0
  %905 = vmatpush1.msra.mxu0 0.0
  %906 = vmatprep.subr.mxu0 0.0
  %907 = vmatpush1.msra.mxu0 0.0
  %908 = vmatprep.subr.mxu0 0.0
  %909 = vmatpush1.msra.mxu0 0.0
  %910 = vmatprep.subr.mxu0 0.0
  %911 = vmatpush1.msra.mxu0 0.0
  %912 = vmatprep.subr.mxu0 0.0
  %913 = vmatpush1.msra.mxu0 0.0
  %914 = vmatprep.subr.mxu0 0.0
  %915 = vmatpush1.msra.mxu0 0.0
  %916 = vmatprep.subr.mxu0 0.0
  %917 = vmatpush1.msra.mxu0 0.0
  %918 = vmatprep.subr.mxu0 0.0
  %919 = vmatpush1.msra.mxu0 0.0
  %920 = vmatprep.mubr.f32.mxu0 0.0
  %921 = vmatmul.mubr.f32.gmra.mrb[0].mxu0 %v854
  %v922 = vpop.f32.mrb[0].mxu0
  %v923 = vadd.f32 0.0, %v922
  %v924 = vpop.f32.mrb[0].mxu0
  %v925 = vadd.f32 0.0, %v924
  %926 = vdwg.mxu0
  %930 = vrot.lane.b32.xlu0 %v822, 17
  %v931 = vpop.permute.xlu0 %930
  %932 = vrot.lane.b32.xlu0 %v823, 17
  %v933 = vpop.permute.xlu0 %932
  %934 = vrot.lane.b32.xlu0 %v824, 17
  %v935 = vpop.permute.xlu0 %934
  %vm936 = vcmask 138240
  %v937 = vsel %vm936, %v931, %v933
  %v938 = vsel %vm936, %v933, %v935
  %v941 = vsel %vm674, %v786, 0
  %943 = vmatprep.subr.mxu0 %v938
  %944 = vmatpush1.msra.mxu0 %v937
  %945 = vmatprep.subr.mxu0 0.0
  %946 = vmatpush1.msra.mxu0 0.0
  %947 = vmatprep.subr.mxu0 0.0
  %948 = vmatpush1.msra.mxu0 0.0
  %949 = vmatprep.subr.mxu0 0.0
  %950 = vmatpush1.msra.mxu0 0.0
  %951 = vmatprep.subr.mxu0 0.0
  %952 = vmatpush1.msra.mxu0 0.0
  %953 = vmatprep.subr.mxu0 0.0
  %954 = vmatpush1.msra.mxu0 0.0
  %955 = vmatprep.subr.mxu0 0.0
  %956 = vmatpush1.msra.mxu0 0.0
  %957 = vmatprep.subr.mxu0 0.0
  %958 = vmatpush1.msra.mxu0 0.0
  %959 = vmatprep.subr.mxu0 0.0
  %960 = vmatpush1.msra.mxu0 0.0
  %961 = vmatprep.subr.mxu0 0.0
  %962 = vmatpush1.msra.mxu0 0.0
  %963 = vmatprep.subr.mxu0 0.0
  %964 = vmatpush1.msra.mxu0 0.0
  %965 = vmatprep.subr.mxu0 0.0
  %966 = vmatpush1.msra.mxu0 0.0
  %967 = vmatprep.subr.mxu0 0.0
  %968 = vmatpush1.msra.mxu0 0.0
  %969 = vmatprep.subr.mxu0 0.0
  %970 = vmatpush1.msra.mxu0 0.0
  %971 = vmatprep.subr.mxu0 0.0
  %972 = vmatpush1.msra.mxu0 0.0
  %973 = vmatprep.subr.mxu0 0.0
  %974 = vmatpush1.msra.mxu0 0.0
  %975 = vmatprep.subr.mxu0 0.0
  %976 = vmatpush1.msra.mxu0 0.0
  %977 = vmatprep.subr.mxu0 0.0
  %978 = vmatpush1.msra.mxu0 0.0
  %979 = vmatprep.subr.mxu0 0.0
  %980 = vmatpush1.msra.mxu0 0.0
  %981 = vmatprep.subr.mxu0 0.0
  %982 = vmatpush1.msra.mxu0 0.0
  %983 = vmatprep.subr.mxu0 0.0
  %984 = vmatpush1.msra.mxu0 0.0
  %985 = vmatprep.subr.mxu0 0.0
  %986 = vmatpush1.msra.mxu0 0.0
  %987 = vmatprep.subr.mxu0 0.0
  %988 = vmatpush1.msra.mxu0 0.0
  %989 = vmatprep.subr.mxu0 0.0
  %990 = vmatpush1.msra.mxu0 0.0
  %991 = vmatprep.subr.mxu0 0.0
  %992 = vmatpush1.msra.mxu0 0.0
  %993 = vmatprep.subr.mxu0 0.0
  %994 = vmatpush1.msra.mxu0 0.0
  %995 = vmatprep.subr.mxu0 0.0
  %996 = vmatpush1.msra.mxu0 0.0
  %997 = vmatprep.subr.mxu0 0.0
  %998 = vmatpush1.msra.mxu0 0.0
  %999 = vmatprep.subr.mxu0 0.0
  %1000 = vmatpush1.msra.mxu0 0.0
  %1001 = vmatprep.subr.mxu0 0.0
  %1002 = vmatpush1.msra.mxu0 0.0
  %1003 = vmatprep.subr.mxu0 0.0
  %1004 = vmatpush1.msra.mxu0 0.0
  %1005 = vmatprep.subr.mxu0 0.0
  %1006 = vmatpush1.msra.mxu0 0.0
  %1007 = vmatprep.mubr.f32.mxu0 0.0
  %1008 = vmatmul.mubr.f32.gmra.mrb[0].mxu0 %v941
  %v1009 = vpop.f32.mrb[0].mxu0
  %v1010 = vadd.f32 %v923, %v1009
  %v1011 = vpop.f32.mrb[0].mxu0
  %v1012 = vadd.f32 %v925, %v1011
  %1013 = vdwg.mxu0
  %v1014 = vld [vmem:[#allocation4 + $0x8] sm:$0xff]
  %v1015 = vld [vmem:[#allocation4 + $0x10] sm:$0xff]
  %v1016 = vld [vmem:[#allocation4 + $0x18] sm:$0xff]
  %1017 = vrot.lane.b32.xlu0 %v806, 15
  %v1018 = vpop.permute.xlu0 %1017
  %1019 = vrot.lane.b32.xlu0 %v810, 15
  %v1020 = vpop.permute.xlu0 %1019
  %vm1021 = vcmask 121856
  %v1022 = vsel %vm1021, %v1018, %v1020
  %v1026 = vmul.f32 %v1014, %v1018
  %v1027 = vmul.f32 %v1015, %v1022
  %v1028 = vmul.f32 %v1016, %v1020
  %1029 = vrot.lane.b32.xlu0 %v786, 80
  %v1030 = vpop.permute.xlu0 %1029
  %1034 = vrot.lane.b32.xlu0 %v1026, 113
  %v1035 = vpop.permute.xlu0 %1034
  %1036 = vrot.lane.b32.xlu0 %v1027, 113
  %v1037 = vpop.permute.xlu0 %1036
  %1038 = vrot.lane.b32.xlu0 %v1028, 113
  %v1039 = vpop.permute.xlu0 %1038
  %vm1040 = vcmask 924672
  %v1041 = vsel %vm1040, %v1035, %v1037
  %v1042 = vsel %vm1040, %v1037, %v1039
  %v1045 = vsel %vm674, %v1030, 0
  %1047 = vmatprep.subr.mxu0 %v1042
  %1048 = vmatpush1.msra.mxu0 %v1041
  %1049 = vmatprep.subr.mxu0 0.0
  %1050 = vmatpush1.msra.mxu0 0.0
  %1051 = vmatprep.subr.mxu0 0.0
  %1052 = vmatpush1.msra.mxu0 0.0
  %1053 = vmatprep.subr.mxu0 0.0
  %1054 = vmatpush1.msra.mxu0 0.0
  %1055 = vmatprep.subr.mxu0 0.0
  %1056 = vmatpush1.msra.mxu0 0.0
  %1057 = vmatprep.subr.mxu0 0.0
  %1058 = vmatpush1.msra.mxu0 0.0
  %1059 = vmatprep.subr.mxu0 0.0
  %1060 = vmatpush1.msra.mxu0 0.0
  %1061 = vmatprep.subr.mxu0 0.0
  %1062 = vmatpush1.msra.mxu0 0.0
  %1063 = vmatprep.subr.mxu0 0.0
  %1064 = vmatpush1.msra.mxu0 0.0
  %1065 = vmatprep.subr.mxu0 0.0
  %1066 = vmatpush1.msra.mxu0 0.0
  %1067 = vmatprep.subr.mxu0 0.0
  %1068 = vmatpush1.msra.mxu0 0.0
  %1069 = vmatprep.subr.mxu0 0.0
  %1070 = vmatpush1.msra.mxu0 0.0
  %1071 = vmatprep.subr.mxu0 0.0
  %1072 = vmatpush1.msra.mxu0 0.0
  %1073 = vmatprep.subr.mxu0 0.0
  %1074 = vmatpush1.msra.mxu0 0.0
  %1075 = vmatprep.subr.mxu0 0.0
  %1076 = vmatpush1.msra.mxu0 0.0
  %1077 = vmatprep.subr.mxu0 0.0
  %1078 = vmatpush1.msra.mxu0 0.0
  %1079 = vmatprep.subr.mxu0 0.0
  %1080 = vmatpush1.msra.mxu0 0.0
  %1081 = vmatprep.subr.mxu0 0.0
  %1082 = vmatpush1.msra.mxu0 0.0
  %1083 = vmatprep.subr.mxu0 0.0
  %1084 = vmatpush1.msra.mxu0 0.0
  %1085 = vmatprep.subr.mxu0 0.0
  %1086 = vmatpush1.msra.mxu0 0.0
  %1087 = vmatprep.subr.mxu0 0.0
  %1088 = vmatpush1.msra.mxu0 0.0
  %1089 = vmatprep.subr.mxu0 0.0
  %1090 = vmatpush1.msra.mxu0 0.0
  %1091 = vmatprep.subr.mxu0 0.0
  %1092 = vmatpush1.msra.mxu0 0.0
  %1093 = vmatprep.subr.mxu0 0.0
  %1094 = vmatpush1.msra.mxu0 0.0
  %1095 = vmatprep.subr.mxu0 0.0
  %1096 = vmatpush1.msra.mxu0 0.0
  %1097 = vmatprep.subr.mxu0 0.0
  %1098 = vmatpush1.msra.mxu0 0.0
  %1099 = vmatprep.subr.mxu0 0.0
  %1100 = vmatpush1.msra.mxu0 0.0
  %1101 = vmatprep.subr.mxu0 0.0
  %1102 = vmatpush1.msra.mxu0 0.0
  %1103 = vmatprep.subr.mxu0 0.0
  %1104 = vmatpush1.msra.mxu0 0.0
  %1105 = vmatprep.subr.mxu0 0.0
  %1106 = vmatpush1.msra.mxu0 0.0
  %1107 = vmatprep.subr.mxu0 0.0
  %1108 = vmatpush1.msra.mxu0 0.0
  %1109 = vmatprep.subr.mxu0 0.0
  %1110 = vmatpush1.msra.mxu0 0.0
  %1111 = vmatprep.mubr.f32.mxu0 0.0
  %1112 = vmatmul.mubr.f32.gmra.mrb[0].mxu0 %v1045
  %v1113 = vpop.f32.mrb[0].mxu0
  %v1114 = vadd.f32 0.0, %v1113
  %v1115 = vpop.f32.mrb[0].mxu0
  %v1116 = vadd.f32 0.0, %v1115
  %1117 = vdwg.mxu0
  %v1118 = vadd.f32 %v1010, %v1114
  %v1119 = vadd.f32 %v1012, %v1116
  %1120 = vrot.lane.b32.xlu0 %v786, 120
  %v1121 = vpop.permute.xlu0 %1120
  %1125 = vrot.lane.b32.xlu0 %v789, 16
  %v1126 = vpop.permute.xlu0 %1125
  %1127 = vrot.lane.b32.xlu0 %v790, 16
  %v1128 = vpop.permute.xlu0 %1127
  %1129 = vrot.lane.b32.xlu0 %v791, 16
  %v1130 = vpop.permute.xlu0 %1129
  %v1131 = vsel %vm273, %v1126, %v1128
  %v1132 = vsel %vm273, %v1128, %v1130
  %v1135 = vsel %vm674, %v1121, 0
  %1137 = vmatprep.subr.mxu0 %v1132
  %1138 = vmatpush1.msra.mxu0 %v1131
  %1139 = vmatprep.subr.mxu0 0.0
  %1140 = vmatpush1.msra.mxu0 0.0
  %1141 = vmatprep.subr.mxu0 0.0
  %1142 = vmatpush1.msra.mxu0 0.0
  %1143 = vmatprep.subr.mxu0 0.0
  %1144 = vmatpush1.msra.mxu0 0.0
  %1145 = vmatprep.subr.mxu0 0.0
  %1146 = vmatpush1.msra.mxu0 0.0
  %1147 = vmatprep.subr.mxu0 0.0
  %1148 = vmatpush1.msra.mxu0 0.0
  %1149 = vmatprep.subr.mxu0 0.0
  %1150 = vmatpush1.msra.mxu0 0.0
  %1151 = vmatprep.subr.mxu0 0.0
  %1152 = vmatpush1.msra.mxu0 0.0
  %1153 = vmatprep.subr.mxu0 0.0
  %1154 = vmatpush1.msra.mxu0 0.0
  %1155 = vmatprep.subr.mxu0 0.0
  %1156 = vmatpush1.msra.mxu0 0.0
  %1157 = vmatprep.subr.mxu0 0.0
  %1158 = vmatpush1.msra.mxu0 0.0
  %1159 = vmatprep.subr.mxu0 0.0
  %1160 = vmatpush1.msra.mxu0 0.0
  %1161 = vmatprep.subr.mxu0 0.0
  %1162 = vmatpush1.msra.mxu0 0.0
  %1163 = vmatprep.subr.mxu0 0.0
  %1164 = vmatpush1.msra.mxu0 0.0
  %1165 = vmatprep.subr.mxu0 0.0
  %1166 = vmatpush1.msra.mxu0 0.0
  %1167 = vmatprep.subr.mxu0 0.0
  %1168 = vmatpush1.msra.mxu0 0.0
  %1169 = vmatprep.subr.mxu0 0.0
  %1170 = vmatpush1.msra.mxu0 0.0
  %1171 = vmatprep.subr.mxu0 0.0
  %1172 = vmatpush1.msra.mxu0 0.0
  %1173 = vmatprep.subr.mxu0 0.0
  %1174 = vmatpush1.msra.mxu0 0.0
  %1175 = vmatprep.subr.mxu0 0.0
  %1176 = vmatpush1.msra.mxu0 0.0
  %1177 = vmatprep.subr.mxu0 0.0
  %1178 = vmatpush1.msra.mxu0 0.0
  %1179 = vmatprep.subr.mxu0 0.0
  %1180 = vmatpush1.msra.mxu0 0.0
  %1181 = vmatprep.subr.mxu0 0.0
  %1182 = vmatpush1.msra.mxu0 0.0
  %1183 = vmatprep.subr.mxu0 0.0
  %1184 = vmatpush1.msra.mxu0 0.0
  %1185 = vmatprep.subr.mxu0 0.0
  %1186 = vmatpush1.msra.mxu0 0.0
  %1187 = vmatprep.subr.mxu0 0.0
  %1188 = vmatpush1.msra.mxu0 0.0
  %1189 = vmatprep.subr.mxu0 0.0
  %1190 = vmatpush1.msra.mxu0 0.0
  %1191 = vmatprep.subr.mxu0 0.0
  %1192 = vmatpush1.msra.mxu0 0.0
  %1193 = vmatprep.subr.mxu0 0.0
  %1194 = vmatpush1.msra.mxu0 0.0
  %1195 = vmatprep.subr.mxu0 0.0
  %1196 = vmatpush1.msra.mxu0 0.0
  %1197 = vmatprep.subr.mxu0 0.0
  %1198 = vmatpush1.msra.mxu0 0.0
  %1199 = vmatprep.subr.mxu0 0.0
  %1200 = vmatpush1.msra.mxu0 0.0
  %1201 = vmatprep.mubr.f32.mxu0 0.0
  %1202 = vmatmul.mubr.f32.gmra.mrb[0].mxu0 %v1135
  %v1203 = vpop.f32.mrb[0].mxu0
  %v1204 = vadd.f32 0.0, %v1203
  %v1205 = vpop.f32.mrb[0].mxu0
  %v1206 = vadd.f32 0.0, %v1205
  %1207 = vdwg.mxu0
  %v1208 = vadd.f32 %v1118, %v1204
  %v1209 = vadd.f32 %v1119, %v1206
  %1210 = vrot.lane.b32.xlu0 %v786, 96
  %v1211 = vpop.permute.xlu0 %1210
  %v1212 = vsel %vm674, %v1211, 0
  %1214 = vmatprep.subr.mxu0 %v791
  %1215 = vmatpush1.msra.mxu0 %v790
  %1216 = vmatprep.subr.mxu0 0.0
  %1217 = vmatpush1.msra.mxu0 0.0
  %1218 = vmatprep.subr.mxu0 0.0
  %1219 = vmatpush1.msra.mxu0 0.0
  %1220 = vmatprep.subr.mxu0 0.0
  %1221 = vmatpush1.msra.mxu0 0.0
  %1222 = vmatprep.subr.mxu0 0.0
  %1223 = vmatpush1.msra.mxu0 0.0
  %1224 = vmatprep.subr.mxu0 0.0
  %1225 = vmatpush1.msra.mxu0 0.0
  %1226 = vmatprep.subr.mxu0 0.0
  %1227 = vmatpush1.msra.mxu0 0.0
  %1228 = vmatprep.subr.mxu0 0.0
  %1229 = vmatpush1.msra.mxu0 0.0
  %1230 = vmatprep.subr.mxu0 0.0
  %1231 = vmatpush1.msra.mxu0 0.0
  %1232 = vmatprep.subr.mxu0 0.0
  %1233 = vmatpush1.msra.mxu0 0.0
  %1234 = vmatprep.subr.mxu0 0.0
  %1235 = vmatpush1.msra.mxu0 0.0
  %1236 = vmatprep.subr.mxu0 0.0
  %1237 = vmatpush1.msra.mxu0 0.0
  %1238 = vmatprep.subr.mxu0 0.0
  %1239 = vmatpush1.msra.mxu0 0.0
  %1240 = vmatprep.subr.mxu0 0.0
  %1241 = vmatpush1.msra.mxu0 0.0
  %1242 = vmatprep.subr.mxu0 0.0
  %1243 = vmatpush1.msra.mxu0 0.0
  %1244 = vmatprep.subr.mxu0 0.0
  %1245 = vmatpush1.msra.mxu0 0.0
  %1246 = vmatprep.subr.mxu0 0.0
  %1247 = vmatpush1.msra.mxu0 0.0
  %1248 = vmatprep.subr.mxu0 0.0
  %1249 = vmatpush1.msra.mxu0 0.0
  %1250 = vmatprep.subr.mxu0 0.0
  %1251 = vmatpush1.msra.mxu0 0.0
  %1252 = vmatprep.subr.mxu0 0.0
  %1253 = vmatpush1.msra.mxu0 0.0
  %1254 = vmatprep.subr.mxu0 0.0
  %1255 = vmatpush1.msra.mxu0 0.0
  %1256 = vmatprep.subr.mxu0 0.0
  %1257 = vmatpush1.msra.mxu0 0.0
  %1258 = vmatprep.subr.mxu0 0.0
  %1259 = vmatpush1.msra.mxu0 0.0
  %1260 = vmatprep.subr.mxu0 0.0
  %1261 = vmatpush1.msra.mxu0 0.0
  %1262 = vmatprep.subr.mxu0 0.0
  %1263 = vmatpush1.msra.mxu0 0.0
  %1264 = vmatprep.subr.mxu0 0.0
  %1265 = vmatpush1.msra.mxu0 0.0
  %1266 = vmatprep.subr.mxu0 0.0
  %1267 = vmatpush1.msra.mxu0 0.0
  %1268 = vmatprep.subr.mxu0 0.0
  %1269 = vmatpush1.msra.mxu0 0.0
  %1270 = vmatprep.subr.mxu0 0.0
  %1271 = vmatpush1.msra.mxu0 0.0
  %1272 = vmatprep.subr.mxu0 0.0
  %1273 = vmatpush1.msra.mxu0 0.0
  %1274 = vmatprep.subr.mxu0 0.0
  %1275 = vmatpush1.msra.mxu0 0.0
  %1276 = vmatprep.subr.mxu0 0.0
  %1277 = vmatpush1.msra.mxu0 0.0
  %1278 = vmatprep.mubr.f32.mxu0 0.0
  %1279 = vmatmul.mubr.f32.gmra.mrb[0].mxu0 %v1212
  %v1280 = vpop.f32.mrb[0].mxu0
  %v1281 = vadd.f32 0.0, %v1280
  %v1282 = vpop.f32.mrb[0].mxu0
  %v1283 = vadd.f32 0.0, %v1282
  %1284 = vdwg.mxu0
  %v1285 = vadd.f32 %v1208, %v1281
  %v1286 = vadd.f32 %v1209, %v1283
  %1287 = vrot.lane.b32.xlu0 %v786, 72
  %v1288 = vpop.permute.xlu0 %1287
  %1292 = vrot.lane.b32.xlu0 %v1014, 112
  %v1293 = vpop.permute.xlu0 %1292
  %1294 = vrot.lane.b32.xlu0 %v1015, 112
  %v1295 = vpop.permute.xlu0 %1294
  %1296 = vrot.lane.b32.xlu0 %v1016, 112
  %v1297 = vpop.permute.xlu0 %1296
  %vm1298 = vcmask 916480
  %v1299 = vsel %vm1298, %v1293, %v1295
  %v1300 = vsel %vm1298, %v1295, %v1297
  %v1303 = vsel %vm674, %v1288, 0
  %1305 = vmatprep.subr.mxu0 %v1300
  %1306 = vmatpush1.msra.mxu0 %v1299
  %1307 = vmatprep.subr.mxu0 0.0
  %1308 = vmatpush1.msra.mxu0 0.0
  %1309 = vmatprep.subr.mxu0 0.0
  %1310 = vmatpush1.msra.mxu0 0.0
  %1311 = vmatprep.subr.mxu0 0.0
  %1312 = vmatpush1.msra.mxu0 0.0
  %1313 = vmatprep.subr.mxu0 0.0
  %1314 = vmatpush1.msra.mxu0 0.0
  %1315 = vmatprep.subr.mxu0 0.0
  %1316 = vmatpush1.msra.mxu0 0.0
  %1317 = vmatprep.subr.mxu0 0.0
  %1318 = vmatpush1.msra.mxu0 0.0
  %1319 = vmatprep.subr.mxu0 0.0
  %1320 = vmatpush1.msra.mxu0 0.0
  %1321 = vmatprep.subr.mxu0 0.0
  %1322 = vmatpush1.msra.mxu0 0.0
  %1323 = vmatprep.subr.mxu0 0.0
  %1324 = vmatpush1.msra.mxu0 0.0
  %1325 = vmatprep.subr.mxu0 0.0
  %1326 = vmatpush1.msra.mxu0 0.0
  %1327 = vmatprep.subr.mxu0 0.0
  %1328 = vmatpush1.msra.mxu0 0.0
  %1329 = vmatprep.subr.mxu0 0.0
  %1330 = vmatpush1.msra.mxu0 0.0
  %1331 = vmatprep.subr.mxu0 0.0
  %1332 = vmatpush1.msra.mxu0 0.0
  %1333 = vmatprep.subr.mxu0 0.0
  %1334 = vmatpush1.msra.mxu0 0.0
  %1335 = vmatprep.subr.mxu0 0.0
  %1336 = vmatpush1.msra.mxu0 0.0
  %1337 = vmatprep.subr.mxu0 0.0
  %1338 = vmatpush1.msra.mxu0 0.0
  %1339 = vmatprep.subr.mxu0 0.0
  %1340 = vmatpush1.msra.mxu0 0.0
  %1341 = vmatprep.subr.mxu0 0.0
  %1342 = vmatpush1.msra.mxu0 0.0
  %1343 = vmatprep.subr.mxu0 0.0
  %1344 = vmatpush1.msra.mxu0 0.0
  %1345 = vmatprep.subr.mxu0 0.0
  %1346 = vmatpush1.msra.mxu0 0.0
  %1347 = vmatprep.subr.mxu0 0.0
  %1348 = vmatpush1.msra.mxu0 0.0
  %1349 = vmatprep.subr.mxu0 0.0
  %1350 = vmatpush1.msra.mxu0 0.0
  %1351 = vmatprep.subr.mxu0 0.0
  %1352 = vmatpush1.msra.mxu0 0.0
  %1353 = vmatprep.subr.mxu0 0.0
  %1354 = vmatpush1.msra.mxu0 0.0
  %1355 = vmatprep.subr.mxu0 0.0
  %1356 = vmatpush1.msra.mxu0 0.0
  %1357 = vmatprep.subr.mxu0 0.0
  %1358 = vmatpush1.msra.mxu0 0.0
  %1359 = vmatprep.subr.mxu0 0.0
  %1360 = vmatpush1.msra.mxu0 0.0
  %1361 = vmatprep.subr.mxu0 0.0
  %1362 = vmatpush1.msra.mxu0 0.0
  %1363 = vmatprep.subr.mxu0 0.0
  %1364 = vmatpush1.msra.mxu0 0.0
  %1365 = vmatprep.subr.mxu0 0.0
  %1366 = vmatpush1.msra.mxu0 0.0
  %1367 = vmatprep.subr.mxu0 0.0
  %1368 = vmatpush1.msra.mxu0 0.0
  %1369 = vmatprep.mubr.f32.mxu0 0.0
  %1370 = vmatmul.mubr.f32.gmra.mrb[0].mxu0 %v1303
  %v1371 = vpop.f32.mrb[0].mxu0
  %v1372 = vadd.f32 0.0, %v1371
  %v1373 = vpop.f32.mrb[0].mxu0
  %v1374 = vadd.f32 0.0, %v1373
  %1375 = vdwg.mxu0
  %v1376 = vadd.f32 %v1285, %v1372
  %v1377 = vadd.f32 %v1286, %v1374
  %v1378 = vlaneseq
  %v1379 = vshrl.u32 %v1378, 7
  %v1380 = vsub.s32 1, %v1379
  %v1381 = vrot.slane %v756, %v1380
  %v1382 = vlaneseq
  %v1383 = vshrl.u32 %v1382, 7
  %v1384 = vsub.s32 3, %v1383
  %v1385 = vrot.slane %v756, %v1384
  %v1388 = vlaneseq
  %v1389 = vshrl.u32 %v1388, 7
  %v1390 = vsub.s32 1, %v1389
  %v1391 = vrot.slane %v1381, %v1390
  %v1392 = vlaneseq
  %v1393 = vshrl.u32 %v1392, 7
  %v1394 = vsub.s32 1, %v1393
  %v1395 = vrot.slane %v1385, %v1394
  %1398 = vrot.lane.b32.xlu0 %v1391, 113
  %v1399 = vpop.permute.xlu0 %1398
  %1400 = vrot.lane.b32.xlu0 %v1395, 113
  %v1401 = vpop.permute.xlu0 %1400
  %v1402 = vsel %vm1040, %v1399, %v1401
  %v1406 = vmul.f32 %v789, %v1399
  %v1407 = vmul.f32 %v790, %v1402
  %v1408 = vmul.f32 %v791, %v1401
  %1409 = vrot.lane.b32.xlu0 %v786, 112
  %v1410 = vpop.permute.xlu0 %1409
  %1414 = vrot.lane.b32.xlu0 %v1406, 15
  %v1415 = vpop.permute.xlu0 %1414
  %1416 = vrot.lane.b32.xlu0 %v1407, 15
  %v1417 = vpop.permute.xlu0 %1416
  %1418 = vrot.lane.b32.xlu0 %v1408, 15
  %v1419 = vpop.permute.xlu0 %1418
  %v1420 = vsel %vm1021, %v1415, %v1417
  %v1421 = vsel %vm1021, %v1417, %v1419
  %v1424 = vsel %vm674, %v1410, 0
  %1426 = vmatprep.subr.mxu0 %v1421
  %1427 = vmatpush1.msra.mxu0 %v1420
  %1428 = vmatprep.subr.mxu0 0.0
  %1429 = vmatpush1.msra.mxu0 0.0
  %1430 = vmatprep.subr.mxu0 0.0
  %1431 = vmatpush1.msra.mxu0 0.0
  %1432 = vmatprep.subr.mxu0 0.0
  %1433 = vmatpush1.msra.mxu0 0.0
  %1434 = vmatprep.subr.mxu0 0.0
  %1435 = vmatpush1.msra.mxu0 0.0
  %1436 = vmatprep.subr.mxu0 0.0
  %1437 = vmatpush1.msra.mxu0 0.0
  %1438 = vmatprep.subr.mxu0 0.0
  %1439 = vmatpush1.msra.mxu0 0.0
  %1440 = vmatprep.subr.mxu0 0.0
  %1441 = vmatpush1.msra.mxu0 0.0
  %1442 = vmatprep.subr.mxu0 0.0
  %1443 = vmatpush1.msra.mxu0 0.0
  %1444 = vmatprep.subr.mxu0 0.0
  %1445 = vmatpush1.msra.mxu0 0.0
  %1446 = vmatprep.subr.mxu0 0.0
  %1447 = vmatpush1.msra.mxu0 0.0
  %1448 = vmatprep.subr.mxu0 0.0
  %1449 = vmatpush1.msra.mxu0 0.0
  %1450 = vmatprep.subr.mxu0 0.0
  %1451 = vmatpush1.msra.mxu0 0.0
  %1452 = vmatprep.subr.mxu0 0.0
  %1453 = vmatpush1.msra.mxu0 0.0
  %1454 = vmatprep.subr.mxu0 0.0
  %1455 = vmatpush1.msra.mxu0 0.0
  %1456 = vmatprep.subr.mxu0 0.0
  %1457 = vmatpush1.msra.mxu0 0.0
  %1458 = vmatprep.subr.mxu0 0.0
  %1459 = vmatpush1.msra.mxu0 0.0
  %1460 = vmatprep.subr.mxu0 0.0
  %1461 = vmatpush1.msra.mxu0 0.0
  %1462 = vmatprep.subr.mxu0 0.0
  %1463 = vmatpush1.msra.mxu0 0.0
  %1464 = vmatprep.subr.mxu0 0.0
  %1465 = vmatpush1.msra.mxu0 0.0
  %1466 = vmatprep.subr.mxu0 0.0
  %1467 = vmatpush1.msra.mxu0 0.0
  %1468 = vmatprep.subr.mxu0 0.0
  %1469 = vmatpush1.msra.mxu0 0.0
  %1470 = vmatprep.subr.mxu0 0.0
  %1471 = vmatpush1.msra.mxu0 0.0
  %1472 = vmatprep.subr.mxu0 0.0
  %1473 = vmatpush1.msra.mxu0 0.0
  %1474 = vmatprep.subr.mxu0 0.0
  %1475 = vmatpush1.msra.mxu0 0.0
  %1476 = vmatprep.subr.mxu0 0.0
  %1477 = vmatpush1.msra.mxu0 0.0
  %1478 = vmatprep.subr.mxu0 0.0
  %1479 = vmatpush1.msra.mxu0 0.0
  %1480 = vmatprep.subr.mxu0 0.0
  %1481 = vmatpush1.msra.mxu0 0.0
  %1482 = vmatprep.subr.mxu0 0.0
  %1483 = vmatpush1.msra.mxu0 0.0
  %1484 = vmatprep.subr.mxu0 0.0
  %1485 = vmatpush1.msra.mxu0 0.0
  %1486 = vmatprep.subr.mxu0 0.0
  %1487 = vmatpush1.msra.mxu0 0.0
  %1488 = vmatprep.subr.mxu0 0.0
  %1489 = vmatpush1.msra.mxu0 0.0
  %1490 = vmatprep.mubr.f32.mxu0 0.0
  %1491 = vmatmul.mubr.f32.gmra.mrb[0].mxu0 %v1424
  %v1492 = vpop.f32.mrb[0].mxu0
  %v1493 = vadd.f32 0.0, %v1492
  %v1494 = vpop.f32.mrb[0].mxu0
  %v1495 = vadd.f32 0.0, %v1494
  %1496 = vdwg.mxu0
  %v1497 = vadd.f32 %v1376, %v1493
  %v1498 = vadd.f32 %v1377, %v1495
  %1499 = vrot.lane.b32.xlu0 %v1391, 1
  %v1500 = vpop.permute.xlu0 %1499
  %1501 = vrot.lane.b32.xlu0 %v1395, 1
  %v1502 = vpop.permute.xlu0 %1501
  %v1503 = vsel %vm849, %v1500, %v1502
  %v1507 = vmul.f32 %v1014, %v1500
  %v1508 = vmul.f32 %v1015, %v1503
  %v1509 = vmul.f32 %v1016, %v1502
  %1510 = vrot.lane.b32.xlu0 %v786, 88
  %v1511 = vpop.permute.xlu0 %1510
  %1515 = vrot.lane.b32.xlu0 %v1507, 127
  %v1516 = vpop.permute.xlu0 %1515
  %1517 = vrot.lane.b32.xlu0 %v1508, 127
  %v1518 = vpop.permute.xlu0 %1517
  %1519 = vrot.lane.b32.xlu0 %v1509, 127
  %v1520 = vpop.permute.xlu0 %1519
  %v1521 = vsel %vm829, %v1516, %v1518
  %v1522 = vsel %vm829, %v1518, %v1520
  %v1525 = vsel %vm674, %v1511, 0
  %1527 = vmatprep.subr.mxu0 %v1522
  %1528 = vmatpush1.msra.mxu0 %v1521
  %1529 = vmatprep.subr.mxu0 0.0
  %1530 = vmatpush1.msra.mxu0 0.0
  %1531 = vmatprep.subr.mxu0 0.0
  %1532 = vmatpush1.msra.mxu0 0.0
  %1533 = vmatprep.subr.mxu0 0.0
  %1534 = vmatpush1.msra.mxu0 0.0
  %1535 = vmatprep.subr.mxu0 0.0
  %1536 = vmatpush1.msra.mxu0 0.0
  %1537 = vmatprep.subr.mxu0 0.0
  %1538 = vmatpush1.msra.mxu0 0.0
  %1539 = vmatprep.subr.mxu0 0.0
  %1540 = vmatpush1.msra.mxu0 0.0
  %1541 = vmatprep.subr.mxu0 0.0
  %1542 = vmatpush1.msra.mxu0 0.0
  %1543 = vmatprep.subr.mxu0 0.0
  %1544 = vmatpush1.msra.mxu0 0.0
  %1545 = vmatprep.subr.mxu0 0.0
  %1546 = vmatpush1.msra.mxu0 0.0
  %1547 = vmatprep.subr.mxu0 0.0
  %1548 = vmatpush1.msra.mxu0 0.0
  %1549 = vmatprep.subr.mxu0 0.0
  %1550 = vmatpush1.msra.mxu0 0.0
  %1551 = vmatprep.subr.mxu0 0.0
  %1552 = vmatpush1.msra.mxu0 0.0
  %1553 = vmatprep.subr.mxu0 0.0
  %1554 = vmatpush1.msra.mxu0 0.0
  %1555 = vmatprep.subr.mxu0 0.0
  %1556 = vmatpush1.msra.mxu0 0.0
  %1557 = vmatprep.subr.mxu0 0.0
  %1558 = vmatpush1.msra.mxu0 0.0
  %1559 = vmatprep.subr.mxu0 0.0
  %1560 = vmatpush1.msra.mxu0 0.0
  %1561 = vmatprep.subr.mxu0 0.0
  %1562 = vmatpush1.msra.mxu0 0.0
  %1563 = vmatprep.subr.mxu0 0.0
  %1564 = vmatpush1.msra.mxu0 0.0
  %1565 = vmatprep.subr.mxu0 0.0
  %1566 = vmatpush1.msra.mxu0 0.0
  %1567 = vmatprep.subr.mxu0 0.0
  %1568 = vmatpush1.msra.mxu0 0.0
  %1569 = vmatprep.subr.mxu0 0.0
  %1570 = vmatpush1.msra.mxu0 0.0
  %1571 = vmatprep.subr.mxu0 0.0
  %1572 = vmatpush1.msra.mxu0 0.0
  %1573 = vmatprep.subr.mxu0 0.0
  %1574 = vmatpush1.msra.mxu0 0.0
  %1575 = vmatprep.subr.mxu0 0.0
  %1576 = vmatpush1.msra.mxu0 0.0
  %1577 = vmatprep.subr.mxu0 0.0
  %1578 = vmatpush1.msra.mxu0 0.0
  %1579 = vmatprep.subr.mxu0 0.0
  %1580 = vmatpush1.msra.mxu0 0.0
  %1581 = vmatprep.subr.mxu0 0.0
  %1582 = vmatpush1.msra.mxu0 0.0
  %1583 = vmatprep.subr.mxu0 0.0
  %1584 = vmatpush1.msra.mxu0 0.0
  %1585 = vmatprep.subr.mxu0 0.0
  %1586 = vmatpush1.msra.mxu0 0.0
  %1587 = vmatprep.subr.mxu0 0.0
  %1588 = vmatpush1.msra.mxu0 0.0
  %1589 = vmatprep.subr.mxu0 0.0
  %1590 = vmatpush1.msra.mxu0 0.0
  %1591 = vmatprep.mubr.f32.mxu0 0.0
  %1592 = vmatmul.mubr.f32.gmra.mrb[0].mxu0 %v1525
  %v1593 = vpop.f32.mrb[0].mxu0
  %v1594 = vadd.f32 0.0, %v1593
  %v1595 = vpop.f32.mrb[0].mxu0
  %v1596 = vadd.f32 0.0, %v1595
  %1597 = vdwg.mxu0
  %v1598 = vadd.f32 %v1497, %v1594
  %v1599 = vadd.f32 %v1498, %v1596
  %1600 = vrot.lane.b32.xlu0 %v1391, 17
  %v1601 = vpop.permute.xlu0 %1600
  %1602 = vrot.lane.b32.xlu0 %v1395, 17
  %v1603 = vpop.permute.xlu0 %1602
  %v1604 = vsel %vm936, %v1601, %v1603
  %v1608 = vmul.f32 %v1014, %v1601
  %v1609 = vmul.f32 %v1015, %v1604
  %v1610 = vmul.f32 %v1016, %v1603
  %1611 = vrot.lane.b32.xlu0 %v786, 64
  %v1612 = vpop.permute.xlu0 %1611
  %1616 = vrot.lane.b32.xlu0 %v1608, 111
  %v1617 = vpop.permute.xlu0 %1616
  %1618 = vrot.lane.b32.xlu0 %v1609, 111
  %v1619 = vpop.permute.xlu0 %1618
  %1620 = vrot.lane.b32.xlu0 %v1610, 111
  %v1621 = vpop.permute.xlu0 %1620
  %v1622 = vsel %vm817, %v1617, %v1619
  %v1623 = vsel %vm817, %v1619, %v1621
  %v1626 = vsel %vm674, %v1612, 0
  %1628 = vmatprep.subr.mxu0 %v1623
  %1629 = vmatpush1.msra.mxu0 %v1622
  %1630 = vmatprep.subr.mxu0 0.0
  %1631 = vmatpush1.msra.mxu0 0.0
  %1632 = vmatprep.subr.mxu0 0.0
  %1633 = vmatpush1.msra.mxu0 0.0
  %1634 = vmatprep.subr.mxu0 0.0
  %1635 = vmatpush1.msra.mxu0 0.0
  %1636 = vmatprep.subr.mxu0 0.0
  %1637 = vmatpush1.msra.mxu0 0.0
  %1638 = vmatprep.subr.mxu0 0.0
  %1639 = vmatpush1.msra.mxu0 0.0
  %1640 = vmatprep.subr.mxu0 0.0
  %1641 = vmatpush1.msra.mxu0 0.0
  %1642 = vmatprep.subr.mxu0 0.0
  %1643 = vmatpush1.msra.mxu0 0.0
  %1644 = vmatprep.subr.mxu0 0.0
  %1645 = vmatpush1.msra.mxu0 0.0
  %1646 = vmatprep.subr.mxu0 0.0
  %1647 = vmatpush1.msra.mxu0 0.0
  %1648 = vmatprep.subr.mxu0 0.0
  %1649 = vmatpush1.msra.mxu0 0.0
  %1650 = vmatprep.subr.mxu0 0.0
  %1651 = vmatpush1.msra.mxu0 0.0
  %1652 = vmatprep.subr.mxu0 0.0
  %1653 = vmatpush1.msra.mxu0 0.0
  %1654 = vmatprep.subr.mxu0 0.0
  %1655 = vmatpush1.msra.mxu0 0.0
  %1656 = vmatprep.subr.mxu0 0.0
  %1657 = vmatpush1.msra.mxu0 0.0
  %1658 = vmatprep.subr.mxu0 0.0
  %1659 = vmatpush1.msra.mxu0 0.0
  %1660 = vmatprep.subr.mxu0 0.0
  %1661 = vmatpush1.msra.mxu0 0.0
  %1662 = vmatprep.subr.mxu0 0.0
  %1663 = vmatpush1.msra.mxu0 0.0
  %1664 = vmatprep.subr.mxu0 0.0
  %1665 = vmatpush1.msra.mxu0 0.0
  %1666 = vmatprep.subr.mxu0 0.0
  %1667 = vmatpush1.msra.mxu0 0.0
  %1668 = vmatprep.subr.mxu0 0.0
  %1669 = vmatpush1.msra.mxu0 0.0
  %1670 = vmatprep.subr.mxu0 0.0
  %1671 = vmatpush1.msra.mxu0 0.0
  %1672 = vmatprep.subr.mxu0 0.0
  %1673 = vmatpush1.msra.mxu0 0.0
  %1674 = vmatprep.subr.mxu0 0.0
  %1675 = vmatpush1.msra.mxu0 0.0
  %1676 = vmatprep.subr.mxu0 0.0
  %1677 = vmatpush1.msra.mxu0 0.0
  %1678 = vmatprep.subr.mxu0 0.0
  %1679 = vmatpush1.msra.mxu0 0.0
  %1680 = vmatprep.subr.mxu0 0.0
  %1681 = vmatpush1.msra.mxu0 0.0
  %1682 = vmatprep.subr.mxu0 0.0
  %1683 = vmatpush1.msra.mxu0 0.0
  %1684 = vmatprep.subr.mxu0 0.0
  %1685 = vmatpush1.msra.mxu0 0.0
  %1686 = vmatprep.subr.mxu0 0.0
  %1687 = vmatpush1.msra.mxu0 0.0
  %1688 = vmatprep.subr.mxu0 0.0
  %1689 = vmatpush1.msra.mxu0 0.0
  %1690 = vmatprep.subr.mxu0 0.0
  %1691 = vmatpush1.msra.mxu0 0.0
  %1692 = vmatprep.mubr.f32.mxu0 0.0
  %1693 = vmatmul.mubr.f32.gmra.mrb[0].mxu0 %v1626
  %v1694 = vpop.f32.mrb[0].mxu0
  %v1695 = vadd.f32 0.0, %v1694
  %v1696 = vpop.f32.mrb[0].mxu0
  %v1697 = vadd.f32 0.0, %v1696
  %1698 = vdwg.mxu0
  %v1699 = vadd.f32 %v1598, %v1695
  %v1700 = vadd.f32 %v1599, %v1697
  %1701 = vst [vmem:[#allocation3] sm:$0xff] %v1699
  %1702 = vst [vmem:[#allocation3 + $0x8] sm:$0xff] %v1700
  %v1703 = vld [vmem:[%s7] sm:$0xff]
  %1704 = vrot.lane.b32.xlu0 %v753, 127
  %v1705 = vpop.permute.xlu0 %1704
  %s1706 = vtos %v1705
  %v1707 = vstv %s1706
  %v1709 = vmul.f32 %v1707, %v1703
  %v1710 = vld [vmem:[%s763] sm:$0xff]
  %1711 = vrot.lane.b32.xlu0 %v765, 127
  %v1712 = vpop.permute.xlu0 %1711
  %s1713 = vtos %v1712
  %v1714 = vstv %s1713
  %v1716 = vmul.f32 %v1714, %v1710
  %v1717 = vadd.f32 %v1709, %v1716
  %v1718 = vld [vmem:[%s771] sm:$0xff]
  %1719 = vrot.lane.b32.xlu0 %v773, 127
  %v1720 = vpop.permute.xlu0 %1719
  %s1721 = vtos %v1720
  %v1722 = vstv %s1721
  %v1724 = vmul.f32 %v1722, %v1718
  %v1725 = vadd.f32 %v1717, %v1724
  %v1726 = vld [vmem:[%s779] sm:$0xff]
  %1727 = vrot.lane.b32.xlu0 %v781, 127
  %v1728 = vpop.permute.xlu0 %1727
  %s1729 = vtos %v1728
  %v1730 = vstv %s1729
  %v1732 = vmul.f32 %v1730, %v1726
  %v1733 = vadd.f32 %v1725, %v1732
  %1734 = vst [vmem:[#allocation4 + $0x8] sm:$0xff] %v467
  %1735 = vst [vmem:[#allocation4 + $0x10] sm:$0xff] %v468
  %v1736 = vld [vmem:[#allocation4] sm:$0xff]
  %v1737 = vld [vmem:[#allocation4 + $0x8] sm:$0xff]
  %v1738 = vld [vmem:[#allocation4 + $0x10] sm:$0xff]
  %v1739 = vmul.f32 %v1736, %v814
  %v1740 = vmul.f32 %v1737, %v818
  %v1741 = vmul.f32 %v1738, %v816
  %v1742 = vmul.f32 %v1736, %v826
  %v1743 = vmul.f32 %v1737, %v830
  %v1744 = vmul.f32 %v1738, %v828
  %1746 = vrot.lane.b32.xlu0 %v1733, 104
  %v1747 = vpop.permute.xlu0 %1746
  %1751 = vrot.lane.b32.xlu0 %v1742, 1
  %v1752 = vpop.permute.xlu0 %1751
  %1753 = vrot.lane.b32.xlu0 %v1743, 1
  %v1754 = vpop.permute.xlu0 %1753
  %1755 = vrot.lane.b32.xlu0 %v1744, 1
  %v1756 = vpop.permute.xlu0 %1755
  %v1757 = vsel %vm849, %v1752, %v1754
  %v1758 = vsel %vm849, %v1754, %v1756
  %v1761 = vsel %vm674, %v1747, 0
  %1763 = vmatprep.subr.mxu0 %v1758
  %1764 = vmatpush1.msra.mxu0 %v1757
  %1765 = vmatprep.subr.mxu0 0.0
  %1766 = vmatpush1.msra.mxu0 0.0
  %1767 = vmatprep.subr.mxu0 0.0
  %1768 = vmatpush1.msra.mxu0 0.0
  %1769 = vmatprep.subr.mxu0 0.0
  %1770 = vmatpush1.msra.mxu0 0.0
  %1771 = vmatprep.subr.mxu0 0.0
  %1772 = vmatpush1.msra.mxu0 0.0
  %1773 = vmatprep.subr.mxu0 0.0
  %1774 = vmatpush1.msra.mxu0 0.0
  %1775 = vmatprep.subr.mxu0 0.0
  %1776 = vmatpush1.msra.mxu0 0.0
  %1777 = vmatprep.subr.mxu0 0.0
  %1778 = vmatpush1.msra.mxu0 0.0
  %1779 = vmatprep.subr.mxu0 0.0
  %1780 = vmatpush1.msra.mxu0 0.0
  %1781 = vmatprep.subr.mxu0 0.0
  %1782 = vmatpush1.msra.mxu0 0.0
  %1783 = vmatprep.subr.mxu0 0.0
  %1784 = vmatpush1.msra.mxu0 0.0
  %1785 = vmatprep.subr.mxu0 0.0
  %1786 = vmatpush1.msra.mxu0 0.0
  %1787 = vmatprep.subr.mxu0 0.0
  %1788 = vmatpush1.msra.mxu0 0.0
  %1789 = vmatprep.subr.mxu0 0.0
  %1790 = vmatpush1.msra.mxu0 0.0
  %1791 = vmatprep.subr.mxu0 0.0
  %1792 = vmatpush1.msra.mxu0 0.0
  %1793 = vmatprep.subr.mxu0 0.0
  %1794 = vmatpush1.msra.mxu0 0.0
  %1795 = vmatprep.subr.mxu0 0.0
  %1796 = vmatpush1.msra.mxu0 0.0
  %1797 = vmatprep.subr.mxu0 0.0
  %1798 = vmatpush1.msra.mxu0 0.0
  %1799 = vmatprep.subr.mxu0 0.0
  %1800 = vmatpush1.msra.mxu0 0.0
  %1801 = vmatprep.subr.mxu0 0.0
  %1802 = vmatpush1.msra.mxu0 0.0
  %1803 = vmatprep.subr.mxu0 0.0
  %1804 = vmatpush1.msra.mxu0 0.0
  %1805 = vmatprep.subr.mxu0 0.0
  %1806 = vmatpush1.msra.mxu0 0.0
  %1807 = vmatprep.subr.mxu0 0.0
  %1808 = vmatpush1.msra.mxu0 0.0
  %1809 = vmatprep.subr.mxu0 0.0
  %1810 = vmatpush1.msra.mxu0 0.0
  %1811 = vmatprep.subr.mxu0 0.0
  %1812 = vmatpush1.msra.mxu0 0.0
  %1813 = vmatprep.subr.mxu0 0.0
  %1814 = vmatpush1.msra.mxu0 0.0
  %1815 = vmatprep.subr.mxu0 0.0
  %1816 = vmatpush1.msra.mxu0 0.0
  %1817 = vmatprep.subr.mxu0 0.0
  %1818 = vmatpush1.msra.mxu0 0.0
  %1819 = vmatprep.subr.mxu0 0.0
  %1820 = vmatpush1.msra.mxu0 0.0
  %1821 = vmatprep.subr.mxu0 0.0
  %1822 = vmatpush1.msra.mxu0 0.0
  %1823 = vmatprep.subr.mxu0 0.0
  %1824 = vmatpush1.msra.mxu0 0.0
  %1825 = vmatprep.subr.mxu0 0.0
  %1826 = vmatpush1.msra.mxu0 0.0
  %1827 = vmatprep.mubr.f32.mxu0 0.0
  %1828 = vmatmul.mubr.f32.gmra.mrb[0].mxu0 %v1761
  %v1829 = vpop.f32.mrb[0].mxu0
  %v1830 = vadd.f32 0.0, %v1829
  %v1831 = vpop.f32.mrb[0].mxu0
  %v1832 = vadd.f32 0.0, %v1831
  %1833 = vdwg.mxu0
  %1837 = vrot.lane.b32.xlu0 %v1739, 17
  %v1838 = vpop.permute.xlu0 %1837
  %1839 = vrot.lane.b32.xlu0 %v1740, 17
  %v1840 = vpop.permute.xlu0 %1839
  %1841 = vrot.lane.b32.xlu0 %v1741, 17
  %v1842 = vpop.permute.xlu0 %1841
  %v1843 = vsel %vm936, %v1838, %v1840
  %v1844 = vsel %vm936, %v1840, %v1842
  %v1847 = vsel %vm674, %v1733, 0
  %1849 = vmatprep.subr.mxu0 %v1844
  %1850 = vmatpush1.msra.mxu0 %v1843
  %1851 = vmatprep.subr.mxu0 0.0
  %1852 = vmatpush1.msra.mxu0 0.0
  %1853 = vmatprep.subr.mxu0 0.0
  %1854 = vmatpush1.msra.mxu0 0.0
  %1855 = vmatprep.subr.mxu0 0.0
  %1856 = vmatpush1.msra.mxu0 0.0
  %1857 = vmatprep.subr.mxu0 0.0
  %1858 = vmatpush1.msra.mxu0 0.0
  %1859 = vmatprep.subr.mxu0 0.0
  %1860 = vmatpush1.msra.mxu0 0.0
  %1861 = vmatprep.subr.mxu0 0.0
  %1862 = vmatpush1.msra.mxu0 0.0
  %1863 = vmatprep.subr.mxu0 0.0
  %1864 = vmatpush1.msra.mxu0 0.0
  %1865 = vmatprep.subr.mxu0 0.0
  %1866 = vmatpush1.msra.mxu0 0.0
  %1867 = vmatprep.subr.mxu0 0.0
  %1868 = vmatpush1.msra.mxu0 0.0
  %1869 = vmatprep.subr.mxu0 0.0
  %1870 = vmatpush1.msra.mxu0 0.0
  %1871 = vmatprep.subr.mxu0 0.0
  %1872 = vmatpush1.msra.mxu0 0.0
  %1873 = vmatprep.subr.mxu0 0.0
  %1874 = vmatpush1.msra.mxu0 0.0
  %1875 = vmatprep.subr.mxu0 0.0
  %1876 = vmatpush1.msra.mxu0 0.0
  %1877 = vmatprep.subr.mxu0 0.0
  %1878 = vmatpush1.msra.mxu0 0.0
  %1879 = vmatprep.subr.mxu0 0.0
  %1880 = vmatpush1.msra.mxu0 0.0
  %1881 = vmatprep.subr.mxu0 0.0
  %1882 = vmatpush1.msra.mxu0 0.0
  %1883 = vmatprep.subr.mxu0 0.0
  %1884 = vmatpush1.msra.mxu0 0.0
  %1885 = vmatprep.subr.mxu0 0.0
  %1886 = vmatpush1.msra.mxu0 0.0
  %1887 = vmatprep.subr.mxu0 0.0
  %1888 = vmatpush1.msra.mxu0 0.0
  %1889 = vmatprep.subr.mxu0 0.0
  %1890 = vmatpush1.msra.mxu0 0.0
  %1891 = vmatprep.subr.mxu0 0.0
  %1892 = vmatpush1.msra.mxu0 0.0
  %1893 = vmatprep.subr.mxu0 0.0
  %1894 = vmatpush1.msra.mxu0 0.0
  %1895 = vmatprep.subr.mxu0 0.0
  %1896 = vmatpush1.msra.mxu0 0.0
  %1897 = vmatprep.subr.mxu0 0.0
  %1898 = vmatpush1.msra.mxu0 0.0
  %1899 = vmatprep.subr.mxu0 0.0
  %1900 = vmatpush1.msra.mxu0 0.0
  %1901 = vmatprep.subr.mxu0 0.0
  %1902 = vmatpush1.msra.mxu0 0.0
  %1903 = vmatprep.subr.mxu0 0.0
  %1904 = vmatpush1.msra.mxu0 0.0
  %1905 = vmatprep.subr.mxu0 0.0
  %1906 = vmatpush1.msra.mxu0 0.0
  %1907 = vmatprep.subr.mxu0 0.0
  %1908 = vmatpush1.msra.mxu0 0.0
  %1909 = vmatprep.subr.mxu0 0.0
  %1910 = vmatpush1.msra.mxu0 0.0
  %1911 = vmatprep.subr.mxu0 0.0
  %1912 = vmatpush1.msra.mxu0 0.0
  %1913 = vmatprep.mubr.f32.mxu0 0.0
  %1914 = vmatmul.mubr.f32.gmra.mrb[0].mxu0 %v1847
  %v1915 = vpop.f32.mrb[0].mxu0
  %v1916 = vadd.f32 %v1830, %v1915
  %v1917 = vpop.f32.mrb[0].mxu0
  %v1918 = vadd.f32 %v1832, %v1917
  %1919 = vdwg.mxu0
  %v1920 = vld [vmem:[#allocation4 + $0x8] sm:$0xff]
  %v1921 = vld [vmem:[#allocation4 + $0x10] sm:$0xff]
  %v1922 = vld [vmem:[#allocation4 + $0x18] sm:$0xff]
  %v1923 = vmul.f32 %v1920, %v1018
  %v1924 = vmul.f32 %v1921, %v1022
  %v1925 = vmul.f32 %v1922, %v1020
  %1926 = vrot.lane.b32.xlu0 %v1733, 80
  %v1927 = vpop.permute.xlu0 %1926
  %1931 = vrot.lane.b32.xlu0 %v1923, 113
  %v1932 = vpop.permute.xlu0 %1931
  %1933 = vrot.lane.b32.xlu0 %v1924, 113
  %v1934 = vpop.permute.xlu0 %1933
  %1935 = vrot.lane.b32.xlu0 %v1925, 113
  %v1936 = vpop.permute.xlu0 %1935
  %v1937 = vsel %vm1040, %v1932, %v1934
  %v1938 = vsel %vm1040, %v1934, %v1936
  %v1941 = vsel %vm674, %v1927, 0
  %1943 = vmatprep.subr.mxu0 %v1938
  %1944 = vmatpush1.msra.mxu0 %v1937
  %1945 = vmatprep.subr.mxu0 0.0
  %1946 = vmatpush1.msra.mxu0 0.0
  %1947 = vmatprep.subr.mxu0 0.0
  %1948 = vmatpush1.msra.mxu0 0.0
  %1949 = vmatprep.subr.mxu0 0.0
  %1950 = vmatpush1.msra.mxu0 0.0
  %1951 = vmatprep.subr.mxu0 0.0
  %1952 = vmatpush1.msra.mxu0 0.0
  %1953 = vmatprep.subr.mxu0 0.0
  %1954 = vmatpush1.msra.mxu0 0.0
  %1955 = vmatprep.subr.mxu0 0.0
  %1956 = vmatpush1.msra.mxu0 0.0
  %1957 = vmatprep.subr.mxu0 0.0
  %1958 = vmatpush1.msra.mxu0 0.0
  %1959 = vmatprep.subr.mxu0 0.0
  %1960 = vmatpush1.msra.mxu0 0.0
  %1961 = vmatprep.subr.mxu0 0.0
  %1962 = vmatpush1.msra.mxu0 0.0
  %1963 = vmatprep.subr.mxu0 0.0
  %1964 = vmatpush1.msra.mxu0 0.0
  %1965 = vmatprep.subr.mxu0 0.0
  %1966 = vmatpush1.msra.mxu0 0.0
  %1967 = vmatprep.subr.mxu0 0.0
  %1968 = vmatpush1.msra.mxu0 0.0
  %1969 = vmatprep.subr.mxu0 0.0
  %1970 = vmatpush1.msra.mxu0 0.0
  %1971 = vmatprep.subr.mxu0 0.0
  %1972 = vmatpush1.msra.mxu0 0.0
  %1973 = vmatprep.subr.mxu0 0.0
  %1974 = vmatpush1.msra.mxu0 0.0
  %1975 = vmatprep.subr.mxu0 0.0
  %1976 = vmatpush1.msra.mxu0 0.0
  %1977 = vmatprep.subr.mxu0 0.0
  %1978 = vmatpush1.msra.mxu0 0.0
  %1979 = vmatprep.subr.mxu0 0.0
  %1980 = vmatpush1.msra.mxu0 0.0
  %1981 = vmatprep.subr.mxu0 0.0
  %1982 = vmatpush1.msra.mxu0 0.0
  %1983 = vmatprep.subr.mxu0 0.0
  %1984 = vmatpush1.msra.mxu0 0.0
  %1985 = vmatprep.subr.mxu0 0.0
  %1986 = vmatpush1.msra.mxu0 0.0
  %1987 = vmatprep.subr.mxu0 0.0
  %1988 = vmatpush1.msra.mxu0 0.0
  %1989 = vmatprep.subr.mxu0 0.0
  %1990 = vmatpush1.msra.mxu0 0.0
  %1991 = vmatprep.subr.mxu0 0.0
  %1992 = vmatpush1.msra.mxu0 0.0
  %1993 = vmatprep.subr.mxu0 0.0
  %1994 = vmatpush1.msra.mxu0 0.0
  %1995 = vmatprep.subr.mxu0 0.0
  %1996 = vmatpush1.msra.mxu0 0.0
  %1997 = vmatprep.subr.mxu0 0.0
  %1998 = vmatpush1.msra.mxu0 0.0
  %1999 = vmatprep.subr.mxu0 0.0
  %2000 = vmatpush1.msra.mxu0 0.0
  %2001 = vmatprep.subr.mxu0 0.0
  %2002 = vmatpush1.msra.mxu0 0.0
  %2003 = vmatprep.subr.mxu0 0.0
  %2004 = vmatpush1.msra.mxu0 0.0
  %2005 = vmatprep.subr.mxu0 0.0
  %2006 = vmatpush1.msra.mxu0 0.0
  %2007 = vmatprep.mubr.f32.mxu0 0.0
  %2008 = vmatmul.mubr.f32.gmra.mrb[0].mxu0 %v1941
  %v2009 = vpop.f32.mrb[0].mxu0
  %v2010 = vadd.f32 0.0, %v2009
  %v2011 = vpop.f32.mrb[0].mxu0
  %v2012 = vadd.f32 0.0, %v2011
  %2013 = vdwg.mxu0
  %v2014 = vadd.f32 %v1916, %v2010
  %v2015 = vadd.f32 %v1918, %v2012
  %2016 = vrot.lane.b32.xlu0 %v1733, 120
  %v2017 = vpop.permute.xlu0 %2016
  %2021 = vrot.lane.b32.xlu0 %v1736, 16
  %v2022 = vpop.permute.xlu0 %2021
  %2023 = vrot.lane.b32.xlu0 %v1737, 16
  %v2024 = vpop.permute.xlu0 %2023
  %2025 = vrot.lane.b32.xlu0 %v1738, 16
  %v2026 = vpop.permute.xlu0 %2025
  %v2027 = vsel %vm273, %v2022, %v2024
  %v2028 = vsel %vm273, %v2024, %v2026
  %v2031 = vsel %vm674, %v2017, 0
  %2033 = vmatprep.subr.mxu0 %v2028
  %2034 = vmatpush1.msra.mxu0 %v2027
  %2035 = vmatprep.subr.mxu0 0.0
  %2036 = vmatpush1.msra.mxu0 0.0
  %2037 = vmatprep.subr.mxu0 0.0
  %2038 = vmatpush1.msra.mxu0 0.0
  %2039 = vmatprep.subr.mxu0 0.0
  %2040 = vmatpush1.msra.mxu0 0.0
  %2041 = vmatprep.subr.mxu0 0.0
  %2042 = vmatpush1.msra.mxu0 0.0
  %2043 = vmatprep.subr.mxu0 0.0
  %2044 = vmatpush1.msra.mxu0 0.0
  %2045 = vmatprep.subr.mxu0 0.0
  %2046 = vmatpush1.msra.mxu0 0.0
  %2047 = vmatprep.subr.mxu0 0.0
  %2048 = vmatpush1.msra.mxu0 0.0
  %2049 = vmatprep.subr.mxu0 0.0
  %2050 = vmatpush1.msra.mxu0 0.0
  %2051 = vmatprep.subr.mxu0 0.0
  %2052 = vmatpush1.msra.mxu0 0.0
  %2053 = vmatprep.subr.mxu0 0.0
  %2054 = vmatpush1.msra.mxu0 0.0
  %2055 = vmatprep.subr.mxu0 0.0
  %2056 = vmatpush1.msra.mxu0 0.0
  %2057 = vmatprep.subr.mxu0 0.0
  %2058 = vmatpush1.msra.mxu0 0.0
  %2059 = vmatprep.subr.mxu0 0.0
  %2060 = vmatpush1.msra.mxu0 0.0
  %2061 = vmatprep.subr.mxu0 0.0
  %2062 = vmatpush1.msra.mxu0 0.0
  %2063 = vmatprep.subr.mxu0 0.0
  %2064 = vmatpush1.msra.mxu0 0.0
  %2065 = vmatprep.subr.mxu0 0.0
  %2066 = vmatpush1.msra.mxu0 0.0
  %2067 = vmatprep.subr.mxu0 0.0
  %2068 = vmatpush1.msra.mxu0 0.0
  %2069 = vmatprep.subr.mxu0 0.0
  %2070 = vmatpush1.msra.mxu0 0.0
  %2071 = vmatprep.subr.mxu0 0.0
  %2072 = vmatpush1.msra.mxu0 0.0
  %2073 = vmatprep.subr.mxu0 0.0
  %2074 = vmatpush1.msra.mxu0 0.0
  %2075 = vmatprep.subr.mxu0 0.0
  %2076 = vmatpush1.msra.mxu0 0.0
  %2077 = vmatprep.subr.mxu0 0.0
  %2078 = vmatpush1.msra.mxu0 0.0
  %2079 = vmatprep.subr.mxu0 0.0
  %2080 = vmatpush1.msra.mxu0 0.0
  %2081 = vmatprep.subr.mxu0 0.0
  %2082 = vmatpush1.msra.mxu0 0.0
  %2083 = vmatprep.subr.mxu0 0.0
  %2084 = vmatpush1.msra.mxu0 0.0
  %2085 = vmatprep.subr.mxu0 0.0
  %2086 = vmatpush1.msra.mxu0 0.0
  %2087 = vmatprep.subr.mxu0 0.0
  %2088 = vmatpush1.msra.mxu0 0.0
  %2089 = vmatprep.subr.mxu0 0.0
  %2090 = vmatpush1.msra.mxu0 0.0
  %2091 = vmatprep.subr.mxu0 0.0
  %2092 = vmatpush1.msra.mxu0 0.0
  %2093 = vmatprep.subr.mxu0 0.0
  %2094 = vmatpush1.msra.mxu0 0.0
  %2095 = vmatprep.subr.mxu0 0.0
  %2096 = vmatpush1.msra.mxu0 0.0
  %2097 = vmatprep.mubr.f32.mxu0 0.0
  %2098 = vmatmul.mubr.f32.gmra.mrb[0].mxu0 %v2031
  %v2099 = vpop.f32.mrb[0].mxu0
  %v2100 = vadd.f32 0.0, %v2099
  %v2101 = vpop.f32.mrb[0].mxu0
  %v2102 = vadd.f32 0.0, %v2101
  %2103 = vdwg.mxu0
  %v2104 = vadd.f32 %v2014, %v2100
  %v2105 = vadd.f32 %v2015, %v2102
  %2106 = vrot.lane.b32.xlu0 %v1733, 96
  %v2107 = vpop.permute.xlu0 %2106
  %v2108 = vsel %vm674, %v2107, 0
  %2110 = vmatprep.subr.mxu0 %v1738
  %2111 = vmatpush1.msra.mxu0 %v1737
  %2112 = vmatprep.subr.mxu0 0.0
  %2113 = vmatpush1.msra.mxu0 0.0
  %2114 = vmatprep.subr.mxu0 0.0
  %2115 = vmatpush1.msra.mxu0 0.0
  %2116 = vmatprep.subr.mxu0 0.0
  %2117 = vmatpush1.msra.mxu0 0.0
  %2118 = vmatprep.subr.mxu0 0.0
  %2119 = vmatpush1.msra.mxu0 0.0
  %2120 = vmatprep.subr.mxu0 0.0
  %2121 = vmatpush1.msra.mxu0 0.0
  %2122 = vmatprep.subr.mxu0 0.0
  %2123 = vmatpush1.msra.mxu0 0.0
  %2124 = vmatprep.subr.mxu0 0.0
  %2125 = vmatpush1.msra.mxu0 0.0
  %2126 = vmatprep.subr.mxu0 0.0
  %2127 = vmatpush1.msra.mxu0 0.0
  %2128 = vmatprep.subr.mxu0 0.0
  %2129 = vmatpush1.msra.mxu0 0.0
  %2130 = vmatprep.subr.mxu0 0.0
  %2131 = vmatpush1.msra.mxu0 0.0
  %2132 = vmatprep.subr.mxu0 0.0
  %2133 = vmatpush1.msra.mxu0 0.0
  %2134 = vmatprep.subr.mxu0 0.0
  %2135 = vmatpush1.msra.mxu0 0.0
  %2136 = vmatprep.subr.mxu0 0.0
  %2137 = vmatpush1.msra.mxu0 0.0
  %2138 = vmatprep.subr.mxu0 0.0
  %2139 = vmatpush1.msra.mxu0 0.0
  %2140 = vmatprep.subr.mxu0 0.0
  %2141 = vmatpush1.msra.mxu0 0.0
  %2142 = vmatprep.subr.mxu0 0.0
  %2143 = vmatpush1.msra.mxu0 0.0
  %2144 = vmatprep.subr.mxu0 0.0
  %2145 = vmatpush1.msra.mxu0 0.0
  %2146 = vmatprep.subr.mxu0 0.0
  %2147 = vmatpush1.msra.mxu0 0.0
  %2148 = vmatprep.subr.mxu0 0.0
  %2149 = vmatpush1.msra.mxu0 0.0
  %2150 = vmatprep.subr.mxu0 0.0
  %2151 = vmatpush1.msra.mxu0 0.0
  %2152 = vmatprep.subr.mxu0 0.0
  %2153 = vmatpush1.msra.mxu0 0.0
  %2154 = vmatprep.subr.mxu0 0.0
  %2155 = vmatpush1.msra.mxu0 0.0
  %2156 = vmatprep.subr.mxu0 0.0
  %2157 = vmatpush1.msra.mxu0 0.0
  %2158 = vmatprep.subr.mxu0 0.0
  %2159 = vmatpush1.msra.mxu0 0.0
  %2160 = vmatprep.subr.mxu0 0.0
  %2161 = vmatpush1.msra.mxu0 0.0
  %2162 = vmatprep.subr.mxu0 0.0
  %2163 = vmatpush1.msra.mxu0 0.0
  %2164 = vmatprep.subr.mxu0 0.0
  %2165 = vmatpush1.msra.mxu0 0.0
  %2166 = vmatprep.subr.mxu0 0.0
  %2167 = vmatpush1.msra.mxu0 0.0
  %2168 = vmatprep.subr.mxu0 0.0
  %2169 = vmatpush1.msra.mxu0 0.0
  %2170 = vmatprep.subr.mxu0 0.0
  %2171 = vmatpush1.msra.mxu0 0.0
  %2172 = vmatprep.subr.mxu0 0.0
  %2173 = vmatpush1.msra.mxu0 0.0
  %2174 = vmatprep.mubr.f32.mxu0 0.0
  %2175 = vmatmul.mubr.f32.gmra.mrb[0].mxu0 %v2108
  %v2176 = vpop.f32.mrb[0].mxu0
  %v2177 = vadd.f32 0.0, %v2176
  %v2178 = vpop.f32.mrb[0].mxu0
  %v2179 = vadd.f32 0.0, %v2178
  %2180 = vdwg.mxu0
  %v2181 = vadd.f32 %v2104, %v2177
  %v2182 = vadd.f32 %v2105, %v2179
  %2183 = vrot.lane.b32.xlu0 %v1733, 72
  %v2184 = vpop.permute.xlu0 %2183
  %2188 = vrot.lane.b32.xlu0 %v1920, 112
  %v2189 = vpop.permute.xlu0 %2188
  %2190 = vrot.lane.b32.xlu0 %v1921, 112
  %v2191 = vpop.permute.xlu0 %2190
  %2192 = vrot.lane.b32.xlu0 %v1922, 112
  %v2193 = vpop.permute.xlu0 %2192
  %v2194 = vsel %vm1298, %v2189, %v2191
  %v2195 = vsel %vm1298, %v2191, %v2193
  %v2198 = vsel %vm674, %v2184, 0
  %2200 = vmatprep.subr.mxu0 %v2195
  %2201 = vmatpush1.msra.mxu0 %v2194
  %2202 = vmatprep.subr.mxu0 0.0
  %2203 = vmatpush1.msra.mxu0 0.0
  %2204 = vmatprep.subr.mxu0 0.0
  %2205 = vmatpush1.msra.mxu0 0.0
  %2206 = vmatprep.subr.mxu0 0.0
  %2207 = vmatpush1.msra.mxu0 0.0
  %2208 = vmatprep.subr.mxu0 0.0
  %2209 = vmatpush1.msra.mxu0 0.0
  %2210 = vmatprep.subr.mxu0 0.0
  %2211 = vmatpush1.msra.mxu0 0.0
  %2212 = vmatprep.subr.mxu0 0.0
  %2213 = vmatpush1.msra.mxu0 0.0
  %2214 = vmatprep.subr.mxu0 0.0
  %2215 = vmatpush1.msra.mxu0 0.0
  %2216 = vmatprep.subr.mxu0 0.0
  %2217 = vmatpush1.msra.mxu0 0.0
  %2218 = vmatprep.subr.mxu0 0.0
  %2219 = vmatpush1.msra.mxu0 0.0
  %2220 = vmatprep.subr.mxu0 0.0
  %2221 = vmatpush1.msra.mxu0 0.0
  %2222 = vmatprep.subr.mxu0 0.0
  %2223 = vmatpush1.msra.mxu0 0.0
  %2224 = vmatprep.subr.mxu0 0.0
  %2225 = vmatpush1.msra.mxu0 0.0
  %2226 = vmatprep.subr.mxu0 0.0
  %2227 = vmatpush1.msra.mxu0 0.0
  %2228 = vmatprep.subr.mxu0 0.0
  %2229 = vmatpush1.msra.mxu0 0.0
  %2230 = vmatprep.subr.mxu0 0.0
  %2231 = vmatpush1.msra.mxu0 0.0
  %2232 = vmatprep.subr.mxu0 0.0
  %2233 = vmatpush1.msra.mxu0 0.0
  %2234 = vmatprep.subr.mxu0 0.0
  %2235 = vmatpush1.msra.mxu0 0.0
  %2236 = vmatprep.subr.mxu0 0.0
  %2237 = vmatpush1.msra.mxu0 0.0
  %2238 = vmatprep.subr.mxu0 0.0
  %2239 = vmatpush1.msra.mxu0 0.0
  %2240 = vmatprep.subr.mxu0 0.0
  %2241 = vmatpush1.msra.mxu0 0.0
  %2242 = vmatprep.subr.mxu0 0.0
  %2243 = vmatpush1.msra.mxu0 0.0
  %2244 = vmatprep.subr.mxu0 0.0
  %2245 = vmatpush1.msra.mxu0 0.0
  %2246 = vmatprep.subr.mxu0 0.0
  %2247 = vmatpush1.msra.mxu0 0.0
  %2248 = vmatprep.subr.mxu0 0.0
  %2249 = vmatpush1.msra.mxu0 0.0
  %2250 = vmatprep.subr.mxu0 0.0
  %2251 = vmatpush1.msra.mxu0 0.0
  %2252 = vmatprep.subr.mxu0 0.0
  %2253 = vmatpush1.msra.mxu0 0.0
  %2254 = vmatprep.subr.mxu0 0.0
  %2255 = vmatpush1.msra.mxu0 0.0
  %2256 = vmatprep.subr.mxu0 0.0
  %2257 = vmatpush1.msra.mxu0 0.0
  %2258 = vmatprep.subr.mxu0 0.0
  %2259 = vmatpush1.msra.mxu0 0.0
  %2260 = vmatprep.subr.mxu0 0.0
  %2261 = vmatpush1.msra.mxu0 0.0
  %2262 = vmatprep.subr.mxu0 0.0
  %2263 = vmatpush1.msra.mxu0 0.0
  %2264 = vmatprep.mubr.f32.mxu0 0.0
  %2265 = vmatmul.mubr.f32.gmra.mrb[0].mxu0 %v2198
  %v2266 = vpop.f32.mrb[0].mxu0
  %v2267 = vadd.f32 0.0, %v2266
  %v2268 = vpop.f32.mrb[0].mxu0
  %v2269 = vadd.f32 0.0, %v2268
  %2270 = vdwg.mxu0
  %v2271 = vadd.f32 %v2181, %v2267
  %v2272 = vadd.f32 %v2182, %v2269
  %v2273 = vmul.f32 %v1736, %v1399
  %v2274 = vmul.f32 %v1737, %v1402
  %v2275 = vmul.f32 %v1738, %v1401
  %2276 = vrot.lane.b32.xlu0 %v1733, 112
  %v2277 = vpop.permute.xlu0 %2276
  %2281 = vrot.lane.b32.xlu0 %v2273, 15
  %v2282 = vpop.permute.xlu0 %2281
  %2283 = vrot.lane.b32.xlu0 %v2274, 15
  %v2284 = vpop.permute.xlu0 %2283
  %2285 = vrot.lane.b32.xlu0 %v2275, 15
  %v2286 = vpop.permute.xlu0 %2285
  %v2287 = vsel %vm1021, %v2282, %v2284
  %v2288 = vsel %vm1021, %v2284, %v2286
  %v2291 = vsel %vm674, %v2277, 0
  %2293 = vmatprep.subr.mxu0 %v2288
  %2294 = vmatpush1.msra.mxu0 %v2287
  %2295 = vmatprep.subr.mxu0 0.0
  %2296 = vmatpush1.msra.mxu0 0.0
  %2297 = vmatprep.subr.mxu0 0.0
  %2298 = vmatpush1.msra.mxu0 0.0
  %2299 = vmatprep.subr.mxu0 0.0
  %2300 = vmatpush1.msra.mxu0 0.0
  %2301 = vmatprep.subr.mxu0 0.0
  %2302 = vmatpush1.msra.mxu0 0.0
  %2303 = vmatprep.subr.mxu0 0.0
  %2304 = vmatpush1.msra.mxu0 0.0
  %2305 = vmatprep.subr.mxu0 0.0
  %2306 = vmatpush1.msra.mxu0 0.0
  %2307 = vmatprep.subr.mxu0 0.0
  %2308 = vmatpush1.msra.mxu0 0.0
  %2309 = vmatprep.subr.mxu0 0.0
  %2310 = vmatpush1.msra.mxu0 0.0
  %2311 = vmatprep.subr.mxu0 0.0
  %2312 = vmatpush1.msra.mxu0 0.0
  %2313 = vmatprep.subr.mxu0 0.0
  %2314 = vmatpush1.msra.mxu0 0.0
  %2315 = vmatprep.subr.mxu0 0.0
  %2316 = vmatpush1.msra.mxu0 0.0
  %2317 = vmatprep.subr.mxu0 0.0
  %2318 = vmatpush1.msra.mxu0 0.0
  %2319 = vmatprep.subr.mxu0 0.0
  %2320 = vmatpush1.msra.mxu0 0.0
  %2321 = vmatprep.subr.mxu0 0.0
  %2322 = vmatpush1.msra.mxu0 0.0
  %2323 = vmatprep.subr.mxu0 0.0
  %2324 = vmatpush1.msra.mxu0 0.0
  %2325 = vmatprep.subr.mxu0 0.0
  %2326 = vmatpush1.msra.mxu0 0.0
  %2327 = vmatprep.subr.mxu0 0.0
  %2328 = vmatpush1.msra.mxu0 0.0
  %2329 = vmatprep.subr.mxu0 0.0
  %2330 = vmatpush1.msra.mxu0 0.0
  %2331 = vmatprep.subr.mxu0 0.0
  %2332 = vmatpush1.msra.mxu0 0.0
  %2333 = vmatprep.subr.mxu0 0.0
  %2334 = vmatpush1.msra.mxu0 0.0
  %2335 = vmatprep.subr.mxu0 0.0
  %2336 = vmatpush1.msra.mxu0 0.0
  %2337 = vmatprep.subr.mxu0 0.0
  %2338 = vmatpush1.msra.mxu0 0.0
  %2339 = vmatprep.subr.mxu0 0.0
  %2340 = vmatpush1.msra.mxu0 0.0
  %2341 = vmatprep.subr.mxu0 0.0
  %2342 = vmatpush1.msra.mxu0 0.0
  %2343 = vmatprep.subr.mxu0 0.0
  %2344 = vmatpush1.msra.mxu0 0.0
  %2345 = vmatprep.subr.mxu0 0.0
  %2346 = vmatpush1.msra.mxu0 0.0
  %2347 = vmatprep.subr.mxu0 0.0
  %2348 = vmatpush1.msra.mxu0 0.0
  %2349 = vmatprep.subr.mxu0 0.0
  %2350 = vmatpush1.msra.mxu0 0.0
  %2351 = vmatprep.subr.mxu0 0.0
  %2352 = vmatpush1.msra.mxu0 0.0
  %2353 = vmatprep.subr.mxu0 0.0
  %2354 = vmatpush1.msra.mxu0 0.0
  %2355 = vmatprep.subr.mxu0 0.0
  %2356 = vmatpush1.msra.mxu0 0.0
  %2357 = vmatprep.mubr.f32.mxu0 0.0
  %2358 = vmatmul.mubr.f32.gmra.mrb[0].mxu0 %v2291
  %v2359 = vpop.f32.mrb[0].mxu0
  %v2360 = vadd.f32 0.0, %v2359
  %v2361 = vpop.f32.mrb[0].mxu0
  %v2362 = vadd.f32 0.0, %v2361
  %2363 = vdwg.mxu0
  %v2364 = vadd.f32 %v2271, %v2360
  %v2365 = vadd.f32 %v2272, %v2362
  %v2366 = vmul.f32 %v1920, %v1500
  %v2367 = vmul.f32 %v1921, %v1503
  %v2368 = vmul.f32 %v1922, %v1502
  %2369 = vrot.lane.b32.xlu0 %v1733, 88
  %v2370 = vpop.permute.xlu0 %2369
  %2374 = vrot.lane.b32.xlu0 %v2366, 127
  %v2375 = vpop.permute.xlu0 %2374
  %2376 = vrot.lane.b32.xlu0 %v2367, 127
  %v2377 = vpop.permute.xlu0 %2376
  %2378 = vrot.lane.b32.xlu0 %v2368, 127
  %v2379 = vpop.permute.xlu0 %2378
  %v2380 = vsel %vm829, %v2375, %v2377
  %v2381 = vsel %vm829, %v2377, %v2379
  %v2384 = vsel %vm674, %v2370, 0
  %2386 = vmatprep.subr.mxu0 %v2381
  %2387 = vmatpush1.msra.mxu0 %v2380
  %2388 = vmatprep.subr.mxu0 0.0
  %2389 = vmatpush1.msra.mxu0 0.0
  %2390 = vmatprep.subr.mxu0 0.0
  %2391 = vmatpush1.msra.mxu0 0.0
  %2392 = vmatprep.subr.mxu0 0.0
  %2393 = vmatpush1.msra.mxu0 0.0
  %2394 = vmatprep.subr.mxu0 0.0
  %2395 = vmatpush1.msra.mxu0 0.0
  %2396 = vmatprep.subr.mxu0 0.0
  %2397 = vmatpush1.msra.mxu0 0.0
  %2398 = vmatprep.subr.mxu0 0.0
  %2399 = vmatpush1.msra.mxu0 0.0
  %2400 = vmatprep.subr.mxu0 0.0
  %2401 = vmatpush1.msra.mxu0 0.0
  %2402 = vmatprep.subr.mxu0 0.0
  %2403 = vmatpush1.msra.mxu0 0.0
  %2404 = vmatprep.subr.mxu0 0.0
  %2405 = vmatpush1.msra.mxu0 0.0
  %2406 = vmatprep.subr.mxu0 0.0
  %2407 = vmatpush1.msra.mxu0 0.0
  %2408 = vmatprep.subr.mxu0 0.0
  %2409 = vmatpush1.msra.mxu0 0.0
  %2410 = vmatprep.subr.mxu0 0.0
  %2411 = vmatpush1.msra.mxu0 0.0
  %2412 = vmatprep.subr.mxu0 0.0
  %2413 = vmatpush1.msra.mxu0 0.0
  %2414 = vmatprep.subr.mxu0 0.0
  %2415 = vmatpush1.msra.mxu0 0.0
  %2416 = vmatprep.subr.mxu0 0.0
  %2417 = vmatpush1.msra.mxu0 0.0
  %2418 = vmatprep.subr.mxu0 0.0
  %2419 = vmatpush1.msra.mxu0 0.0
  %2420 = vmatprep.subr.mxu0 0.0
  %2421 = vmatpush1.msra.mxu0 0.0
  %2422 = vmatprep.subr.mxu0 0.0
  %2423 = vmatpush1.msra.mxu0 0.0
  %2424 = vmatprep.subr.mxu0 0.0
  %2425 = vmatpush1.msra.mxu0 0.0
  %2426 = vmatprep.subr.mxu0 0.0
  %2427 = vmatpush1.msra.mxu0 0.0
  %2428 = vmatprep.subr.mxu0 0.0
  %2429 = vmatpush1.msra.mxu0 0.0
  %2430 = vmatprep.subr.mxu0 0.0
  %2431 = vmatpush1.msra.mxu0 0.0
  %2432 = vmatprep.subr.mxu0 0.0
  %2433 = vmatpush1.msra.mxu0 0.0
  %2434 = vmatprep.subr.mxu0 0.0
  %2435 = vmatpush1.msra.mxu0 0.0
  %2436 = vmatprep.subr.mxu0 0.0
  %2437 = vmatpush1.msra.mxu0 0.0
  %2438 = vmatprep.subr.mxu0 0.0
  %2439 = vmatpush1.msra.mxu0 0.0
  %2440 = vmatprep.subr.mxu0 0.0
  %2441 = vmatpush1.msra.mxu0 0.0
  %2442 = vmatprep.subr.mxu0 0.0
  %2443 = vmatpush1.msra.mxu0 0.0
  %2444 = vmatprep.subr.mxu0 0.0
  %2445 = vmatpush1.msra.mxu0 0.0
  %2446 = vmatprep.subr.mxu0 0.0
  %2447 = vmatpush1.msra.mxu0 0.0
  %2448 = vmatprep.subr.mxu0 0.0
  %2449 = vmatpush1.msra.mxu0 0.0
  %2450 = vmatprep.mubr.f32.mxu0 0.0
  %2451 = vmatmul.mubr.f32.gmra.mrb[0].mxu0 %v2384
  %v2452 = vpop.f32.mrb[0].mxu0
  %v2453 = vadd.f32 0.0, %v2452
  %v2454 = vpop.f32.mrb[0].mxu0
  %v2455 = vadd.f32 0.0, %v2454
  %2456 = vdwg.mxu0
  %v2457 = vadd.f32 %v2364, %v2453
  %v2458 = vadd.f32 %v2365, %v2455
  %v2459 = vmul.f32 %v1920, %v1601
  %v2460 = vmul.f32 %v1921, %v1604
  %v2461 = vmul.f32 %v1922, %v1603
  %2462 = vrot.lane.b32.xlu0 %v1733, 64
  %v2463 = vpop.permute.xlu0 %2462
  %2467 = vrot.lane.b32.xlu0 %v2459, 111
  %v2468 = vpop.permute.xlu0 %2467
  %2469 = vrot.lane.b32.xlu0 %v2460, 111
  %v2470 = vpop.permute.xlu0 %2469
  %2471 = vrot.lane.b32.xlu0 %v2461, 111
  %v2472 = vpop.permute.xlu0 %2471
  %v2473 = vsel %vm817, %v2468, %v2470
  %v2474 = vsel %vm817, %v2470, %v2472
  %v2477 = vsel %vm674, %v2463, 0
  %2479 = vmatprep.subr.mxu0 %v2474
  %2480 = vmatpush1.msra.mxu0 %v2473
  %2481 = vmatprep.subr.mxu0 0.0
  %2482 = vmatpush1.msra.mxu0 0.0
  %2483 = vmatprep.subr.mxu0 0.0
  %2484 = vmatpush1.msra.mxu0 0.0
  %2485 = vmatprep.subr.mxu0 0.0
  %2486 = vmatpush1.msra.mxu0 0.0
  %2487 = vmatprep.subr.mxu0 0.0
  %2488 = vmatpush1.msra.mxu0 0.0
  %2489 = vmatprep.subr.mxu0 0.0
  %2490 = vmatpush1.msra.mxu0 0.0
  %2491 = vmatprep.subr.mxu0 0.0
  %2492 = vmatpush1.msra.mxu0 0.0
  %2493 = vmatprep.subr.mxu0 0.0
  %2494 = vmatpush1.msra.mxu0 0.0
  %2495 = vmatprep.subr.mxu0 0.0
  %2496 = vmatpush1.msra.mxu0 0.0
  %2497 = vmatprep.subr.mxu0 0.0
  %2498 = vmatpush1.msra.mxu0 0.0
  %2499 = vmatprep.subr.mxu0 0.0
  %2500 = vmatpush1.msra.mxu0 0.0
  %2501 = vmatprep.subr.mxu0 0.0
  %2502 = vmatpush1.msra.mxu0 0.0
  %2503 = vmatprep.subr.mxu0 0.0
  %2504 = vmatpush1.msra.mxu0 0.0
  %2505 = vmatprep.subr.mxu0 0.0
  %2506 = vmatpush1.msra.mxu0 0.0
  %2507 = vmatprep.subr.mxu0 0.0
  %2508 = vmatpush1.msra.mxu0 0.0
  %2509 = vmatprep.subr.mxu0 0.0
  %2510 = vmatpush1.msra.mxu0 0.0
  %2511 = vmatprep.subr.mxu0 0.0
  %2512 = vmatpush1.msra.mxu0 0.0
  %2513 = vmatprep.subr.mxu0 0.0
  %2514 = vmatpush1.msra.mxu0 0.0
  %2515 = vmatprep.subr.mxu0 0.0
  %2516 = vmatpush1.msra.mxu0 0.0
  %2517 = vmatprep.subr.mxu0 0.0
  %2518 = vmatpush1.msra.mxu0 0.0
  %2519 = vmatprep.subr.mxu0 0.0
  %2520 = vmatpush1.msra.mxu0 0.0
  %2521 = vmatprep.subr.mxu0 0.0
  %2522 = vmatpush1.msra.mxu0 0.0
  %2523 = vmatprep.subr.mxu0 0.0
  %2524 = vmatpush1.msra.mxu0 0.0
  %2525 = vmatprep.subr.mxu0 0.0
  %2526 = vmatpush1.msra.mxu0 0.0
  %2527 = vmatprep.subr.mxu0 0.0
  %2528 = vmatpush1.msra.mxu0 0.0
  %2529 = vmatprep.subr.mxu0 0.0
  %2530 = vmatpush1.msra.mxu0 0.0
  %2531 = vmatprep.subr.mxu0 0.0
  %2532 = vmatpush1.msra.mxu0 0.0
  %2533 = vmatprep.subr.mxu0 0.0
  %2534 = vmatpush1.msra.mxu0 0.0
  %2535 = vmatprep.subr.mxu0 0.0
  %2536 = vmatpush1.msra.mxu0 0.0
  %2537 = vmatprep.subr.mxu0 0.0
  %2538 = vmatpush1.msra.mxu0 0.0
  %2539 = vmatprep.subr.mxu0 0.0
  %2540 = vmatpush1.msra.mxu0 0.0
  %2541 = vmatprep.subr.mxu0 0.0
  %2542 = vmatpush1.msra.mxu0 0.0
  %2543 = vmatprep.mubr.f32.mxu0 0.0
  %2544 = vmatmul.mubr.f32.gmra.mrb[0].mxu0 %v2477
  %v2545 = vpop.f32.mrb[0].mxu0
  %v2546 = vadd.f32 0.0, %v2545
  %v2547 = vpop.f32.mrb[0].mxu0
  %v2548 = vadd.f32 0.0, %v2547
  %2549 = vdwg.mxu0
  %v2550 = vadd.f32 %v2457, %v2546
  %v2551 = vadd.f32 %v2458, %v2548
  %2552 = vst [vmem:[#allocation3 + $0x10] sm:$0xff] %v2550
  %2553 = vst [vmem:[#allocation3 + $0x18] sm:$0xff] %v2551
  %v2554 = vld [vmem:[#allocation3] sm:$0xff]
  %v2555 = vld [vmem:[#allocation3 + $0x8] sm:$0xff]
  %v2556 = vld [vmem:[#allocation3 + $0x10] sm:$0xff]
  %v2557 = vld [vmem:[#allocation3 + $0x18] sm:$0xff]
  %v2558 = vadd.f32 %v2554, %v2555
  %v2559 = vadd.f32 %v2558, %v2556
  %v2560 = vadd.f32 %v2559, %v2557
  %2561 = vadd.xlane.f32.xlu0 %v2560
  %v2562 = vpop.xlane.xlu0 %2561
  %v2563 = vmul.f32 %v2562, %v424
  %v2564 = vsub.f32 %v2554, %v2563
  %v2565 = vsub.f32 %v2555, %v2563
  %v2566 = vsub.f32 %v2556, %v2563
  %v2567 = vsub.f32 %v2557, %v2563
  %v2568 = vmul.f32 %v2564, %v2564
  %v2569 = vmul.f32 %v2565, %v2565
  %v2570 = vmul.f32 %v2566, %v2566
  %v2571 = vmul.f32 %v2567, %v2567
  %v2572 = vadd.f32 %v2568, %v2569
  %v2573 = vadd.f32 %v2572, %v2570
  %v2574 = vadd.f32 %v2573, %v2571
  %2575 = vadd.xlane.f32.xlu0 %v2574
  %v2576 = vpop.xlane.xlu0 %2575
  %v2577 = vmul.f32 %v2576, %v424
  %v2578 = vadd.f32 %v2577, 1e-05
  %v2579 = vrsqrt.pop %v2578
  %v2580 = vld [vmem:[%s12] sm:$0xff]
  %v2581 = vmul.f32 %v2579, %v2580
  %v2582 = vld [vmem:[%s13] sm:$0xff]
  %v2583 = vmul.f32 %v2563, %v2581
  %v2584 = vsub.f32 %v2582, %v2583
  %2586 = vset.pattern.permute.xlu0 0
  %2587 = vperm.xlu0 %2586, %v2581
  %v2588 = vpop.permute.xlu0 %2587
  %v2590 = vmul.f32 %v2554, %v2588
  %v2591 = vmul.f32 %v2555, %v2588
  %v2592 = vmul.f32 %v2556, %v2588
  %v2593 = vmul.f32 %v2557, %v2588
  %2595 = vset.pattern.permute.xlu0 0
  %2596 = vperm.xlu0 %2595, %v2584
  %v2597 = vpop.permute.xlu0 %2596
  %v2599 = vadd.f32 %v2590, %v2597
  %v2600 = vadd.f32 %v2591, %v2597
  %v2601 = vadd.f32 %v2592, %v2597
  %v2602 = vadd.f32 %v2593, %v2597
  %v2603 = vmax.f32 %v2599, 0.0
  %v2604 = vmax.f32 %v2600, 0.0
  %v2605 = vmax.f32 %v2601, 0.0
  %v2606 = vmax.f32 %v2602, 0.0
  %v2607 = vld [vmem:[%s8] sm:$0xff]
  %v2608 = vld [vmem:[%s8 + $0x8] sm:$0xff]
  %v2609 = vld [vmem:[%s8 + $0x10] sm:$0xff]
  %v2610 = vld [vmem:[%s8 + $0x18] sm:$0xff]
  %v2612 = vsel %vm674, %v2607, 0
  %v2615 = vsel %vm674, %v2608, 0
  %v2618 = vsel %vm674, %v2609, 0
  %v2621 = vsel %vm674, %v2610, 0
  %2623 = vmatprep.subr.mxu0 %v2604
  %2624 = vmatpush1.msra.mxu0 %v2603
  %2625 = vmatprep.subr.mxu0 0.0
  %2626 = vmatpush1.msra.mxu0 0.0
  %2627 = vmatprep.subr.mxu0 0.0
  %2628 = vmatpush1.msra.mxu0 0.0
  %2629 = vmatprep.subr.mxu0 0.0
  %2630 = vmatpush1.msra.mxu0 0.0
  %2631 = vmatprep.subr.mxu0 0.0
  %2632 = vmatpush1.msra.mxu0 0.0
  %2633 = vmatprep.subr.mxu0 0.0
  %2634 = vmatpush1.msra.mxu0 0.0
  %2635 = vmatprep.subr.mxu0 0.0
  %2636 = vmatpush1.msra.mxu0 0.0
  %2637 = vmatprep.subr.mxu0 0.0
  %2638 = vmatpush1.msra.mxu0 0.0
  %2639 = vmatprep.subr.mxu0 0.0
  %2640 = vmatpush1.msra.mxu0 0.0
  %2641 = vmatprep.subr.mxu0 0.0
  %2642 = vmatpush1.msra.mxu0 0.0
  %2643 = vmatprep.subr.mxu0 0.0
  %2644 = vmatpush1.msra.mxu0 0.0
  %2645 = vmatprep.subr.mxu0 0.0
  %2646 = vmatpush1.msra.mxu0 0.0
  %2647 = vmatprep.subr.mxu0 0.0
  %2648 = vmatpush1.msra.mxu0 0.0
  %2649 = vmatprep.subr.mxu0 0.0
  %2650 = vmatpush1.msra.mxu0 0.0
  %2651 = vmatprep.subr.mxu0 0.0
  %2652 = vmatpush1.msra.mxu0 0.0
  %2653 = vmatprep.subr.mxu0 0.0
  %2654 = vmatpush1.msra.mxu0 0.0
  %2655 = vmatprep.subr.mxu0 0.0
  %2656 = vmatpush1.msra.mxu0 0.0
  %2657 = vmatprep.subr.mxu0 0.0
  %2658 = vmatpush1.msra.mxu0 0.0
  %2659 = vmatprep.subr.mxu0 0.0
  %2660 = vmatpush1.msra.mxu0 0.0
  %2661 = vmatprep.subr.mxu0 0.0
  %2662 = vmatpush1.msra.mxu0 0.0
  %2663 = vmatprep.subr.mxu0 0.0
  %2664 = vmatpush1.msra.mxu0 0.0
  %2665 = vmatprep.subr.mxu0 0.0
  %2666 = vmatpush1.msra.mxu0 0.0
  %2667 = vmatprep.subr.mxu0 0.0
  %2668 = vmatpush1.msra.mxu0 0.0
  %2669 = vmatprep.subr.mxu0 0.0
  %2670 = vmatpush1.msra.mxu0 0.0
  %2671 = vmatprep.subr.mxu0 0.0
  %2672 = vmatpush1.msra.mxu0 0.0
  %2673 = vmatprep.subr.mxu0 0.0
  %2674 = vmatpush1.msra.mxu0 0.0
  %2675 = vmatprep.subr.mxu0 0.0
  %2676 = vmatpush1.msra.mxu0 0.0
  %2677 = vmatprep.subr.mxu0 0.0
  %2678 = vmatpush1.msra.mxu0 0.0
  %2679 = vmatprep.subr.mxu0 0.0
  %2680 = vmatpush1.msra.mxu0 0.0
  %2681 = vmatprep.subr.mxu0 0.0
  %2682 = vmatpush1.msra.mxu0 0.0
  %2683 = vmatprep.subr.mxu0 0.0
  %2684 = vmatpush1.msra.mxu0 0.0
  %2685 = vmatprep.subr.mxu0 0.0
  %2686 = vmatpush1.msra.mxu0 0.0
  %2687 = vmatprep.mubr.f32.mxu0 0.0
  %2688 = vmatmul.mubr.f32.gmra.mrb[0].mxu0 %v2612
  %v2689 = vpop.f32.mrb[0].mxu0
  %v2690 = vadd.f32 0.0, %v2689
  %v2691 = vpop.f32.mrb[0].mxu0
  %v2692 = vadd.f32 0.0, %v2691
  %2693 = vmatprep.mubr.f32.mxu0 0.0
  %2694 = vmatmul.mubr.f32.gmra.mrb[0].mxu0 %v2615
  %v2695 = vpop.f32.mrb[0].mxu0
  %v2696 = vadd.f32 0.0, %v2695
  %v2697 = vpop.f32.mrb[0].mxu0
  %v2698 = vadd.f32 0.0, %v2697
  %2699 = vmatprep.mubr.f32.mxu0 0.0
  %2700 = vmatmul.mubr.f32.gmra.mrb[0].mxu0 %v2618
  %v2701 = vpop.f32.mrb[0].mxu0
  %v2702 = vadd.f32 0.0, %v2701
  %v2703 = vpop.f32.mrb[0].mxu0
  %v2704 = vadd.f32 0.0, %v2703
  %2705 = vmatprep.mubr.f32.mxu0 0.0
  %2706 = vmatmul.mubr.f32.gmra.mrb[0].mxu0 %v2621
  %v2707 = vpop.f32.mrb[0].mxu0
  %v2708 = vadd.f32 0.0, %v2707
  %v2709 = vpop.f32.mrb[0].mxu0
  %v2710 = vadd.f32 0.0, %v2709
  %2711 = vdwg.mxu0
  %2712 = vmatprep.subr.mxu0 %v2606
  %2713 = vmatpush1.msra.mxu0 %v2605
  %2714 = vmatprep.subr.mxu0 0.0
  %2715 = vmatpush1.msra.mxu0 0.0
  %2716 = vmatprep.subr.mxu0 0.0
  %2717 = vmatpush1.msra.mxu0 0.0
  %2718 = vmatprep.subr.mxu0 0.0
  %2719 = vmatpush1.msra.mxu0 0.0
  %2720 = vmatprep.subr.mxu0 0.0
  %2721 = vmatpush1.msra.mxu0 0.0
  %2722 = vmatprep.subr.mxu0 0.0
  %2723 = vmatpush1.msra.mxu0 0.0
  %2724 = vmatprep.subr.mxu0 0.0
  %2725 = vmatpush1.msra.mxu0 0.0
  %2726 = vmatprep.subr.mxu0 0.0
  %2727 = vmatpush1.msra.mxu0 0.0
  %2728 = vmatprep.subr.mxu0 0.0
  %2729 = vmatpush1.msra.mxu0 0.0
  %2730 = vmatprep.subr.mxu0 0.0
  %2731 = vmatpush1.msra.mxu0 0.0
  %2732 = vmatprep.subr.mxu0 0.0
  %2733 = vmatpush1.msra.mxu0 0.0
  %2734 = vmatprep.subr.mxu0 0.0
  %2735 = vmatpush1.msra.mxu0 0.0
  %2736 = vmatprep.subr.mxu0 0.0
  %2737 = vmatpush1.msra.mxu0 0.0
  %2738 = vmatprep.subr.mxu0 0.0
  %2739 = vmatpush1.msra.mxu0 0.0
  %2740 = vmatprep.subr.mxu0 0.0
  %2741 = vmatpush1.msra.mxu0 0.0
  %2742 = vmatprep.subr.mxu0 0.0
  %2743 = vmatpush1.msra.mxu0 0.0
  %2744 = vmatprep.subr.mxu0 0.0
  %2745 = vmatpush1.msra.mxu0 0.0
  %2746 = vmatprep.subr.mxu0 0.0
  %2747 = vmatpush1.msra.mxu0 0.0
  %2748 = vmatprep.subr.mxu0 0.0
  %2749 = vmatpush1.msra.mxu0 0.0
  %2750 = vmatprep.subr.mxu0 0.0
  %2751 = vmatpush1.msra.mxu0 0.0
  %2752 = vmatprep.subr.mxu0 0.0
  %2753 = vmatpush1.msra.mxu0 0.0
  %2754 = vmatprep.subr.mxu0 0.0
  %2755 = vmatpush1.msra.mxu0 0.0
  %2756 = vmatprep.subr.mxu0 0.0
  %2757 = vmatpush1.msra.mxu0 0.0
  %2758 = vmatprep.subr.mxu0 0.0
  %2759 = vmatpush1.msra.mxu0 0.0
  %2760 = vmatprep.subr.mxu0 0.0
  %2761 = vmatpush1.msra.mxu0 0.0
  %2762 = vmatprep.subr.mxu0 0.0
  %2763 = vmatpush1.msra.mxu0 0.0
  %2764 = vmatprep.subr.mxu0 0.0
  %2765 = vmatpush1.msra.mxu0 0.0
  %2766 = vmatprep.subr.mxu0 0.0
  %2767 = vmatpush1.msra.mxu0 0.0
  %2768 = vmatprep.subr.mxu0 0.0
  %2769 = vmatpush1.msra.mxu0 0.0
  %2770 = vmatprep.subr.mxu0 0.0
  %2771 = vmatpush1.msra.mxu0 0.0
  %2772 = vmatprep.subr.mxu0 0.0
  %2773 = vmatpush1.msra.mxu0 0.0
  %2774 = vmatprep.subr.mxu0 0.0
  %2775 = vmatpush1.msra.mxu0 0.0
  %2776 = vmatprep.mubr.f32.mxu0 0.0
  %2777 = vmatmul.mubr.f32.gmra.mrb[0].mxu0 %v2612
  %v2778 = vpop.f32.mrb[0].mxu0
  %v2779 = vadd.f32 0.0, %v2778
  %v2780 = vpop.f32.mrb[0].mxu0
  %v2781 = vadd.f32 0.0, %v2780
  %2782 = vmatprep.mubr.f32.mxu0 0.0
  %2783 = vmatmul.mubr.f32.gmra.mrb[0].mxu0 %v2615
  %v2784 = vpop.f32.mrb[0].mxu0
  %v2785 = vadd.f32 0.0, %v2784
  %v2786 = vpop.f32.mrb[0].mxu0
  %v2787 = vadd.f32 0.0, %v2786
  %2788 = vmatprep.mubr.f32.mxu0 0.0
  %2789 = vmatmul.mubr.f32.gmra.mrb[0].mxu0 %v2618
  %v2790 = vpop.f32.mrb[0].mxu0
  %v2791 = vadd.f32 0.0, %v2790
  %v2792 = vpop.f32.mrb[0].mxu0
  %v2793 = vadd.f32 0.0, %v2792
  %2794 = vmatprep.mubr.f32.mxu0 0.0
  %2795 = vmatmul.mubr.f32.gmra.mrb[0].mxu0 %v2621
  %v2796 = vpop.f32.mrb[0].mxu0
  %v2797 = vadd.f32 0.0, %v2796
  %v2798 = vpop.f32.mrb[0].mxu0
  %v2799 = vadd.f32 0.0, %v2798
  %2800 = vdwg.mxu0
  %v2801 = vadd.f32 %v2690, %v2692
  %v2802 = vadd.f32 %v2801, %v2779
  %v2803 = vadd.f32 %v2802, %v2781
  %2804 = vadd.xlane.f32.xlu0 %v2803
  %v2805 = vpop.xlane.xlu0 %2804
  %v2806 = vadd.f32 %v2696, %v2698
  %v2807 = vadd.f32 %v2806, %v2785
  %v2808 = vadd.f32 %v2807, %v2787
  %2809 = vadd.xlane.f32.xlu0 %v2808
  %v2810 = vpop.xlane.xlu0 %2809
  %v2811 = vadd.f32 %v2702, %v2704
  %v2812 = vadd.f32 %v2811, %v2791
  %v2813 = vadd.f32 %v2812, %v2793
  %2814 = vadd.xlane.f32.xlu0 %v2813
  %v2815 = vpop.xlane.xlu0 %2814
  %v2816 = vadd.f32 %v2708, %v2710
  %v2817 = vadd.f32 %v2816, %v2797
  %v2818 = vadd.f32 %v2817, %v2799
  %2819 = vadd.xlane.f32.xlu0 %v2818
  %v2820 = vpop.xlane.xlu0 %2819
  %v2821 = vmul.f32 %v2805, %v424
  %v2822 = vmul.f32 %v2810, %v424
  %v2823 = vmul.f32 %v2815, %v424
  %v2824 = vmul.f32 %v2820, %v424
  %v2825 = vsub.f32 %v2690, %v2821
  %v2826 = vsub.f32 %v2692, %v2821
  %v2827 = vsub.f32 %v2779, %v2821
  %v2828 = vsub.f32 %v2781, %v2821
  %v2829 = vsub.f32 %v2696, %v2822
  %v2830 = vsub.f32 %v2698, %v2822
  %v2831 = vsub.f32 %v2785, %v2822
  %v2832 = vsub.f32 %v2787, %v2822
  %v2833 = vsub.f32 %v2702, %v2823
  %v2834 = vsub.f32 %v2704, %v2823
  %v2835 = vsub.f32 %v2791, %v2823
  %v2836 = vsub.f32 %v2793, %v2823
  %v2837 = vsub.f32 %v2708, %v2824
  %v2838 = vsub.f32 %v2710, %v2824
  %v2839 = vsub.f32 %v2797, %v2824
  %v2840 = vsub.f32 %v2799, %v2824
  %v2841 = vmul.f32 %v2825, %v2825
  %v2842 = vmul.f32 %v2826, %v2826
  %v2843 = vmul.f32 %v2827, %v2827
  %v2844 = vmul.f32 %v2828, %v2828
  %v2845 = vmul.f32 %v2829, %v2829
  %v2846 = vmul.f32 %v2830, %v2830
  %v2847 = vmul.f32 %v2831, %v2831
  %v2848 = vmul.f32 %v2832, %v2832
  %v2849 = vmul.f32 %v2833, %v2833
  %v2850 = vmul.f32 %v2834, %v2834
  %v2851 = vmul.f32 %v2835, %v2835
  %v2852 = vmul.f32 %v2836, %v2836
  %v2853 = vmul.f32 %v2837, %v2837
  %v2854 = vmul.f32 %v2838, %v2838
  %v2855 = vmul.f32 %v2839, %v2839
  %v2856 = vmul.f32 %v2840, %v2840
  %v2857 = vadd.f32 %v2841, %v2842
  %v2858 = vadd.f32 %v2857, %v2843
  %v2859 = vadd.f32 %v2858, %v2844
  %2860 = vadd.xlane.f32.xlu0 %v2859
  %v2861 = vpop.xlane.xlu0 %2860
  %v2862 = vadd.f32 %v2845, %v2846
  %v2863 = vadd.f32 %v2862, %v2847
  %v2864 = vadd.f32 %v2863, %v2848
  %2865 = vadd.xlane.f32.xlu0 %v2864
  %v2866 = vpop.xlane.xlu0 %2865
  %v2867 = vadd.f32 %v2849, %v2850
  %v2868 = vadd.f32 %v2867, %v2851
  %v2869 = vadd.f32 %v2868, %v2852
  %2870 = vadd.xlane.f32.xlu0 %v2869
  %v2871 = vpop.xlane.xlu0 %2870
  %v2872 = vadd.f32 %v2853, %v2854
  %v2873 = vadd.f32 %v2872, %v2855
  %v2874 = vadd.f32 %v2873, %v2856
  %2875 = vadd.xlane.f32.xlu0 %v2874
  %v2876 = vpop.xlane.xlu0 %2875
  %v2877 = vmul.f32 %v2861, %v424
  %v2878 = vmul.f32 %v2866, %v424
  %v2879 = vmul.f32 %v2871, %v424
  %v2880 = vmul.f32 %v2876, %v424
  %v2881 = vadd.f32 %v2877, 1e-05
  %v2882 = vadd.f32 %v2878, 1e-05
  %v2883 = vadd.f32 %v2879, 1e-05
  %v2884 = vadd.f32 %v2880, 1e-05
  %v2885 = vrsqrt.pop %v2881
  %v2886 = vrsqrt.pop %v2882
  %v2887 = vrsqrt.pop %v2883
  %v2888 = vrsqrt.pop %v2884
  %v2889 = vld [vmem:[%s14] sm:$0xff]
  %v2890 = vld [vmem:[%s14 + $0x8] sm:$0xff]
  %v2891 = vld [vmem:[%s14 + $0x10] sm:$0xff]
  %v2892 = vld [vmem:[%s14 + $0x18] sm:$0xff]
  %v2893 = vmul.f32 %v2885, %v2889
  %v2894 = vmul.f32 %v2886, %v2890
  %v2895 = vmul.f32 %v2887, %v2891
  %v2896 = vmul.f32 %v2888, %v2892
  %v2897 = vld [vmem:[%s15] sm:$0xff]
  %v2898 = vld [vmem:[%s15 + $0x8] sm:$0xff]
  %v2899 = vld [vmem:[%s15 + $0x10] sm:$0xff]
  %v2900 = vld [vmem:[%s15 + $0x18] sm:$0xff]
  %v2901 = vmul.f32 %v2821, %v2893
  %v2902 = vmul.f32 %v2822, %v2894
  %v2903 = vmul.f32 %v2823, %v2895
  %v2904 = vmul.f32 %v2824, %v2896
  %v2905 = vsub.f32 %v2897, %v2901
  %v2906 = vsub.f32 %v2898, %v2902
  %v2907 = vsub.f32 %v2899, %v2903
  %v2908 = vsub.f32 %v2900, %v2904
  %2910 = vset.pattern.permute.xlu0 0
  %2911 = vperm.xlu0 %2910, %v2893
  %v2912 = vpop.permute.xlu0 %2911
  %2915 = vset.pattern.permute.xlu0 0
  %2916 = vperm.xlu0 %2915, %v2894
  %v2917 = vpop.permute.xlu0 %2916
  %2920 = vset.pattern.permute.xlu0 0
  %2921 = vperm.xlu0 %2920, %v2895
  %v2922 = vpop.permute.xlu0 %2921
  %2925 = vset.pattern.permute.xlu0 0
  %2926 = vperm.xlu0 %2925, %v2896
  %v2927 = vpop.permute.xlu0 %2926
  %v2929 = vmul.f32 %v2690, %v2912
  %v2930 = vmul.f32 %v2692, %v2912
  %v2931 = vmul.f32 %v2779, %v2912
  %v2932 = vmul.f32 %v2781, %v2912
  %v2933 = vmul.f32 %v2696, %v2917
  %v2934 = vmul.f32 %v2698, %v2917
  %v2935 = vmul.f32 %v2785, %v2917
  %v2936 = vmul.f32 %v2787, %v2917
  %v2937 = vmul.f32 %v2702, %v2922
  %v2938 = vmul.f32 %v2704, %v2922
  %v2939 = vmul.f32 %v2791, %v2922
  %v2940 = vmul.f32 %v2793, %v2922
  %v2941 = vmul.f32 %v2708, %v2927
  %v2942 = vmul.f32 %v2710, %v2927
  %v2943 = vmul.f32 %v2797, %v2927
  %v2944 = vmul.f32 %v2799, %v2927
  %2946 = vset.pattern.permute.xlu0 0
  %2947 = vperm.xlu0 %2946, %v2905
  %v2948 = vpop.permute.xlu0 %2947
  %2951 = vset.pattern.permute.xlu0 0
  %2952 = vperm.xlu0 %2951, %v2906
  %v2953 = vpop.permute.xlu0 %2952
  %2956 = vset.pattern.permute.xlu0 0
  %2957 = vperm.xlu0 %2956, %v2907
  %v2958 = vpop.permute.xlu0 %2957
  %2961 = vset.pattern.permute.xlu0 0
  %2962 = vperm.xlu0 %2961, %v2908
  %v2963 = vpop.permute.xlu0 %2962
  %v2965 = vadd.f32 %v2929, %v2948
  %v2966 = vadd.f32 %v2930, %v2948
  %v2967 = vadd.f32 %v2931, %v2948
  %v2968 = vadd.f32 %v2932, %v2948
  %v2969 = vadd.f32 %v2933, %v2953
  %v2970 = vadd.f32 %v2934, %v2953
  %v2971 = vadd.f32 %v2935, %v2953
  %v2972 = vadd.f32 %v2936, %v2953
  %v2973 = vadd.f32 %v2937, %v2958
  %v2974 = vadd.f32 %v2938, %v2958
  %v2975 = vadd.f32 %v2939, %v2958
  %v2976 = vadd.f32 %v2940, %v2958
  %v2977 = vadd.f32 %v2941, %v2963
  %v2978 = vadd.f32 %v2942, %v2963
  %v2979 = vadd.f32 %v2943, %v2963
  %v2980 = vadd.f32 %v2944, %v2963
  %v2981 = vld [vmem:[%s9] sm:$0xff]
  %v2982 = vld [vmem:[%s9 + $0x8] sm:$0xff]
  %v2983 = vld [vmem:[%s9 + $0x10] sm:$0xff]
  %v2984 = vld [vmem:[%s9 + $0x18] sm:$0xff]
  %v2986 = vsel %vm273, %v2981, 0
  %v2989 = vsel %vm273, %v2982, 0
  %v2992 = vsel %vm273, %v2983, 0
  %v2995 = vsel %vm273, %v2984, 0
  %2997 = vmatprep.subr.mxu0 %v265
  %2998 = vmatpush1.msra.mxu0 %v264
  %2999 = vmatprep.subr.mxu0 %v269
  %3000 = vmatpush1.msra.mxu0 %v268
  %3001 = vmatprep.subr.mxu0 0.0
  %3002 = vmatpush1.msra.mxu0 0.0
  %3003 = vmatprep.subr.mxu0 0.0
  %3004 = vmatpush1.msra.mxu0 0.0
  %3005 = vmatprep.subr.mxu0 0.0
  %3006 = vmatpush1.msra.mxu0 0.0
  %3007 = vmatprep.subr.mxu0 0.0
  %3008 = vmatpush1.msra.mxu0 0.0
  %3009 = vmatprep.subr.mxu0 0.0
  %3010 = vmatpush1.msra.mxu0 0.0
  %3011 = vmatprep.subr.mxu0 0.0
  %3012 = vmatpush1.msra.mxu0 0.0
  %3013 = vmatprep.subr.mxu0 0.0
  %3014 = vmatpush1.msra.mxu0 0.0
  %3015 = vmatprep.subr.mxu0 0.0
  %3016 = vmatpush1.msra.mxu0 0.0
  %3017 = vmatprep.subr.mxu0 0.0
  %3018 = vmatpush1.msra.mxu0 0.0
  %3019 = vmatprep.subr.mxu0 0.0
  %3020 = vmatpush1.msra.mxu0 0.0
  %3021 = vmatprep.subr.mxu0 0.0
  %3022 = vmatpush1.msra.mxu0 0.0
  %3023 = vmatprep.subr.mxu0 0.0
  %3024 = vmatpush1.msra.mxu0 0.0
  %3025 = vmatprep.subr.mxu0 0.0
  %3026 = vmatpush1.msra.mxu0 0.0
  %3027 = vmatprep.subr.mxu0 0.0
  %3028 = vmatpush1.msra.mxu0 0.0
  %3029 = vmatprep.subr.mxu0 0.0
  %3030 = vmatpush1.msra.mxu0 0.0
  %3031 = vmatprep.subr.mxu0 0.0
  %3032 = vmatpush1.msra.mxu0 0.0
  %3033 = vmatprep.subr.mxu0 0.0
  %3034 = vmatpush1.msra.mxu0 0.0
  %3035 = vmatprep.subr.mxu0 0.0
  %3036 = vmatpush1.msra.mxu0 0.0
  %3037 = vmatprep.subr.mxu0 0.0
  %3038 = vmatpush1.msra.mxu0 0.0
  %3039 = vmatprep.subr.mxu0 0.0
  %3040 = vmatpush1.msra.mxu0 0.0
  %3041 = vmatprep.subr.mxu0 0.0
  %3042 = vmatpush1.msra.mxu0 0.0
  %3043 = vmatprep.subr.mxu0 0.0
  %3044 = vmatpush1.msra.mxu0 0.0
  %3045 = vmatprep.subr.mxu0 0.0
  %3046 = vmatpush1.msra.mxu0 0.0
  %3047 = vmatprep.subr.mxu0 0.0
  %3048 = vmatpush1.msra.mxu0 0.0
  %3049 = vmatprep.subr.mxu0 0.0
  %3050 = vmatpush1.msra.mxu0 0.0
  %3051 = vmatprep.subr.mxu0 0.0
  %3052 = vmatpush1.msra.mxu0 0.0
  %3053 = vmatprep.subr.mxu0 0.0
  %3054 = vmatpush1.msra.mxu0 0.0
  %3055 = vmatprep.subr.mxu0 0.0
  %3056 = vmatpush1.msra.mxu0 0.0
  %3057 = vmatprep.subr.mxu0 0.0
  %3058 = vmatpush1.msra.mxu0 0.0
  %3059 = vmatprep.subr.mxu0 0.0
  %3060 = vmatpush1.msra.mxu0 0.0
  %3061 = vmatprep.mubr.f32.mxu0 0.0
  %3062 = vmatmul.mubr.f32.gmra.mrb[0].mxu0 %v2986
  %v3063 = vpop.f32.mrb[0].mxu0
  %v3064 = vadd.f32 0.0, %v3063
  %v3065 = vpop.f32.mrb[0].mxu0
  %v3066 = vadd.f32 0.0, %v3065
  %3067 = vmatprep.mubr.f32.mxu0 0.0
  %3068 = vmatmul.mubr.f32.gmra.mrb[0].mxu0 %v2989
  %v3069 = vpop.f32.mrb[0].mxu0
  %v3070 = vadd.f32 0.0, %v3069
  %v3071 = vpop.f32.mrb[0].mxu0
  %v3072 = vadd.f32 0.0, %v3071
  %3073 = vmatprep.mubr.f32.mxu0 0.0
  %3074 = vmatmul.mubr.f32.gmra.mrb[0].mxu0 %v2992
  %v3075 = vpop.f32.mrb[0].mxu0
  %v3076 = vadd.f32 0.0, %v3075
  %v3077 = vpop.f32.mrb[0].mxu0
  %v3078 = vadd.f32 0.0, %v3077
  %3079 = vmatprep.mubr.f32.mxu0 0.0
  %3080 = vmatmul.mubr.f32.gmra.mrb[0].mxu0 %v2995
  %v3081 = vpop.f32.mrb[0].mxu0
  %v3082 = vadd.f32 0.0, %v3081
  %v3083 = vpop.f32.mrb[0].mxu0
  %v3084 = vadd.f32 0.0, %v3083
  %3085 = vdwg.mxu0
  %3086 = vmatprep.subr.mxu0 %v267
  %3087 = vmatpush1.msra.mxu0 %v266
  %3088 = vmatprep.subr.mxu0 %v271
  %3089 = vmatpush1.msra.mxu0 %v270
  %3090 = vmatprep.subr.mxu0 0.0
  %3091 = vmatpush1.msra.mxu0 0.0
  %3092 = vmatprep.subr.mxu0 0.0
  %3093 = vmatpush1.msra.mxu0 0.0
  %3094 = vmatprep.subr.mxu0 0.0
  %3095 = vmatpush1.msra.mxu0 0.0
  %3096 = vmatprep.subr.mxu0 0.0
  %3097 = vmatpush1.msra.mxu0 0.0
  %3098 = vmatprep.subr.mxu0 0.0
  %3099 = vmatpush1.msra.mxu0 0.0
  %3100 = vmatprep.subr.mxu0 0.0
  %3101 = vmatpush1.msra.mxu0 0.0
  %3102 = vmatprep.subr.mxu0 0.0
  %3103 = vmatpush1.msra.mxu0 0.0
  %3104 = vmatprep.subr.mxu0 0.0
  %3105 = vmatpush1.msra.mxu0 0.0
  %3106 = vmatprep.subr.mxu0 0.0
  %3107 = vmatpush1.msra.mxu0 0.0
  %3108 = vmatprep.subr.mxu0 0.0
  %3109 = vmatpush1.msra.mxu0 0.0
  %3110 = vmatprep.subr.mxu0 0.0
  %3111 = vmatpush1.msra.mxu0 0.0
  %3112 = vmatprep.subr.mxu0 0.0
  %3113 = vmatpush1.msra.mxu0 0.0
  %3114 = vmatprep.subr.mxu0 0.0
  %3115 = vmatpush1.msra.mxu0 0.0
  %3116 = vmatprep.subr.mxu0 0.0
  %3117 = vmatpush1.msra.mxu0 0.0
  %3118 = vmatprep.subr.mxu0 0.0
  %3119 = vmatpush1.msra.mxu0 0.0
  %3120 = vmatprep.subr.mxu0 0.0
  %3121 = vmatpush1.msra.mxu0 0.0
  %3122 = vmatprep.subr.mxu0 0.0
  %3123 = vmatpush1.msra.mxu0 0.0
  %3124 = vmatprep.subr.mxu0 0.0
  %3125 = vmatpush1.msra.mxu0 0.0
  %3126 = vmatprep.subr.mxu0 0.0
  %3127 = vmatpush1.msra.mxu0 0.0
  %3128 = vmatprep.subr.mxu0 0.0
  %3129 = vmatpush1.msra.mxu0 0.0
  %3130 = vmatprep.subr.mxu0 0.0
  %3131 = vmatpush1.msra.mxu0 0.0
  %3132 = vmatprep.subr.mxu0 0.0
  %3133 = vmatpush1.msra.mxu0 0.0
  %3134 = vmatprep.subr.mxu0 0.0
  %3135 = vmatpush1.msra.mxu0 0.0
  %3136 = vmatprep.subr.mxu0 0.0
  %3137 = vmatpush1.msra.mxu0 0.0
  %3138 = vmatprep.subr.mxu0 0.0
  %3139 = vmatpush1.msra.mxu0 0.0
  %3140 = vmatprep.subr.mxu0 0.0
  %3141 = vmatpush1.msra.mxu0 0.0
  %3142 = vmatprep.subr.mxu0 0.0
  %3143 = vmatpush1.msra.mxu0 0.0
  %3144 = vmatprep.subr.mxu0 0.0
  %3145 = vmatpush1.msra.mxu0 0.0
  %3146 = vmatprep.subr.mxu0 0.0
  %3147 = vmatpush1.msra.mxu0 0.0
  %3148 = vmatprep.subr.mxu0 0.0
  %3149 = vmatpush1.msra.mxu0 0.0
  %3150 = vmatprep.mubr.f32.mxu0 0.0
  %3151 = vmatmul.mubr.f32.gmra.mrb[0].mxu0 %v2986
  %v3152 = vpop.f32.mrb[0].mxu0
  %v3153 = vadd.f32 0.0, %v3152
  %v3154 = vpop.f32.mrb[0].mxu0
  %v3155 = vadd.f32 0.0, %v3154
  %3156 = vmatprep.mubr.f32.mxu0 0.0
  %3157 = vmatmul.mubr.f32.gmra.mrb[0].mxu0 %v2989
  %v3158 = vpop.f32.mrb[0].mxu0
  %v3159 = vadd.f32 0.0, %v3158
  %v3160 = vpop.f32.mrb[0].mxu0
  %v3161 = vadd.f32 0.0, %v3160
  %3162 = vmatprep.mubr.f32.mxu0 0.0
  %3163 = vmatmul.mubr.f32.gmra.mrb[0].mxu0 %v2992
  %v3164 = vpop.f32.mrb[0].mxu0
  %v3165 = vadd.f32 0.0, %v3164
  %v3166 = vpop.f32.mrb[0].mxu0
  %v3167 = vadd.f32 0.0, %v3166
  %3168 = vmatprep.mubr.f32.mxu0 0.0
  %3169 = vmatmul.mubr.f32.gmra.mrb[0].mxu0 %v2995
  %v3170 = vpop.f32.mrb[0].mxu0
  %v3171 = vadd.f32 0.0, %v3170
  %v3172 = vpop.f32.mrb[0].mxu0
  %v3173 = vadd.f32 0.0, %v3172
  %3174 = vdwg.mxu0
  %v3175 = vadd.f32 %v3064, %v3066
  %v3176 = vadd.f32 %v3175, %v3153
  %v3177 = vadd.f32 %v3176, %v3155
  %3178 = vadd.xlane.f32.xlu0 %v3177
  %v3179 = vpop.xlane.xlu0 %3178
  %v3180 = vadd.f32 %v3070, %v3072
  %v3181 = vadd.f32 %v3180, %v3159
  %v3182 = vadd.f32 %v3181, %v3161
  %3183 = vadd.xlane.f32.xlu0 %v3182
  %v3184 = vpop.xlane.xlu0 %3183
  %v3185 = vadd.f32 %v3076, %v3078
  %v3186 = vadd.f32 %v3185, %v3165
  %v3187 = vadd.f32 %v3186, %v3167
  %3188 = vadd.xlane.f32.xlu0 %v3187
  %v3189 = vpop.xlane.xlu0 %3188
  %v3190 = vadd.f32 %v3082, %v3084
  %v3191 = vadd.f32 %v3190, %v3171
  %v3192 = vadd.f32 %v3191, %v3173
  %3193 = vadd.xlane.f32.xlu0 %v3192
  %v3194 = vpop.xlane.xlu0 %3193
  %v3195 = vmul.f32 %v3179, %v424
  %v3196 = vmul.f32 %v3184, %v424
  %v3197 = vmul.f32 %v3189, %v424
  %v3198 = vmul.f32 %v3194, %v424
  %v3199 = vsub.f32 %v3064, %v3195
  %v3200 = vsub.f32 %v3066, %v3195
  %v3201 = vsub.f32 %v3153, %v3195
  %v3202 = vsub.f32 %v3155, %v3195
  %v3203 = vsub.f32 %v3070, %v3196
  %v3204 = vsub.f32 %v3072, %v3196
  %v3205 = vsub.f32 %v3159, %v3196
  %v3206 = vsub.f32 %v3161, %v3196
  %v3207 = vsub.f32 %v3076, %v3197
  %v3208 = vsub.f32 %v3078, %v3197
  %v3209 = vsub.f32 %v3165, %v3197
  %v3210 = vsub.f32 %v3167, %v3197
  %v3211 = vsub.f32 %v3082, %v3198
  %v3212 = vsub.f32 %v3084, %v3198
  %v3213 = vsub.f32 %v3171, %v3198
  %v3214 = vsub.f32 %v3173, %v3198
  %v3215 = vmul.f32 %v3199, %v3199
  %v3216 = vmul.f32 %v3200, %v3200
  %v3217 = vmul.f32 %v3201, %v3201
  %v3218 = vmul.f32 %v3202, %v3202
  %v3219 = vmul.f32 %v3203, %v3203
  %v3220 = vmul.f32 %v3204, %v3204
  %v3221 = vmul.f32 %v3205, %v3205
  %v3222 = vmul.f32 %v3206, %v3206
  %v3223 = vmul.f32 %v3207, %v3207
  %v3224 = vmul.f32 %v3208, %v3208
  %v3225 = vmul.f32 %v3209, %v3209
  %v3226 = vmul.f32 %v3210, %v3210
  %v3227 = vmul.f32 %v3211, %v3211
  %v3228 = vmul.f32 %v3212, %v3212
  %v3229 = vmul.f32 %v3213, %v3213
  %v3230 = vmul.f32 %v3214, %v3214
  %v3231 = vadd.f32 %v3215, %v3216
  %v3232 = vadd.f32 %v3231, %v3217
  %v3233 = vadd.f32 %v3232, %v3218
  %3234 = vadd.xlane.f32.xlu0 %v3233
  %v3235 = vpop.xlane.xlu0 %3234
  %v3236 = vadd.f32 %v3219, %v3220
  %v3237 = vadd.f32 %v3236, %v3221
  %v3238 = vadd.f32 %v3237, %v3222
  %3239 = vadd.xlane.f32.xlu0 %v3238
  %v3240 = vpop.xlane.xlu0 %3239
  %v3241 = vadd.f32 %v3223, %v3224
  %v3242 = vadd.f32 %v3241, %v3225
  %v3243 = vadd.f32 %v3242, %v3226
  %3244 = vadd.xlane.f32.xlu0 %v3243
  %v3245 = vpop.xlane.xlu0 %3244
  %v3246 = vadd.f32 %v3227, %v3228
  %v3247 = vadd.f32 %v3246, %v3229
  %v3248 = vadd.f32 %v3247, %v3230
  %3249 = vadd.xlane.f32.xlu0 %v3248
  %v3250 = vpop.xlane.xlu0 %3249
  %v3251 = vmul.f32 %v3235, %v424
  %v3252 = vmul.f32 %v3240, %v424
  %v3253 = vmul.f32 %v3245, %v424
  %v3254 = vmul.f32 %v3250, %v424
  %v3255 = vadd.f32 %v3251, 1e-05
  %v3256 = vadd.f32 %v3252, 1e-05
  %v3257 = vadd.f32 %v3253, 1e-05
  %v3258 = vadd.f32 %v3254, 1e-05
  %v3259 = vrsqrt.pop %v3255
  %v3260 = vrsqrt.pop %v3256
  %v3261 = vrsqrt.pop %v3257
  %v3262 = vrsqrt.pop %v3258
  %v3263 = vld [vmem:[%s16] sm:$0xff]
  %v3264 = vld [vmem:[%s16 + $0x8] sm:$0xff]
  %v3265 = vld [vmem:[%s16 + $0x10] sm:$0xff]
  %v3266 = vld [vmem:[%s16 + $0x18] sm:$0xff]
  %v3267 = vmul.f32 %v3259, %v3263
  %v3268 = vmul.f32 %v3260, %v3264
  %v3269 = vmul.f32 %v3261, %v3265
  %v3270 = vmul.f32 %v3262, %v3266
  %v3271 = vld [vmem:[%s17] sm:$0xff]
  %v3272 = vld [vmem:[%s17 + $0x8] sm:$0xff]
  %v3273 = vld [vmem:[%s17 + $0x10] sm:$0xff]
  %v3274 = vld [vmem:[%s17 + $0x18] sm:$0xff]
  %v3275 = vmul.f32 %v3195, %v3267
  %v3276 = vmul.f32 %v3196, %v3268
  %v3277 = vmul.f32 %v3197, %v3269
  %v3278 = vmul.f32 %v3198, %v3270
  %v3279 = vsub.f32 %v3271, %v3275
  %v3280 = vsub.f32 %v3272, %v3276
  %v3281 = vsub.f32 %v3273, %v3277
  %v3282 = vsub.f32 %v3274, %v3278
  %3284 = vset.pattern.permute.xlu0 0
  %3285 = vperm.xlu0 %3284, %v3267
  %v3286 = vpop.permute.xlu0 %3285
  %3289 = vset.pattern.permute.xlu0 0
  %3290 = vperm.xlu0 %3289, %v3268
  %v3291 = vpop.permute.xlu0 %3290
  %3294 = vset.pattern.permute.xlu0 0
  %3295 = vperm.xlu0 %3294, %v3269
  %v3296 = vpop.permute.xlu0 %3295
  %3299 = vset.pattern.permute.xlu0 0
  %3300 = vperm.xlu0 %3299, %v3270
  %v3301 = vpop.permute.xlu0 %3300
  %v3303 = vmul.f32 %v3064, %v3286
  %v3304 = vmul.f32 %v3066, %v3286
  %v3305 = vmul.f32 %v3153, %v3286
  %v3306 = vmul.f32 %v3155, %v3286
  %v3307 = vmul.f32 %v3070, %v3291
  %v3308 = vmul.f32 %v3072, %v3291
  %v3309 = vmul.f32 %v3159, %v3291
  %v3310 = vmul.f32 %v3161, %v3291
  %v3311 = vmul.f32 %v3076, %v3296
  %v3312 = vmul.f32 %v3078, %v3296
  %v3313 = vmul.f32 %v3165, %v3296
  %v3314 = vmul.f32 %v3167, %v3296
  %v3315 = vmul.f32 %v3082, %v3301
  %v3316 = vmul.f32 %v3084, %v3301
  %v3317 = vmul.f32 %v3171, %v3301
  %v3318 = vmul.f32 %v3173, %v3301
  %3320 = vset.pattern.permute.xlu0 0
  %3321 = vperm.xlu0 %3320, %v3279
  %v3322 = vpop.permute.xlu0 %3321
  %3325 = vset.pattern.permute.xlu0 0
  %3326 = vperm.xlu0 %3325, %v3280
  %v3327 = vpop.permute.xlu0 %3326
  %3330 = vset.pattern.permute.xlu0 0
  %3331 = vperm.xlu0 %3330, %v3281
  %v3332 = vpop.permute.xlu0 %3331
  %3335 = vset.pattern.permute.xlu0 0
  %3336 = vperm.xlu0 %3335, %v3282
  %v3337 = vpop.permute.xlu0 %3336
  %v3339 = vadd.f32 %v3303, %v3322
  %v3340 = vadd.f32 %v3304, %v3322
  %v3341 = vadd.f32 %v3305, %v3322
  %v3342 = vadd.f32 %v3306, %v3322
  %v3343 = vadd.f32 %v3307, %v3327
  %v3344 = vadd.f32 %v3308, %v3327
  %v3345 = vadd.f32 %v3309, %v3327
  %v3346 = vadd.f32 %v3310, %v3327
  %v3347 = vadd.f32 %v3311, %v3332
  %v3348 = vadd.f32 %v3312, %v3332
  %v3349 = vadd.f32 %v3313, %v3332
  %v3350 = vadd.f32 %v3314, %v3332
  %v3351 = vadd.f32 %v3315, %v3337
  %v3352 = vadd.f32 %v3316, %v3337
  %v3353 = vadd.f32 %v3317, %v3337
  %v3354 = vadd.f32 %v3318, %v3337
  %v3355 = vadd.f32 %v2965, %v3339
  %v3356 = vadd.f32 %v2966, %v3340
  %v3357 = vadd.f32 %v2967, %v3341
  %v3358 = vadd.f32 %v2968, %v3342
  %v3359 = vadd.f32 %v2969, %v3343
  %v3360 = vadd.f32 %v2970, %v3344
  %v3361 = vadd.f32 %v2971, %v3345
  %v3362 = vadd.f32 %v2972, %v3346
  %v3363 = vadd.f32 %v2973, %v3347
  %v3364 = vadd.f32 %v2974, %v3348
  %v3365 = vadd.f32 %v2975, %v3349
  %v3366 = vadd.f32 %v2976, %v3350
  %v3367 = vadd.f32 %v2977, %v3351
  %v3368 = vadd.f32 %v2978, %v3352
  %v3369 = vadd.f32 %v2979, %v3353
  %v3370 = vadd.f32 %v2980, %v3354
  %v3371 = vmax.f32 %v3355, 0.0
  %v3372 = vmax.f32 %v3356, 0.0
  %v3373 = vmax.f32 %v3357, 0.0
  %v3374 = vmax.f32 %v3358, 0.0
  %v3375 = vmax.f32 %v3359, 0.0
  %v3376 = vmax.f32 %v3360, 0.0
  %v3377 = vmax.f32 %v3361, 0.0
  %v3378 = vmax.f32 %v3362, 0.0
  %v3379 = vmax.f32 %v3363, 0.0
  %v3380 = vmax.f32 %v3364, 0.0
  %v3381 = vmax.f32 %v3365, 0.0
  %v3382 = vmax.f32 %v3366, 0.0
  %v3383 = vmax.f32 %v3367, 0.0
  %v3384 = vmax.f32 %v3368, 0.0
  %v3385 = vmax.f32 %v3369, 0.0
  %v3386 = vmax.f32 %v3370, 0.0
  %3387 = vst [vmem:[%s18] sm:$0xff] %v3371
  %3388 = vst [vmem:[%s18 + $0x8] sm:$0xff] %v3372
  %3389 = vst [vmem:[%s18 + $0x10] sm:$0xff] %v3375
  %3390 = vst [vmem:[%s18 + $0x18] sm:$0xff] %v3376
  %3391 = vst [vmem:[%s18 + $0x20] sm:$0xff] %v3379
  %3392 = vst [vmem:[%s18 + $0x28] sm:$0xff] %v3380
  %3393 = vst [vmem:[%s18 + $0x30] sm:$0xff] %v3383
  %3394 = vst [vmem:[%s18 + $0x38] sm:$0xff] %v3384
  %s3395 = scalar_lea.vmem %s18, 64
  %3396 = vst [vmem:[%s3395] sm:$0xff] %v3373
  %3397 = vst [vmem:[%s3395 + $0x8] sm:$0xff] %v3374
  %3398 = vst [vmem:[%s3395 + $0x10] sm:$0xff] %v3377
  %3399 = vst [vmem:[%s3395 + $0x18] sm:$0xff] %v3378
  %3400 = vst [vmem:[%s3395 + $0x20] sm:$0xff] %v3381
  %3401 = vst [vmem:[%s3395 + $0x28] sm:$0xff] %v3382
  %3402 = vst [vmem:[%s3395 + $0x30] sm:$0xff] %v3385
  %3403 = vst [vmem:[%s3395 + $0x38] sm:$0xff] %v3386
  // Predicated region
  $region74: #{decoder_forward.1} parent=0 // pred_check
    _
  $region75: #{decoder_forward.1} parent=0 // pred_check_branch
    %3405 = sbr.rel (0) target = $region77
  $region76: #{decoder_forward.1} parent=0 // pred_region
    _
  $region77: #{decoder_forward.1} parent=0 // pred_fallthru
    _
  // Predicated region
  $region78: #{decoder_forward.1} parent=0 // pred_check
    _
  $region79: #{decoder_forward.1} parent=0 // pred_check_branch
    %3407 = sbr.rel (0) target = $region81
  $region80: #{decoder_forward.1} parent=0 // pred_region
    _
  $region81: #{decoder_forward.1} parent=0 // pred_fallthru
    _

</llo_original>
